<compile_context>
chip_gen: v6e
topology: v6e:2x2x1
jax: 0.10.0
libtpu: 0.0.40
codegen_flags: <defaults>
</compile_context>

<pallas_src>
import jax
import jax.numpy as jnp
from jax.experimental import pallas as pl
from jax.experimental.pallas import tpu as pltpu

_LEAKY_SLOPE = 0.2  # matches nn.LeakyReLU(0.2)


def _leaky_relu(x, slope=_LEAKY_SLOPE):
    # For 0 < slope < 1, max(x, slope*x) == LeakyReLU(x); avoids compare+select.
    return jnp.maximum(x, slope * x)


def _round_up(n, m):
    return ((n + m - 1) // m) * m


def _cdiv(a, b):
    return -(-a // b)


def _tpu_config():
    """Returns (max_batch_tile, vmem_capacity_bytes, num_tensorcores)."""
    kind = ""
    try:
        kind = jax.devices()[0].device_kind.lower()
    except Exception:  # pragma: no cover — interpret / odd backends
        pass
    vmem_cap = 128 * 2**20
    num_tc = 1
    max_tile = 256                    # fills the 2x256x256 MXU on v6e/v7x
    if "v5" in kind and ("lite" in kind or "5e" in kind):
        max_tile = 128                # v5e MXU is 4x128x128: M=128 already full
    if "v7" in kind:
        vmem_cap = 64 * 2**20         # v7x: 64 MiB VMEM per TensorCore
        num_tc = 2                    # 2 TCs/chip -> shard the parallel axis
    try:
        info = pltpu.get_tpu_info()
        vmem_cap = int(getattr(info, "vmem_capacity_bytes", vmem_cap))
    except Exception:  # hardware query is advisory only
        pass
    return max_tile, vmem_cap, num_tc


def _footprint_bytes(tb, tk, h1_dim, h2_dim, r_pad, x_bytes=4, out_bytes=4):
    weights = 2 * (tk * h1_dim + h1_dim * h2_dim + h2_dim * r_pad) * 2  # bf16, dbl-buf
    biases = 2 * (h1_dim + h2_dim + r_pad) * 4                          # f32, dbl-buf
    io = 2 * (tb * tk * x_bytes + tb * r_pad * out_bytes)               # x/out tiles
    scratch = tb * h1_dim * 4                                           # h1 f32 accumulator
    temps = tb * (h1_dim + h2_dim) * 4 + tb * (h1_dim + h2_dim) * 2     # working values
    return weights + biases + io + scratch + temps


def prepare_params(raw_params, *, max_batch_tile=None):
    """One-time parameter prep (do NOT call per forward step):
    bf16 weight casts, lane-padding of the final layer to a multiple of 128,
    and the layer-1 K-tiling plan for large d."""
    w1, b1, w2, b2, w3, b3 = raw_params
    d, h1_dim = w1.shape
    h2_dim = w2.shape[1]
    r = w3.shape[1]
    r_pad = _round_up(r, 128)                 # lane-dense output stores

    max_tile, vmem_cap, _ = _tpu_config()
    if max_batch_tile is None:
        max_batch_tile = max_tile
    budget = int((vmem_cap - 12 * 2**20) * 0.75)

    # Layer-1 K tiling: split the d contraction only when W1 + the x tile do
    # not fit the VMEM budget (mainly v7x / very large d).
    num_k, tk = 1, d
    while (_footprint_bytes(max_batch_tile, tk, h1_dim, h2_dim, r_pad) > budget
           and tk > 512):
        num_k += 1
        tk = max(512, _round_up(_cdiv(d, num_k), 128))
    d_pad = tk * num_k if num_k > 1 else d

    w1p = w1.astype(jnp.bfloat16)
    if d_pad != d:
        w1p = jnp.pad(w1p, ((0, d_pad - d), (0, 0)))     # zero rows are inert
    w3p = w3.astype(jnp.bfloat16)
    b3p = b3.reshape(1, r).astype(jnp.float32)
    if r_pad != r:
        w3p = jnp.pad(w3p, ((0, 0), (0, r_pad - r)))
        b3p = jnp.pad(b3p, ((0, 0), (0, r_pad - r)))

    return dict(
        w1=w1p, b1=b1.reshape(1, h1_dim).astype(jnp.float32),
        w2=w2.astype(jnp.bfloat16), b2=b2.reshape(1, h2_dim).astype(jnp.float32),
        w3=w3p, b3=b3p,
        d=d, d_pad=d_pad, tk=tk, num_k=num_k,
        h1_dim=h1_dim, h2_dim=h2_dim, r=r, r_pad=r_pad,
        max_batch_tile=max_batch_tile,
    )


def _choose_batch_tile(batch, max_tile, num_tc):
    """Batch tile: never collapses below max_tile unless the whole batch fits
    in one block; on 2-TC parts prefer an even grid-step count."""
    if batch <= max_tile:
        return batch                  # single block == full dim (no masking)
    tb = max_tile
    steps = _cdiv(batch, tb)
    if num_tc >= 2 and steps > 1 and steps % 2 == 1:
        # v7x: 'parallel' batch axis is sharded across 2 TensorCores; an odd
        # step count leaves one core idle for the tail step.
        tb2 = _round_up(_cdiv(batch, steps + 1), 8)
        if tb2 >= 64 and _cdiv(batch, tb2) % 2 == 0:
            tb = tb2
    return tb


def representation_kernel(x_ref, w1_ref, b1_ref, w2_ref, b2_ref, w3_ref, b3_ref,
                          o_ref, h1_acc):
    k = pl.program_id(1)

    @pl.when(k == 0)
    def _init():
        h1_acc[...] = jnp.zeros_like(h1_acc)

    # Layer 1 (partial contraction over d): cast the x tile to bf16 in-kernel
    # (full-rate MXU) and accumulate in f32 VMEM scratch.
    h1_acc[...] += jnp.dot(x_ref[...].astype(jnp.bfloat16), w1_ref[...],
                           preferred_element_type=jnp.float32)

    @pl.when(k == pl.num_programs(1) - 1)
    def _finish():
        h1 = _leaky_relu(h1_acc[...] + b1_ref[...]).astype(jnp.bfloat16)
        h2 = _leaky_relu(jnp.dot(h1, w2_ref[...],
                                 preferred_element_type=jnp.float32)
                         + b2_ref[...]).astype(jnp.bfloat16)
        out = jnp.dot(h2, w3_ref[...],
                      preferred_element_type=jnp.float32) + b3_ref[...]
        o_ref[...] = out.astype(o_ref.dtype)


def representation_forward(x, prep, *, out_dtype=None):
    """x: any (B, ...) array; flattened to (B, d) like torch's x.view(B, -1).
    `prep` is the result of prepare_params() (call once, reuse across steps)."""
    B = x.shape[0]
    x2d = x.reshape(B, -1)
    if x2d.shape[1] != prep["d"]:
        raise ValueError(f"expected flattened dim {prep['d']}, got {x2d.shape[1]}")
    if out_dtype is None:
        out_dtype = x.dtype

    d, d_pad, tk, num_k = prep["d"], prep["d_pad"], prep["tk"], prep["num_k"]
    h1_dim, h2_dim = prep["h1_dim"], prep["h2_dim"]
    r, r_pad = prep["r"], prep["r_pad"]

    if d_pad != d:
        # Only in the K-tiled (very large d) regime; zero columns are inert.
        x2d = jnp.pad(x2d, ((0, 0), (0, d_pad - d)))

    max_tile, vmem_cap, num_tc = _tpu_config()
    max_tile = min(max_tile, prep["max_batch_tile"])
    TB = _choose_batch_tile(B, max_tile, num_tc)
    grid_m = _cdiv(B, TB)

    x_bytes = jnp.dtype(x2d.dtype).itemsize
    out_bytes = jnp.dtype(out_dtype).itemsize
    footprint = _footprint_bytes(TB, tk, h1_dim, h2_dim, r_pad, x_bytes, out_bytes)
    headroom_cap = vmem_cap - 12 * 2**20          # room for Mosaic internal scratch
    vmem_limit = int(min(headroom_cap,
                         max(footprint * 1.4 + (2 << 20), 16 << 20)))
    vmem_limit = max(vmem_limit, 4 << 20)

    out = pl.pallas_call(
        representation_kernel,
        out_shape=jax.ShapeDtypeStruct((B, r_pad), out_dtype),
        grid_spec=pltpu.PrefetchScalarGridSpec(
            num_scalar_prefetch=0,
            grid=(grid_m, num_k),
            in_specs=[
                pl.BlockSpec((TB, tk), lambda i, k: (i, k)),          # x tile
                pl.BlockSpec((tk, h1_dim), lambda i, k: (k, 0)),      # W1 K-slab
                pl.BlockSpec((1, h1_dim), lambda i, k: (0, 0)),       # b1
                pl.BlockSpec((h1_dim, h2_dim), lambda i, k: (0, 0)),  # W2
                pl.BlockSpec((1, h2_dim), lambda i, k: (0, 0)),       # b2
                pl.BlockSpec((h2_dim, r_pad), lambda i, k: (0, 0)),   # W3 (lane-padded)
                pl.BlockSpec((1, r_pad), lambda i, k: (0, 0)),        # b3 (lane-padded)
            ],
            out_specs=pl.BlockSpec((TB, r_pad), lambda i, k: (i, 0)),
            scratch_shapes=[pltpu.VMEM((TB, h1_dim), jnp.float32)],   # layer-1 acc
        ),
        compiler_params=pltpu.CompilerParams(
            dimension_semantics=("parallel", "arbitrary"),
            vmem_limit_bytes=vmem_limit),
    )(x2d, prep["w1"], prep["b1"], prep["w2"], prep["b2"], prep["w3"], prep["b3"])

    if r_pad != r:
        out = out[:, :r]
    return out


def xavier_uniform(key, fan_in, fan_out, dtype=jnp.float32):
    # Matches torch.nn.init.xavier_uniform_ bound: sqrt(6 / (fan_in + fan_out))
    bound = (6.0 / (fan_in + fan_out)) ** 0.5
    return jax.random.uniform(key, (fan_in, fan_out), dtype=dtype,
                              minval=-bound, maxval=bound)


def init_params(key, d, r):
    k1, k2, k3 = jax.random.split(key, 3)
    w1 = xavier_uniform(k1, d, 512)
    b1 = jnp.zeros((512,), jnp.float32)
    w2 = xavier_uniform(k2, 512, 1024)
    b2 = jnp.zeros((1024,), jnp.float32)
    w3 = xavier_uniform(k3, 1024, r)
    b3 = jnp.zeros((r,), jnp.float32)
    return (w1, b1, w2, b2, w3, b3)


def reference_forward(x, raw_params):
    # Mirrors the kernel's numerics: bf16 matmul operands, f32 accumulation,
    # f32 biases.  (A strict-f32 PyTorch module matches only to ~1e-2 rel.)
    w1, b1, w2, b2, w3, b3 = raw_params
    xb = x.reshape(x.shape[0], -1).astype(jnp.bfloat16)
    h1 = _leaky_relu(jnp.dot(xb, w1.astype(jnp.bfloat16),
                             preferred_element_type=jnp.float32)
                     + b1.reshape(1, -1).astype(jnp.float32))
    h2 = _leaky_relu(jnp.dot(h1.astype(jnp.bfloat16), w2.astype(jnp.bfloat16),
                             preferred_element_type=jnp.float32)
                     + b2.reshape(1, -1).astype(jnp.float32))
    return (jnp.dot(h2.astype(jnp.bfloat16), w3.astype(jnp.bfloat16),
                    preferred_element_type=jnp.float32)
            + b3.reshape(1, -1).astype(jnp.float32))


if __name__ == "__main__":
    key = jax.random.PRNGKey(0)
    kx, kp = jax.random.split(key)

    # Small shapes consistent with the module: x flattens to d = 4*16*16 = 1024.
    B, C, H, W = 2, 4, 16, 16
    d = C * H * W
    r = 64

    x = jax.random.normal(kx, (B, C, H, W), dtype=jnp.float32)
    raw_params = init_params(kp, d, r)

    prep = prepare_params(raw_params)        # one-time weight prep (hoisted)
    fwd = jax.jit(lambda xx: representation_forward(xx, prep))

    out = jax.block_until_ready(fwd(x))
    ref = reference_forward(x, raw_params)

    assert out.shape == (B, r), out.shape
    max_err = float(jnp.max(jnp.abs(out.astype(jnp.float32)
                                    - ref.astype(jnp.float32))))
    assert max_err < 5e-3, max_err

    print("KERNEL_OK")
</pallas_src>

<mosaic_0001>
module attributes {stable_mosaic.version = 11 : i64} {
  func.func @representation_kernel(%arg0: i32, %arg1: i32, %arg2: memref<2x1024xf32, #tpu.memory_space<vmem>>, %arg3: memref<1024x512xbf16, #tpu.memory_space<vmem>>, %arg4: memref<1x512xf32, #tpu.memory_space<vmem>>, %arg5: memref<512x1024xbf16, #tpu.memory_space<vmem>>, %arg6: memref<1x1024xf32, #tpu.memory_space<vmem>>, %arg7: memref<1024x128xbf16, #tpu.memory_space<vmem>>, %arg8: memref<1x128xf32, #tpu.memory_space<vmem>>, %arg9: memref<2x128xf32, #tpu.memory_space<vmem>>, %arg10: memref<2x512xf32, #tpu.memory_space<vmem>>) attributes {dimension_semantics = [#tpu.dimension_semantics<parallel>, #tpu.dimension_semantics<arbitrary>], iteration_bounds = array<i64: 1, 1>, scalar_prefetch = 0 : i64, scratch_operands = 1 : i64, tpu.core_type = #tpu.core_type<tc>, window_params = [{transform_indices = @transform_0, window_bounds = array<i64: 2, 1024>}, {transform_indices = @transform_1, window_bounds = array<i64: 1024, 512>}, {pipeline_mode = #tpu.pipeline_mode<synchronous>, transform_indices = @transform_2, window_bounds = array<i64: 1, 512>}, {pipeline_mode = #tpu.pipeline_mode<synchronous>, transform_indices = @transform_3, window_bounds = array<i64: 512, 1024>}, {pipeline_mode = #tpu.pipeline_mode<synchronous>, transform_indices = @transform_4, window_bounds = array<i64: 1, 1024>}, {pipeline_mode = #tpu.pipeline_mode<synchronous>, transform_indices = @transform_5, window_bounds = array<i64: 1024, 128>}, {pipeline_mode = #tpu.pipeline_mode<synchronous>, transform_indices = @transform_6, window_bounds = array<i64: 1, 128>}, {transform_indices = @transform_7, window_bounds = array<i64: 2, 128>}]} {
    %c0_i32 = arith.constant 0 : i32
    %0 = arith.cmpi eq, %arg1, %c0_i32 : i32
    %1 = arith.extui %0 : i1 to i32
    %c0_i32_0 = arith.constant 0 : i32
    %2 = arith.cmpi ne, %1, %c0_i32_0 : i32
    scf.if %2 {
      %cst_10 = arith.constant 0.000000e+00 : f32
      %13 = vector.broadcast %cst_10 : f32 to vector<2x512xf32>
      %c0_11 = arith.constant 0 : index
      %c0_12 = arith.constant 0 : index
      %14 = vector.load %arg10[%c0_11, %c0_12] : memref<2x512xf32, #tpu.memory_space<vmem>>, vector<2x512xf32>
      tpu.vector_store %arg10[%c0_11, %c0_12], %13 {strides = array<i32>} : memref<2x512xf32, #tpu.memory_space<vmem>>, vector<2x512xf32>,
    } else {
    }
    %c0 = arith.constant 0 : index
    %c0_1 = arith.constant 0 : index
    %3 = vector.load %arg10[%c0, %c0_1] : memref<2x512xf32, #tpu.memory_space<vmem>>, vector<2x512xf32>
    %c0_2 = arith.constant 0 : index
    %c0_3 = arith.constant 0 : index
    %4 = vector.load %arg2[%c0_2, %c0_3] : memref<2x1024xf32, #tpu.memory_space<vmem>>, vector<2x1024xf32>
    %5 = arith.truncf %4 : vector<2x1024xf32> to vector<2x1024xbf16>
    %c0_4 = arith.constant 0 : index
    %c0_5 = arith.constant 0 : index
    %6 = vector.load %arg3[%c0_4, %c0_5] : memref<1024x512xbf16, #tpu.memory_space<vmem>>, vector<1024x512xbf16>
    %cst = arith.constant dense<0.000000e+00> : vector<2x512xf32>
    %7 = tpu.matmul %5, %6, %cst {dimension_numbers = #tpu.dot_dimension_numbers<[1], [0], [0], [1], [0, 0, 1, 1], [], []>} : vector<2x1024xbf16>, vector<1024x512xbf16>, vector<2x512xf32> -> vector<2x512xf32>
    %8 = arith.addf %3, %7 : vector<2x512xf32>
    %c0_6 = arith.constant 0 : index
    %c0_7 = arith.constant 0 : index
    %9 = vector.load %arg10[%c0_6, %c0_7] : memref<2x512xf32, #tpu.memory_space<vmem>>, vector<2x512xf32>
    tpu.vector_store %arg10[%c0_6, %c0_7], %8 {strides = array<i32>} : memref<2x512xf32, #tpu.memory_space<vmem>>, vector<2x512xf32>,
    %c0_i32_8 = arith.constant 0 : i32
    %10 = arith.cmpi eq, %arg1, %c0_i32_8 : i32
    %11 = arith.extui %10 : i1 to i32
    %c0_i32_9 = arith.constant 0 : i32
    %12 = arith.cmpi ne, %11, %c0_i32_9 : i32
    scf.if %12 {
      %c0_10 = arith.constant 0 : index
      %c0_11 = arith.constant 0 : index
      %13 = vector.load %arg10[%c0_10, %c0_11] : memref<2x512xf32, #tpu.memory_space<vmem>>, vector<2x512xf32>
      %c0_12 = arith.constant 0 : index
      %c0_13 = arith.constant 0 : index
      %14 = vector.load %arg4[%c0_12, %c0_13] : memref<1x512xf32, #tpu.memory_space<vmem>>, vector<1x512xf32>
      %15 = vector.broadcast %14 : vector<1x512xf32> to vector<2x512xf32>
      %16 = arith.addf %13, %15 : vector<2x512xf32>
      %cst_14 = arith.constant 2.000000e-01 : f32
      %17 = vector.broadcast %cst_14 : f32 to vector<2x512xf32>
      %18 = arith.mulf %17, %16 : vector<2x512xf32>
      %19 = arith.maximumf %16, %18 : vector<2x512xf32>
      %20 = arith.truncf %19 : vector<2x512xf32> to vector<2x512xbf16>
      %c0_15 = arith.constant 0 : index
      %c0_16 = arith.constant 0 : index
      %21 = vector.load %arg5[%c0_15, %c0_16] : memref<512x1024xbf16, #tpu.memory_space<vmem>>, vector<512x1024xbf16>
      %cst_17 = arith.constant dense<0.000000e+00> : vector<2x1024xf32>
      %22 = tpu.matmul %20, %21, %cst_17 {dimension_numbers = #tpu.dot_dimension_numbers<[1], [0], [0], [1], [0, 0, 1, 1], [], []>} : vector<2x512xbf16>, vector<512x1024xbf16>, vector<2x1024xf32> -> vector<2x1024xf32>
      %c0_18 = arith.constant 0 : index
      %c0_19 = arith.constant 0 : index
      %23 = vector.load %arg6[%c0_18, %c0_19] : memref<1x1024xf32, #tpu.memory_space<vmem>>, vector<1x1024xf32>
      %24 = vector.broadcast %23 : vector<1x1024xf32> to vector<2x1024xf32>
      %25 = arith.addf %22, %24 : vector<2x1024xf32>
      %cst_20 = arith.constant 2.000000e-01 : f32
      %26 = vector.broadcast %cst_20 : f32 to vector<2x1024xf32>
      %27 = arith.mulf %26, %25 : vector<2x1024xf32>
      %28 = arith.maximumf %25, %27 : vector<2x1024xf32>
      %29 = arith.truncf %28 : vector<2x1024xf32> to vector<2x1024xbf16>
      %c0_21 = arith.constant 0 : index
      %c0_22 = arith.constant 0 : index
      %30 = vector.load %arg7[%c0_21, %c0_22] : memref<1024x128xbf16, #tpu.memory_space<vmem>>, vector<1024x128xbf16>
      %cst_23 = arith.constant dense<0.000000e+00> : vector<2x128xf32>
      %31 = tpu.matmul %29, %30, %cst_23 {dimension_numbers = #tpu.dot_dimension_numbers<[1], [0], [0], [1], [0, 0, 1, 1], [], []>} : vector<2x1024xbf16>, vector<1024x128xbf16>, vector<2x128xf32> -> vector<2x128xf32>
      %c0_24 = arith.constant 0 : index
      %c0_25 = arith.constant 0 : index
      %32 = vector.load %arg8[%c0_24, %c0_25] : memref<1x128xf32, #tpu.memory_space<vmem>>, vector<1x128xf32>
      %33 = vector.broadcast %32 : vector<1x128xf32> to vector<2x128xf32>
      %34 = arith.addf %31, %33 : vector<2x128xf32>
      %c0_26 = arith.constant 0 : index
      %c0_27 = arith.constant 0 : index
      %35 = vector.load %arg9[%c0_26, %c0_27] : memref<2x128xf32, #tpu.memory_space<vmem>>, vector<2x128xf32>
      tpu.vector_store %arg9[%c0_26, %c0_27], %34 {strides = array<i32>} : memref<2x128xf32, #tpu.memory_space<vmem>>, vector<2x128xf32>,
    } else {
    }
    return
  }
  func.func @transform_0(%arg0: i32, %arg1: i32) -> (i32, i32) {
    %c0_i32 = arith.constant 0 : i32
    return %arg0, %arg1 : i32, i32
  }
  func.func @transform_1(%arg0: i32, %arg1: i32) -> (i32, i32) {
    %c0_i32 = arith.constant 0 : i32
    %c0_i32_0 = arith.constant 0 : i32
    return %arg1, %c0_i32 : i32, i32
  }
  func.func @transform_2(%arg0: i32, %arg1: i32) -> (i32, i32) {
    %c0_i32 = arith.constant 0 : i32
    %c0_i32_0 = arith.constant 0 : i32
    %c0_i32_1 = arith.constant 0 : i32
    return %c0_i32, %c0_i32_0 : i32, i32
  }
  func.func @transform_3(%arg0: i32, %arg1: i32) -> (i32, i32) {
    %c0_i32 = arith.constant 0 : i32
    %c0_i32_0 = arith.constant 0 : i32
    %c0_i32_1 = arith.constant 0 : i32
    return %c0_i32, %c0_i32_0 : i32, i32
  }
  func.func @transform_4(%arg0: i32, %arg1: i32) -> (i32, i32) {
    %c0_i32 = arith.constant 0 : i32
    %c0_i32_0 = arith.constant 0 : i32
    %c0_i32_1 = arith.constant 0 : i32
    return %c0_i32, %c0_i32_0 : i32, i32
  }
  func.func @transform_5(%arg0: i32, %arg1: i32) -> (i32, i32) {
    %c0_i32 = arith.constant 0 : i32
    %c0_i32_0 = arith.constant 0 : i32
    %c0_i32_1 = arith.constant 0 : i32
    return %c0_i32, %c0_i32_0 : i32, i32
  }
  func.func @transform_6(%arg0: i32, %arg1: i32) -> (i32, i32) {
    %c0_i32 = arith.constant 0 : i32
    %c0_i32_0 = arith.constant 0 : i32
    %c0_i32_1 = arith.constant 0 : i32
    return %c0_i32, %c0_i32_0 : i32, i32
  }
  func.func @transform_7(%arg0: i32, %arg1: i32) -> (i32, i32) {
    %c0_i32 = arith.constant 0 : i32
    %c0_i32_0 = arith.constant 0 : i32
    return %arg0, %c0_i32 : i32, i32
  }
}

</mosaic_0001>

<llo_original>
// kernel: _lambda_.1
$region0: #{_lambda_.1}
  #allocation0 [shape = 'u32[]', space=smem, size = 0x4, offset = 0x4, fixed_abs, tag = 'smem constant byte address 0x4 - core index']
  #allocation1 [shape = 'u32[144,128]{1,0:T(1,128)}', space=vmem, size = 0x12000, scoped, tag = 'internal scratch']
  #allocation2 [shape = 'f32[2,512]{1,0:T(2,128)}', space=vmem, size = 0x1000, scoped, tag = 'scratch operand']
  %s0 = inlined_call_operand.vmem [shape: f32[2,1024], index: 0, kind: input, shape index: {}]
  %s1 = inlined_call_operand.hbm [shape: bf16[1024,512], index: 1, kind: input, shape index: {}]
  %s2 = inlined_call_operand.vmem [shape: f32[1,512], index: 2, kind: input, shape index: {}]
  %s3 = inlined_call_operand.hbm [shape: bf16[512,1024], index: 3, kind: input, shape index: {}]
  %s4 = inlined_call_operand.vmem [shape: f32[1,1024], index: 4, kind: input, shape index: {}]
  %s5 = inlined_call_operand.hbm [shape: bf16[1024,128], index: 5, kind: input, shape index: {}]
  %s6 = inlined_call_operand.vmem [shape: f32[1,128], index: 6, kind: input, shape index: {}]
  %s7 = inlined_call_operand.hbm [shape: f32[2,128], index: 7, kind: output, shape index: {}]
  %s8 = sld [smem:[#allocation0]]
  $region58: #{_lambda_.1} parent=0
    _
  %s10 = ssub.s32 1, %s8
  %s11 = scalar_select 0, %s10, %s8
  $region1: #{_lambda_.1} parent=0
    #allocation3 [shape = 'u8[1048576]{0}', space=vmem, size = 0x100000, scoped, tag = 'input window, operand 1, single buffered']
    #allocation4 [shape = 's32[1]{0}', space=sflag, size = 0x4, scoped, tag = 'scoped memory for _lambda_.1']
    #allocation5 [shape = 's32[1]{0}', space=sflag, size = 0x4, scoped, tag = 'scoped memory for _lambda_.1']
    #allocation6 [shape = 'u8[1048576]{0}', space=vmem, size = 0x100000, scoped, tag = 'input window, operand 3, single buffered']
    #allocation7 [shape = 's32[1]{0}', space=sflag, size = 0x4, scoped, tag = 'scoped memory for _lambda_.1']
    #allocation8 [shape = 'u8[262144]{0}', space=vmem, size = 0x40000, scoped, tag = 'input window, operand 5, single buffered']
    #allocation9 [shape = 'u8[1024]{0}', space=vmem, size = 0x400, scoped, tag = 'output window, operand 0, single buffered']
    %12 = vsyncpa [#allocation4], 0
    %13 = vsyncpa [#allocation7], 0
    %14 = vsyncpa [#allocation5], 0
    // Predicated region
    $region2: #{_lambda_.1} parent=1 // pred_check
      _
    $region3: #{_lambda_.1} parent=1 // pred_check_branch
      %16 = sbr.rel (0) target = $region5
    $region4: #{_lambda_.1} parent=1 // pred_region
      _
    $region5: #{_lambda_.1} parent=1 // pred_fallthru
      _
    // Predicated region
    $region6: #{_lambda_.1} parent=1 // pred_check
      _
    $region7: #{_lambda_.1} parent=1 // pred_check_branch
      %18 = sbr.rel (0) target = $region9
    $region8: #{_lambda_.1} parent=1 // pred_region
      %s20 = ssub.s32 32768, 32768
      %21 = vsyncadd [#allocation4], %s20
      %s22 = sshll.u32 [#allocation3], 4
      %s23 = int_to_ptr.vmem [resolvable:$true] %s22
      %28 = dma.hbm_to_vmem [thread:$0]  %s1, 32768, %s23, [#allocation4], 256, 256, 16
    $region9: #{_lambda_.1} parent=1 // pred_fallthru
      _
    // Predicated region
    $region10: #{_lambda_.1} parent=1 // pred_check
      _
    $region11: #{_lambda_.1} parent=1 // pred_check_branch
      %30 = sbr.rel (0) target = $region13
    $region12: #{_lambda_.1} parent=1 // pred_region
      _
    $region13: #{_lambda_.1} parent=1 // pred_fallthru
      _
    // Predicated region
    $region14: #{_lambda_.1} parent=1 // pred_check
      _
    $region15: #{_lambda_.1} parent=1 // pred_check_branch
      %32 = sbr.rel (0) target = $region17
    $region16: #{_lambda_.1} parent=1 // pred_region
      %s34 = ssub.s32 32768, 32768
      %35 = vsyncadd [#allocation7], %s34
      %s36 = sshll.u32 [#allocation6], 4
      %s37 = int_to_ptr.vmem [resolvable:$true] %s36
      %42 = dma.hbm_to_vmem [thread:$0]  %s3, 32768, %s37, [#allocation7], 512, 512, 32
    $region17: #{_lambda_.1} parent=1 // pred_fallthru
      _
    // Predicated region
    $region18: #{_lambda_.1} parent=1 // pred_check
      _
    $region19: #{_lambda_.1} parent=1 // pred_check_branch
      %44 = sbr.rel (0) target = $region21
    $region20: #{_lambda_.1} parent=1 // pred_region
      _
    $region21: #{_lambda_.1} parent=1 // pred_fallthru
      _
    // Predicated region
    $region22: #{_lambda_.1} parent=1 // pred_check
      _
    $region23: #{_lambda_.1} parent=1 // pred_check_branch
      %46 = sbr.rel (0) target = $region25
    $region24: #{_lambda_.1} parent=1 // pred_region
      %s48 = ssub.s32 8192, 8192
      %49 = vsyncadd [#allocation7], %s48
      %s50 = sshll.u32 [#allocation8], 4
      %s51 = int_to_ptr.vmem [resolvable:$true] %s50
      %56 = dma.hbm_to_vmem [thread:$0]  %s5, 8192, %s51, [#allocation7], 64, 64, 4
    $region25: #{_lambda_.1} parent=1 // pred_fallthru
      _
    // Predicated region
    $region26: #{_lambda_.1} parent=1 // pred_check
      _
    $region27: #{_lambda_.1} parent=1 // pred_check_branch
      %58 = sbr.rel (0) target = $region29
    $region28: #{_lambda_.1} parent=1 // pred_region
      _
    $region29: #{_lambda_.1} parent=1 // pred_fallthru
      _
    // Predicated region
    $region30: #{_lambda_.1} parent=1 // pred_check
      _
    $region31: #{_lambda_.1} parent=1 // pred_check_branch
      %60 = sbr.rel (0) target = $region33
    $region32: #{_lambda_.1} parent=1 // pred_region
      %61 = dma.done [#allocation4], 32768
    $region33: #{_lambda_.1} parent=1 // pred_fallthru
      _
    // Predicated region
    $region34: #{_lambda_.1} parent=1 // pred_check
      _
    $region35: #{_lambda_.1} parent=1 // pred_check_branch
      %63 = sbr.rel (0) target = $region37
    $region36: #{_lambda_.1} parent=1 // pred_region
      %64 = dma.done [#allocation7], 32768
    $region37: #{_lambda_.1} parent=1 // pred_fallthru
      _
    // Predicated region
    $region38: #{_lambda_.1} parent=1 // pred_check
      _
    $region39: #{_lambda_.1} parent=1 // pred_check_branch
      %66 = sbr.rel (0) target = $region41
    $region40: #{_lambda_.1} parent=1 // pred_region
      %67 = dma.done [#allocation7], 8192
    $region41: #{_lambda_.1} parent=1 // pred_fallthru
      _
    %p69 = scmp.eq.s32.totalorder 0, 0
    // Predicated region
    $region42: #{_lambda_.1} parent=1 // pred_check
      %p70 = pneg %p69
    $region43: #{_lambda_.1} parent=1 // pred_check_branch
      %72 = sbr.rel (%p70) target = $region45
    $region44: #{_lambda_.1} parent=1 // pred_region
      %73 = vst [vmem:[#allocation2] sm:$0xff] 0.0
    $region45: #{_lambda_.1} parent=1 // pred_fallthru
      _
    %v74 = vld [vmem:[#allocation2] sm:$0xff]
    %v75 = vld [vmem:[%s0] sm:$0xff]
    %v76 = vld [vmem:[%s0 + $0x8] sm:$0xff]
    %v79 = vcombine.high %v75, %v75
    %v81 = vunpack.c.l.s4 1983009808
    %v82 = vunpack.c.0.s8 %v81
    %v83 = vlaneseq
    %v84 = vshrl.u32 %v83, 7
    %v85 = vsub.s32 %v82, %v84
    %v86 = vrot.slane %v75, %v85
    %v88 = vunpack.c.l.s4 1983009808
    %v89 = vunpack.c.0.s8 %v88
    %v90 = vlaneseq
    %v91 = vshrl.u32 %v90, 7
    %v92 = vsub.s32 %v89, %v91
    %v93 = vrot.slane %v79, %v92
    %v94 = vcombine.high %v86, %v86
    %v95 = vcombine.high %v93, %v93
    %v96 = vcombine.high %v76, %v76
    %v98 = vunpack.c.l.s4 1983009808
    %v99 = vunpack.c.0.s8 %v98
    %v100 = vlaneseq
    %v101 = vshrl.u32 %v100, 7
    %v102 = vsub.s32 %v99, %v101
    %v103 = vrot.slane %v76, %v102
    %v105 = vunpack.c.l.s4 1983009808
    %v106 = vunpack.c.0.s8 %v105
    %v107 = vlaneseq
    %v108 = vshrl.u32 %v107, 7
    %v109 = vsub.s32 %v106, %v108
    %v110 = vrot.slane %v96, %v109
    %v111 = vcombine.high %v103, %v103
    %v112 = vcombine.high %v110, %v110
    %v121 = vpack.c.bf16 %v86, %v86
    %v122 = vpack.c.bf16 %v94, %v94
    %v123 = vpack.c.bf16 %v93, %v93
    %v124 = vpack.c.bf16 %v95, %v95
    %v125 = vpack.c.bf16 %v103, %v103
    %v126 = vpack.c.bf16 %v111, %v111
    %v127 = vpack.c.bf16 %v110, %v110
    %v128 = vpack.c.bf16 %v112, %v112
    %v129 = vld [vmem:[#allocation3] sm:$0xff]
    %v130 = vld [vmem:[#allocation3 + $0x8] sm:$0xff]
    %v131 = vld [vmem:[#allocation3 + $0x10] sm:$0xff]
    %v132 = vld [vmem:[#allocation3 + $0x18] sm:$0xff]
    %v133 = vld [vmem:[#allocation3 + $0x20] sm:$0xff]
    %v134 = vld [vmem:[#allocation3 + $0x28] sm:$0xff]
    %v135 = vld [vmem:[#allocation3 + $0x30] sm:$0xff]
    %v136 = vld [vmem:[#allocation3 + $0x38] sm:$0xff]
    %v137 = vld [vmem:[#allocation3 + $0x40] sm:$0xff]
    %v138 = vld [vmem:[#allocation3 + $0x48] sm:$0xff]
    %v139 = vld [vmem:[#allocation3 + $0x50] sm:$0xff]
    %v140 = vld [vmem:[#allocation3 + $0x58] sm:$0xff]
    %v141 = vld [vmem:[#allocation3 + $0x60] sm:$0xff]
    %v142 = vld [vmem:[#allocation3 + $0x68] sm:$0xff]
    %v143 = vld [vmem:[#allocation3 + $0x70] sm:$0xff]
    %v144 = vld [vmem:[#allocation3 + $0x78] sm:$0xff]
    %v145 = vld [vmem:[#allocation3 + $0x80] sm:$0xff]
    %v146 = vld [vmem:[#allocation3 + $0x88] sm:$0xff]
    %v147 = vld [vmem:[#allocation3 + $0x90] sm:$0xff]
    %v148 = vld [vmem:[#allocation3 + $0x98] sm:$0xff]
    %v149 = vld [vmem:[#allocation3 + $0xa0] sm:$0xff]
    %v150 = vld [vmem:[#allocation3 + $0xa8] sm:$0xff]
    %v151 = vld [vmem:[#allocation3 + $0xb0] sm:$0xff]
    %v152 = vld [vmem:[#allocation3 + $0xb8] sm:$0xff]
    %v153 = vld [vmem:[#allocation3 + $0xc0] sm:$0xff]
    %v154 = vld [vmem:[#allocation3 + $0xc8] sm:$0xff]
    %v155 = vld [vmem:[#allocation3 + $0xd0] sm:$0xff]
    %v156 = vld [vmem:[#allocation3 + $0xd8] sm:$0xff]
    %v157 = vld [vmem:[#allocation3 + $0xe0] sm:$0xff]
    %v158 = vld [vmem:[#allocation3 + $0xe8] sm:$0xff]
    %v159 = vld [vmem:[#allocation3 + $0xf0] sm:$0xff]
    %v160 = vld [vmem:[#allocation3 + $0xf8] sm:$0xff]
    %v161 = vld [vmem:[#allocation3 + $0x100] sm:$0xff]
    %v162 = vld [vmem:[#allocation3 + $0x108] sm:$0xff]
    %v163 = vld [vmem:[#allocation3 + $0x110] sm:$0xff]
    %v164 = vld [vmem:[#allocation3 + $0x118] sm:$0xff]
    %v165 = vld [vmem:[#allocation3 + $0x120] sm:$0xff]
    %v166 = vld [vmem:[#allocation3 + $0x128] sm:$0xff]
    %v167 = vld [vmem:[#allocation3 + $0x130] sm:$0xff]
    %v168 = vld [vmem:[#allocation3 + $0x138] sm:$0xff]
    %v169 = vld [vmem:[#allocation3 + $0x140] sm:$0xff]
    %v170 = vld [vmem:[#allocation3 + $0x148] sm:$0xff]
    %v171 = vld [vmem:[#allocation3 + $0x150] sm:$0xff]
    %v172 = vld [vmem:[#allocation3 + $0x158] sm:$0xff]
    %v173 = vld [vmem:[#allocation3 + $0x160] sm:$0xff]
    %v174 = vld [vmem:[#allocation3 + $0x168] sm:$0xff]
    %v175 = vld [vmem:[#allocation3 + $0x170] sm:$0xff]
    %v176 = vld [vmem:[#allocation3 + $0x178] sm:$0xff]
    %v177 = vld [vmem:[#allocation3 + $0x180] sm:$0xff]
    %v178 = vld [vmem:[#allocation3 + $0x188] sm:$0xff]
    %v179 = vld [vmem:[#allocation3 + $0x190] sm:$0xff]
    %v180 = vld [vmem:[#allocation3 + $0x198] sm:$0xff]
    %v181 = vld [vmem:[#allocation3 + $0x1a0] sm:$0xff]
    %v182 = vld [vmem:[#allocation3 + $0x1a8] sm:$0xff]
    %v183 = vld [vmem:[#allocation3 + $0x1b0] sm:$0xff]
    %v184 = vld [vmem:[#allocation3 + $0x1b8] sm:$0xff]
    %v185 = vld [vmem:[#allocation3 + $0x1c0] sm:$0xff]
    %v186 = vld [vmem:[#allocation3 + $0x1c8] sm:$0xff]
    %v187 = vld [vmem:[#allocation3 + $0x1d0] sm:$0xff]
    %v188 = vld [vmem:[#allocation3 + $0x1d8] sm:$0xff]
    %v189 = vld [vmem:[#allocation3 + $0x1e0] sm:$0xff]
    %v190 = vld [vmem:[#allocation3 + $0x1e8] sm:$0xff]
    %v191 = vld [vmem:[#allocation3 + $0x1f0] sm:$0xff]
    %v192 = vld [vmem:[#allocation3 + $0x1f8] sm:$0xff]
    %v193 = vld [vmem:[#allocation3 + $0x200] sm:$0xff]
    %v194 = vld [vmem:[#allocation3 + $0x208] sm:$0xff]
    %v195 = vld [vmem:[#allocation3 + $0x210] sm:$0xff]
    %v196 = vld [vmem:[#allocation3 + $0x218] sm:$0xff]
    %v197 = vld [vmem:[#allocation3 + $0x220] sm:$0xff]
    %v198 = vld [vmem:[#allocation3 + $0x228] sm:$0xff]
    %v199 = vld [vmem:[#allocation3 + $0x230] sm:$0xff]
    %v200 = vld [vmem:[#allocation3 + $0x238] sm:$0xff]
    %v201 = vld [vmem:[#allocation3 + $0x240] sm:$0xff]
    %v202 = vld [vmem:[#allocation3 + $0x248] sm:$0xff]
    %v203 = vld [vmem:[#allocation3 + $0x250] sm:$0xff]
    %v204 = vld [vmem:[#allocation3 + $0x258] sm:$0xff]
    %v205 = vld [vmem:[#allocation3 + $0x260] sm:$0xff]
    %v206 = vld [vmem:[#allocation3 + $0x268] sm:$0xff]
    %v207 = vld [vmem:[#allocation3 + $0x270] sm:$0xff]
    %v208 = vld [vmem:[#allocation3 + $0x278] sm:$0xff]
    %v209 = vld [vmem:[#allocation3 + $0x280] sm:$0xff]
    %v210 = vld [vmem:[#allocation3 + $0x288] sm:$0xff]
    %v211 = vld [vmem:[#allocation3 + $0x290] sm:$0xff]
    %v212 = vld [vmem:[#allocation3 + $0x298] sm:$0xff]
    %v213 = vld [vmem:[#allocation3 + $0x2a0] sm:$0xff]
    %v214 = vld [vmem:[#allocation3 + $0x2a8] sm:$0xff]
    %v215 = vld [vmem:[#allocation3 + $0x2b0] sm:$0xff]
    %v216 = vld [vmem:[#allocation3 + $0x2b8] sm:$0xff]
    %v217 = vld [vmem:[#allocation3 + $0x2c0] sm:$0xff]
    %v218 = vld [vmem:[#allocation3 + $0x2c8] sm:$0xff]
    %v219 = vld [vmem:[#allocation3 + $0x2d0] sm:$0xff]
    %v220 = vld [vmem:[#allocation3 + $0x2d8] sm:$0xff]
    %v221 = vld [vmem:[#allocation3 + $0x2e0] sm:$0xff]
    %v222 = vld [vmem:[#allocation3 + $0x2e8] sm:$0xff]
    %v223 = vld [vmem:[#allocation3 + $0x2f0] sm:$0xff]
    %v224 = vld [vmem:[#allocation3 + $0x2f8] sm:$0xff]
    %v225 = vld [vmem:[#allocation3 + $0x300] sm:$0xff]
    %v226 = vld [vmem:[#allocation3 + $0x308] sm:$0xff]
    %v227 = vld [vmem:[#allocation3 + $0x310] sm:$0xff]
    %v228 = vld [vmem:[#allocation3 + $0x318] sm:$0xff]
    %v229 = vld [vmem:[#allocation3 + $0x320] sm:$0xff]
    %v230 = vld [vmem:[#allocation3 + $0x328] sm:$0xff]
    %v231 = vld [vmem:[#allocation3 + $0x330] sm:$0xff]
    %v232 = vld [vmem:[#allocation3 + $0x338] sm:$0xff]
    %v233 = vld [vmem:[#allocation3 + $0x340] sm:$0xff]
    %v234 = vld [vmem:[#allocation3 + $0x348] sm:$0xff]
    %v235 = vld [vmem:[#allocation3 + $0x350] sm:$0xff]
    %v236 = vld [vmem:[#allocation3 + $0x358] sm:$0xff]
    %v237 = vld [vmem:[#allocation3 + $0x360] sm:$0xff]
    %v238 = vld [vmem:[#allocation3 + $0x368] sm:$0xff]
    %v239 = vld [vmem:[#allocation3 + $0x370] sm:$0xff]
    %v240 = vld [vmem:[#allocation3 + $0x378] sm:$0xff]
    %v241 = vld [vmem:[#allocation3 + $0x380] sm:$0xff]
    %v242 = vld [vmem:[#allocation3 + $0x388] sm:$0xff]
    %v243 = vld [vmem:[#allocation3 + $0x390] sm:$0xff]
    %v244 = vld [vmem:[#allocation3 + $0x398] sm:$0xff]
    %v245 = vld [vmem:[#allocation3 + $0x3a0] sm:$0xff]
    %v246 = vld [vmem:[#allocation3 + $0x3a8] sm:$0xff]
    %v247 = vld [vmem:[#allocation3 + $0x3b0] sm:$0xff]
    %v248 = vld [vmem:[#allocation3 + $0x3b8] sm:$0xff]
    %v249 = vld [vmem:[#allocation3 + $0x3c0] sm:$0xff]
    %v250 = vld [vmem:[#allocation3 + $0x3c8] sm:$0xff]
    %v251 = vld [vmem:[#allocation3 + $0x3d0] sm:$0xff]
    %v252 = vld [vmem:[#allocation3 + $0x3d8] sm:$0xff]
    %v253 = vld [vmem:[#allocation3 + $0x3e0] sm:$0xff]
    %v254 = vld [vmem:[#allocation3 + $0x3e8] sm:$0xff]
    %v255 = vld [vmem:[#allocation3 + $0x3f0] sm:$0xff]
    %v256 = vld [vmem:[#allocation3 + $0x3f8] sm:$0xff]
    %v257 = vld [vmem:[#allocation3 + $0x400] sm:$0xff]
    %v258 = vld [vmem:[#allocation3 + $0x408] sm:$0xff]
    %v259 = vld [vmem:[#allocation3 + $0x410] sm:$0xff]
    %v260 = vld [vmem:[#allocation3 + $0x418] sm:$0xff]
    %v261 = vld [vmem:[#allocation3 + $0x420] sm:$0xff]
    %v262 = vld [vmem:[#allocation3 + $0x428] sm:$0xff]
    %v263 = vld [vmem:[#allocation3 + $0x430] sm:$0xff]
    %v264 = vld [vmem:[#allocation3 + $0x438] sm:$0xff]
    %v265 = vld [vmem:[#allocation3 + $0x440] sm:$0xff]
    %v266 = vld [vmem:[#allocation3 + $0x448] sm:$0xff]
    %v267 = vld [vmem:[#allocation3 + $0x450] sm:$0xff]
    %v268 = vld [vmem:[#allocation3 + $0x458] sm:$0xff]
    %v269 = vld [vmem:[#allocation3 + $0x460] sm:$0xff]
    %v270 = vld [vmem:[#allocation3 + $0x468] sm:$0xff]
    %v271 = vld [vmem:[#allocation3 + $0x470] sm:$0xff]
    %v272 = vld [vmem:[#allocation3 + $0x478] sm:$0xff]
    %v273 = vld [vmem:[#allocation3 + $0x480] sm:$0xff]
    %v274 = vld [vmem:[#allocation3 + $0x488] sm:$0xff]
    %v275 = vld [vmem:[#allocation3 + $0x490] sm:$0xff]
    %v276 = vld [vmem:[#allocation3 + $0x498] sm:$0xff]
    %v277 = vld [vmem:[#allocation3 + $0x4a0] sm:$0xff]
    %v278 = vld [vmem:[#allocation3 + $0x4a8] sm:$0xff]
    %v279 = vld [vmem:[#allocation3 + $0x4b0] sm:$0xff]
    %v280 = vld [vmem:[#allocation3 + $0x4b8] sm:$0xff]
    %v281 = vld [vmem:[#allocation3 + $0x4c0] sm:$0xff]
    %v282 = vld [vmem:[#allocation3 + $0x4c8] sm:$0xff]
    %v283 = vld [vmem:[#allocation3 + $0x4d0] sm:$0xff]
    %v284 = vld [vmem:[#allocation3 + $0x4d8] sm:$0xff]
    %v285 = vld [vmem:[#allocation3 + $0x4e0] sm:$0xff]
    %v286 = vld [vmem:[#allocation3 + $0x4e8] sm:$0xff]
    %v287 = vld [vmem:[#allocation3 + $0x4f0] sm:$0xff]
    %v288 = vld [vmem:[#allocation3 + $0x4f8] sm:$0xff]
    %v289 = vld [vmem:[#allocation3 + $0x500] sm:$0xff]
    %v290 = vld [vmem:[#allocation3 + $0x508] sm:$0xff]
    %v291 = vld [vmem:[#allocation3 + $0x510] sm:$0xff]
    %v292 = vld [vmem:[#allocation3 + $0x518] sm:$0xff]
    %v293 = vld [vmem:[#allocation3 + $0x520] sm:$0xff]
    %v294 = vld [vmem:[#allocation3 + $0x528] sm:$0xff]
    %v295 = vld [vmem:[#allocation3 + $0x530] sm:$0xff]
    %v296 = vld [vmem:[#allocation3 + $0x538] sm:$0xff]
    %v297 = vld [vmem:[#allocation3 + $0x540] sm:$0xff]
    %v298 = vld [vmem:[#allocation3 + $0x548] sm:$0xff]
    %v299 = vld [vmem:[#allocation3 + $0x550] sm:$0xff]
    %v300 = vld [vmem:[#allocation3 + $0x558] sm:$0xff]
    %v301 = vld [vmem:[#allocation3 + $0x560] sm:$0xff]
    %v302 = vld [vmem:[#allocation3 + $0x568] sm:$0xff]
    %v303 = vld [vmem:[#allocation3 + $0x570] sm:$0xff]
    %v304 = vld [vmem:[#allocation3 + $0x578] sm:$0xff]
    %v305 = vld [vmem:[#allocation3 + $0x580] sm:$0xff]
    %v306 = vld [vmem:[#allocation3 + $0x588] sm:$0xff]
    %v307 = vld [vmem:[#allocation3 + $0x590] sm:$0xff]
    %v308 = vld [vmem:[#allocation3 + $0x598] sm:$0xff]
    %v309 = vld [vmem:[#allocation3 + $0x5a0] sm:$0xff]
    %v310 = vld [vmem:[#allocation3 + $0x5a8] sm:$0xff]
    %v311 = vld [vmem:[#allocation3 + $0x5b0] sm:$0xff]
    %v312 = vld [vmem:[#allocation3 + $0x5b8] sm:$0xff]
    %v313 = vld [vmem:[#allocation3 + $0x5c0] sm:$0xff]
    %v314 = vld [vmem:[#allocation3 + $0x5c8] sm:$0xff]
    %v315 = vld [vmem:[#allocation3 + $0x5d0] sm:$0xff]
    %v316 = vld [vmem:[#allocation3 + $0x5d8] sm:$0xff]
    %v317 = vld [vmem:[#allocation3 + $0x5e0] sm:$0xff]
    %v318 = vld [vmem:[#allocation3 + $0x5e8] sm:$0xff]
    %v319 = vld [vmem:[#allocation3 + $0x5f0] sm:$0xff]
    %v320 = vld [vmem:[#allocation3 + $0x5f8] sm:$0xff]
    %v321 = vld [vmem:[#allocation3 + $0x600] sm:$0xff]
    %v322 = vld [vmem:[#allocation3 + $0x608] sm:$0xff]
    %v323 = vld [vmem:[#allocation3 + $0x610] sm:$0xff]
    %v324 = vld [vmem:[#allocation3 + $0x618] sm:$0xff]
    %v325 = vld [vmem:[#allocation3 + $0x620] sm:$0xff]
    %v326 = vld [vmem:[#allocation3 + $0x628] sm:$0xff]
    %v327 = vld [vmem:[#allocation3 + $0x630] sm:$0xff]
    %v328 = vld [vmem:[#allocation3 + $0x638] sm:$0xff]
    %v329 = vld [vmem:[#allocation3 + $0x640] sm:$0xff]
    %v330 = vld [vmem:[#allocation3 + $0x648] sm:$0xff]
    %v331 = vld [vmem:[#allocation3 + $0x650] sm:$0xff]
    %v332 = vld [vmem:[#allocation3 + $0x658] sm:$0xff]
    %v333 = vld [vmem:[#allocation3 + $0x660] sm:$0xff]
    %v334 = vld [vmem:[#allocation3 + $0x668] sm:$0xff]
    %v335 = vld [vmem:[#allocation3 + $0x670] sm:$0xff]
    %v336 = vld [vmem:[#allocation3 + $0x678] sm:$0xff]
    %v337 = vld [vmem:[#allocation3 + $0x680] sm:$0xff]
    %v338 = vld [vmem:[#allocation3 + $0x688] sm:$0xff]
    %v339 = vld [vmem:[#allocation3 + $0x690] sm:$0xff]
    %v340 = vld [vmem:[#allocation3 + $0x698] sm:$0xff]
    %v341 = vld [vmem:[#allocation3 + $0x6a0] sm:$0xff]
    %v342 = vld [vmem:[#allocation3 + $0x6a8] sm:$0xff]
    %v343 = vld [vmem:[#allocation3 + $0x6b0] sm:$0xff]
    %v344 = vld [vmem:[#allocation3 + $0x6b8] sm:$0xff]
    %v345 = vld [vmem:[#allocation3 + $0x6c0] sm:$0xff]
    %v346 = vld [vmem:[#allocation3 + $0x6c8] sm:$0xff]
    %v347 = vld [vmem:[#allocation3 + $0x6d0] sm:$0xff]
    %v348 = vld [vmem:[#allocation3 + $0x6d8] sm:$0xff]
    %v349 = vld [vmem:[#allocation3 + $0x6e0] sm:$0xff]
    %v350 = vld [vmem:[#allocation3 + $0x6e8] sm:$0xff]
    %v351 = vld [vmem:[#allocation3 + $0x6f0] sm:$0xff]
    %v352 = vld [vmem:[#allocation3 + $0x6f8] sm:$0xff]
    %v353 = vld [vmem:[#allocation3 + $0x700] sm:$0xff]
    %v354 = vld [vmem:[#allocation3 + $0x708] sm:$0xff]
    %v355 = vld [vmem:[#allocation3 + $0x710] sm:$0xff]
    %v356 = vld [vmem:[#allocation3 + $0x718] sm:$0xff]
    %v357 = vld [vmem:[#allocation3 + $0x720] sm:$0xff]
    %v358 = vld [vmem:[#allocation3 + $0x728] sm:$0xff]
    %v359 = vld [vmem:[#allocation3 + $0x730] sm:$0xff]
    %v360 = vld [vmem:[#allocation3 + $0x738] sm:$0xff]
    %v361 = vld [vmem:[#allocation3 + $0x740] sm:$0xff]
    %v362 = vld [vmem:[#allocation3 + $0x748] sm:$0xff]
    %v363 = vld [vmem:[#allocation3 + $0x750] sm:$0xff]
    %v364 = vld [vmem:[#allocation3 + $0x758] sm:$0xff]
    %v365 = vld [vmem:[#allocation3 + $0x760] sm:$0xff]
    %v366 = vld [vmem:[#allocation3 + $0x768] sm:$0xff]
    %v367 = vld [vmem:[#allocation3 + $0x770] sm:$0xff]
    %v368 = vld [vmem:[#allocation3 + $0x778] sm:$0xff]
    %v369 = vld [vmem:[#allocation3 + $0x780] sm:$0xff]
    %v370 = vld [vmem:[#allocation3 + $0x788] sm:$0xff]
    %v371 = vld [vmem:[#allocation3 + $0x790] sm:$0xff]
    %v372 = vld [vmem:[#allocation3 + $0x798] sm:$0xff]
    %v373 = vld [vmem:[#allocation3 + $0x7a0] sm:$0xff]
    %v374 = vld [vmem:[#allocation3 + $0x7a8] sm:$0xff]
    %v375 = vld [vmem:[#allocation3 + $0x7b0] sm:$0xff]
    %v376 = vld [vmem:[#allocation3 + $0x7b8] sm:$0xff]
    %v377 = vld [vmem:[#allocation3 + $0x7c0] sm:$0xff]
    %v378 = vld [vmem:[#allocation3 + $0x7c8] sm:$0xff]
    %v379 = vld [vmem:[#allocation3 + $0x7d0] sm:$0xff]
    %v380 = vld [vmem:[#allocation3 + $0x7d8] sm:$0xff]
    %v381 = vld [vmem:[#allocation3 + $0x7e0] sm:$0xff]
    %v382 = vld [vmem:[#allocation3 + $0x7e8] sm:$0xff]
    %v383 = vld [vmem:[#allocation3 + $0x7f0] sm:$0xff]
    %v384 = vld [vmem:[#allocation3 + $0x7f8] sm:$0xff]
    %v641 = vunpack.c.l.b16 %v129
    %v642 = vunpack.c.h.b16 %v129
    %v643 = vunpack.c.l.b16 %v130
    %v644 = vunpack.c.h.b16 %v130
    %v645 = vunpack.c.l.b16 %v131
    %v646 = vunpack.c.h.b16 %v131
    %v647 = vunpack.c.l.b16 %v132
    %v648 = vunpack.c.h.b16 %v132
    %v649 = vunpack.c.l.b16 %v133
    %v650 = vunpack.c.h.b16 %v133
    %v651 = vunpack.c.l.b16 %v134
    %v652 = vunpack.c.h.b16 %v134
    %v653 = vunpack.c.l.b16 %v135
    %v654 = vunpack.c.h.b16 %v135
    %v655 = vunpack.c.l.b16 %v136
    %v656 = vunpack.c.h.b16 %v136
    %v657 = vunpack.c.l.b16 %v137
    %v658 = vunpack.c.h.b16 %v137
    %v659 = vunpack.c.l.b16 %v138
    %v660 = vunpack.c.h.b16 %v138
    %v661 = vunpack.c.l.b16 %v139
    %v662 = vunpack.c.h.b16 %v139
    %v663 = vunpack.c.l.b16 %v140
    %v664 = vunpack.c.h.b16 %v140
    %v665 = vunpack.c.l.b16 %v141
    %v666 = vunpack.c.h.b16 %v141
    %v667 = vunpack.c.l.b16 %v142
    %v668 = vunpack.c.h.b16 %v142
    %v669 = vunpack.c.l.b16 %v143
    %v670 = vunpack.c.h.b16 %v143
    %v671 = vunpack.c.l.b16 %v144
    %v672 = vunpack.c.h.b16 %v144
    %v673 = vunpack.c.l.b16 %v145
    %v674 = vunpack.c.h.b16 %v145
    %v675 = vunpack.c.l.b16 %v146
    %v676 = vunpack.c.h.b16 %v146
    %v677 = vunpack.c.l.b16 %v147
    %v678 = vunpack.c.h.b16 %v147
    %v679 = vunpack.c.l.b16 %v148
    %v680 = vunpack.c.h.b16 %v148
    %v681 = vunpack.c.l.b16 %v149
    %v682 = vunpack.c.h.b16 %v149
    %v683 = vunpack.c.l.b16 %v150
    %v684 = vunpack.c.h.b16 %v150
    %v685 = vunpack.c.l.b16 %v151
    %v686 = vunpack.c.h.b16 %v151
    %v687 = vunpack.c.l.b16 %v152
    %v688 = vunpack.c.h.b16 %v152
    %v689 = vunpack.c.l.b16 %v153
    %v690 = vunpack.c.h.b16 %v153
    %v691 = vunpack.c.l.b16 %v154
    %v692 = vunpack.c.h.b16 %v154
    %v693 = vunpack.c.l.b16 %v155
    %v694 = vunpack.c.h.b16 %v155
    %v695 = vunpack.c.l.b16 %v156
    %v696 = vunpack.c.h.b16 %v156
    %v697 = vunpack.c.l.b16 %v157
    %v698 = vunpack.c.h.b16 %v157
    %v699 = vunpack.c.l.b16 %v158
    %v700 = vunpack.c.h.b16 %v158
    %v701 = vunpack.c.l.b16 %v159
    %v702 = vunpack.c.h.b16 %v159
    %v703 = vunpack.c.l.b16 %v160
    %v704 = vunpack.c.h.b16 %v160
    %v705 = vunpack.c.l.b16 %v161
    %v706 = vunpack.c.h.b16 %v161
    %v707 = vunpack.c.l.b16 %v162
    %v708 = vunpack.c.h.b16 %v162
    %v709 = vunpack.c.l.b16 %v163
    %v710 = vunpack.c.h.b16 %v163
    %v711 = vunpack.c.l.b16 %v164
    %v712 = vunpack.c.h.b16 %v164
    %v713 = vunpack.c.l.b16 %v165
    %v714 = vunpack.c.h.b16 %v165
    %v715 = vunpack.c.l.b16 %v166
    %v716 = vunpack.c.h.b16 %v166
    %v717 = vunpack.c.l.b16 %v167
    %v718 = vunpack.c.h.b16 %v167
    %v719 = vunpack.c.l.b16 %v168
    %v720 = vunpack.c.h.b16 %v168
    %v721 = vunpack.c.l.b16 %v169
    %v722 = vunpack.c.h.b16 %v169
    %v723 = vunpack.c.l.b16 %v170
    %v724 = vunpack.c.h.b16 %v170
    %v725 = vunpack.c.l.b16 %v171
    %v726 = vunpack.c.h.b16 %v171
    %v727 = vunpack.c.l.b16 %v172
    %v728 = vunpack.c.h.b16 %v172
    %v729 = vunpack.c.l.b16 %v173
    %v730 = vunpack.c.h.b16 %v173
    %v731 = vunpack.c.l.b16 %v174
    %v732 = vunpack.c.h.b16 %v174
    %v733 = vunpack.c.l.b16 %v175
    %v734 = vunpack.c.h.b16 %v175
    %v735 = vunpack.c.l.b16 %v176
    %v736 = vunpack.c.h.b16 %v176
    %v737 = vunpack.c.l.b16 %v177
    %v738 = vunpack.c.h.b16 %v177
    %v739 = vunpack.c.l.b16 %v178
    %v740 = vunpack.c.h.b16 %v178
    %v741 = vunpack.c.l.b16 %v179
    %v742 = vunpack.c.h.b16 %v179
    %v743 = vunpack.c.l.b16 %v180
    %v744 = vunpack.c.h.b16 %v180
    %v745 = vunpack.c.l.b16 %v181
    %v746 = vunpack.c.h.b16 %v181
    %v747 = vunpack.c.l.b16 %v182
    %v748 = vunpack.c.h.b16 %v182
    %v749 = vunpack.c.l.b16 %v183
    %v750 = vunpack.c.h.b16 %v183
    %v751 = vunpack.c.l.b16 %v184
    %v752 = vunpack.c.h.b16 %v184
    %v753 = vunpack.c.l.b16 %v185
    %v754 = vunpack.c.h.b16 %v185
    %v755 = vunpack.c.l.b16 %v186
    %v756 = vunpack.c.h.b16 %v186
    %v757 = vunpack.c.l.b16 %v187
    %v758 = vunpack.c.h.b16 %v187
    %v759 = vunpack.c.l.b16 %v188
    %v760 = vunpack.c.h.b16 %v188
    %v761 = vunpack.c.l.b16 %v189
    %v762 = vunpack.c.h.b16 %v189
    %v763 = vunpack.c.l.b16 %v190
    %v764 = vunpack.c.h.b16 %v190
    %v765 = vunpack.c.l.b16 %v191
    %v766 = vunpack.c.h.b16 %v191
    %v767 = vunpack.c.l.b16 %v192
    %v768 = vunpack.c.h.b16 %v192
    %v769 = vunpack.c.l.b16 %v193
    %v770 = vunpack.c.h.b16 %v193
    %v771 = vunpack.c.l.b16 %v194
    %v772 = vunpack.c.h.b16 %v194
    %v773 = vunpack.c.l.b16 %v195
    %v774 = vunpack.c.h.b16 %v195
    %v775 = vunpack.c.l.b16 %v196
    %v776 = vunpack.c.h.b16 %v196
    %v777 = vunpack.c.l.b16 %v197
    %v778 = vunpack.c.h.b16 %v197
    %v779 = vunpack.c.l.b16 %v198
    %v780 = vunpack.c.h.b16 %v198
    %v781 = vunpack.c.l.b16 %v199
    %v782 = vunpack.c.h.b16 %v199
    %v783 = vunpack.c.l.b16 %v200
    %v784 = vunpack.c.h.b16 %v200
    %v785 = vunpack.c.l.b16 %v201
    %v786 = vunpack.c.h.b16 %v201
    %v787 = vunpack.c.l.b16 %v202
    %v788 = vunpack.c.h.b16 %v202
    %v789 = vunpack.c.l.b16 %v203
    %v790 = vunpack.c.h.b16 %v203
    %v791 = vunpack.c.l.b16 %v204
    %v792 = vunpack.c.h.b16 %v204
    %v793 = vunpack.c.l.b16 %v205
    %v794 = vunpack.c.h.b16 %v205
    %v795 = vunpack.c.l.b16 %v206
    %v796 = vunpack.c.h.b16 %v206
    %v797 = vunpack.c.l.b16 %v207
    %v798 = vunpack.c.h.b16 %v207
    %v799 = vunpack.c.l.b16 %v208
    %v800 = vunpack.c.h.b16 %v208
    %v801 = vunpack.c.l.b16 %v209
    %v802 = vunpack.c.h.b16 %v209
    %v803 = vunpack.c.l.b16 %v210
    %v804 = vunpack.c.h.b16 %v210
    %v805 = vunpack.c.l.b16 %v211
    %v806 = vunpack.c.h.b16 %v211
    %v807 = vunpack.c.l.b16 %v212
    %v808 = vunpack.c.h.b16 %v212
    %v809 = vunpack.c.l.b16 %v213
    %v810 = vunpack.c.h.b16 %v213
    %v811 = vunpack.c.l.b16 %v214
    %v812 = vunpack.c.h.b16 %v214
    %v813 = vunpack.c.l.b16 %v215
    %v814 = vunpack.c.h.b16 %v215
    %v815 = vunpack.c.l.b16 %v216
    %v816 = vunpack.c.h.b16 %v216
    %v817 = vunpack.c.l.b16 %v217
    %v818 = vunpack.c.h.b16 %v217
    %v819 = vunpack.c.l.b16 %v218
    %v820 = vunpack.c.h.b16 %v218
    %v821 = vunpack.c.l.b16 %v219
    %v822 = vunpack.c.h.b16 %v219
    %v823 = vunpack.c.l.b16 %v220
    %v824 = vunpack.c.h.b16 %v220
    %v825 = vunpack.c.l.b16 %v221
    %v826 = vunpack.c.h.b16 %v221
    %v827 = vunpack.c.l.b16 %v222
    %v828 = vunpack.c.h.b16 %v222
    %v829 = vunpack.c.l.b16 %v223
    %v830 = vunpack.c.h.b16 %v223
    %v831 = vunpack.c.l.b16 %v224
    %v832 = vunpack.c.h.b16 %v224
    %v833 = vunpack.c.l.b16 %v225
    %v834 = vunpack.c.h.b16 %v225
    %v835 = vunpack.c.l.b16 %v226
    %v836 = vunpack.c.h.b16 %v226
    %v837 = vunpack.c.l.b16 %v227
    %v838 = vunpack.c.h.b16 %v227
    %v839 = vunpack.c.l.b16 %v228
    %v840 = vunpack.c.h.b16 %v228
    %v841 = vunpack.c.l.b16 %v229
    %v842 = vunpack.c.h.b16 %v229
    %v843 = vunpack.c.l.b16 %v230
    %v844 = vunpack.c.h.b16 %v230
    %v845 = vunpack.c.l.b16 %v231
    %v846 = vunpack.c.h.b16 %v231
    %v847 = vunpack.c.l.b16 %v232
    %v848 = vunpack.c.h.b16 %v232
    %v849 = vunpack.c.l.b16 %v233
    %v850 = vunpack.c.h.b16 %v233
    %v851 = vunpack.c.l.b16 %v234
    %v852 = vunpack.c.h.b16 %v234
    %v853 = vunpack.c.l.b16 %v235
    %v854 = vunpack.c.h.b16 %v235
    %v855 = vunpack.c.l.b16 %v236
    %v856 = vunpack.c.h.b16 %v236
    %v857 = vunpack.c.l.b16 %v237
    %v858 = vunpack.c.h.b16 %v237
    %v859 = vunpack.c.l.b16 %v238
    %v860 = vunpack.c.h.b16 %v238
    %v861 = vunpack.c.l.b16 %v239
    %v862 = vunpack.c.h.b16 %v239
    %v863 = vunpack.c.l.b16 %v240
    %v864 = vunpack.c.h.b16 %v240
    %v865 = vunpack.c.l.b16 %v241
    %v866 = vunpack.c.h.b16 %v241
    %v867 = vunpack.c.l.b16 %v242
    %v868 = vunpack.c.h.b16 %v242
    %v869 = vunpack.c.l.b16 %v243
    %v870 = vunpack.c.h.b16 %v243
    %v871 = vunpack.c.l.b16 %v244
    %v872 = vunpack.c.h.b16 %v244
    %v873 = vunpack.c.l.b16 %v245
    %v874 = vunpack.c.h.b16 %v245
    %v875 = vunpack.c.l.b16 %v246
    %v876 = vunpack.c.h.b16 %v246
    %v877 = vunpack.c.l.b16 %v247
    %v878 = vunpack.c.h.b16 %v247
    %v879 = vunpack.c.l.b16 %v248
    %v880 = vunpack.c.h.b16 %v248
    %v881 = vunpack.c.l.b16 %v249
    %v882 = vunpack.c.h.b16 %v249
    %v883 = vunpack.c.l.b16 %v250
    %v884 = vunpack.c.h.b16 %v250
    %v885 = vunpack.c.l.b16 %v251
    %v886 = vunpack.c.h.b16 %v251
    %v887 = vunpack.c.l.b16 %v252
    %v888 = vunpack.c.h.b16 %v252
    %v889 = vunpack.c.l.b16 %v253
    %v890 = vunpack.c.h.b16 %v253
    %v891 = vunpack.c.l.b16 %v254
    %v892 = vunpack.c.h.b16 %v254
    %v893 = vunpack.c.l.b16 %v255
    %v894 = vunpack.c.h.b16 %v255
    %v895 = vunpack.c.l.b16 %v256
    %v896 = vunpack.c.h.b16 %v256
    %v897 = vunpack.c.l.b16 %v257
    %v898 = vunpack.c.h.b16 %v257
    %v899 = vunpack.c.l.b16 %v258
    %v900 = vunpack.c.h.b16 %v258
    %v901 = vunpack.c.l.b16 %v259
    %v902 = vunpack.c.h.b16 %v259
    %v903 = vunpack.c.l.b16 %v260
    %v904 = vunpack.c.h.b16 %v260
    %v905 = vunpack.c.l.b16 %v261
    %v906 = vunpack.c.h.b16 %v261
    %v907 = vunpack.c.l.b16 %v262
    %v908 = vunpack.c.h.b16 %v262
    %v909 = vunpack.c.l.b16 %v263
    %v910 = vunpack.c.h.b16 %v263
    %v911 = vunpack.c.l.b16 %v264
    %v912 = vunpack.c.h.b16 %v264
    %v913 = vunpack.c.l.b16 %v265
    %v914 = vunpack.c.h.b16 %v265
    %v915 = vunpack.c.l.b16 %v266
    %v916 = vunpack.c.h.b16 %v266
    %v917 = vunpack.c.l.b16 %v267
    %v918 = vunpack.c.h.b16 %v267
    %v919 = vunpack.c.l.b16 %v268
    %v920 = vunpack.c.h.b16 %v268
    %v921 = vunpack.c.l.b16 %v269
    %v922 = vunpack.c.h.b16 %v269
    %v923 = vunpack.c.l.b16 %v270
    %v924 = vunpack.c.h.b16 %v270
    %v925 = vunpack.c.l.b16 %v271
    %v926 = vunpack.c.h.b16 %v271
    %v927 = vunpack.c.l.b16 %v272
    %v928 = vunpack.c.h.b16 %v272
    %v929 = vunpack.c.l.b16 %v273
    %v930 = vunpack.c.h.b16 %v273
    %v931 = vunpack.c.l.b16 %v274
    %v932 = vunpack.c.h.b16 %v274
    %v933 = vunpack.c.l.b16 %v275
    %v934 = vunpack.c.h.b16 %v275
    %v935 = vunpack.c.l.b16 %v276
    %v936 = vunpack.c.h.b16 %v276
    %v937 = vunpack.c.l.b16 %v277
    %v938 = vunpack.c.h.b16 %v277
    %v939 = vunpack.c.l.b16 %v278
    %v940 = vunpack.c.h.b16 %v278
    %v941 = vunpack.c.l.b16 %v279
    %v942 = vunpack.c.h.b16 %v279
    %v943 = vunpack.c.l.b16 %v280
    %v944 = vunpack.c.h.b16 %v280
    %v945 = vunpack.c.l.b16 %v281
    %v946 = vunpack.c.h.b16 %v281
    %v947 = vunpack.c.l.b16 %v282
    %v948 = vunpack.c.h.b16 %v282
    %v949 = vunpack.c.l.b16 %v283
    %v950 = vunpack.c.h.b16 %v283
    %v951 = vunpack.c.l.b16 %v284
    %v952 = vunpack.c.h.b16 %v284
    %v953 = vunpack.c.l.b16 %v285
    %v954 = vunpack.c.h.b16 %v285
    %v955 = vunpack.c.l.b16 %v286
    %v956 = vunpack.c.h.b16 %v286
    %v957 = vunpack.c.l.b16 %v287
    %v958 = vunpack.c.h.b16 %v287
    %v959 = vunpack.c.l.b16 %v288
    %v960 = vunpack.c.h.b16 %v288
    %v961 = vunpack.c.l.b16 %v289
    %v962 = vunpack.c.h.b16 %v289
    %v963 = vunpack.c.l.b16 %v290
    %v964 = vunpack.c.h.b16 %v290
    %v965 = vunpack.c.l.b16 %v291
    %v966 = vunpack.c.h.b16 %v291
    %v967 = vunpack.c.l.b16 %v292
    %v968 = vunpack.c.h.b16 %v292
    %v969 = vunpack.c.l.b16 %v293
    %v970 = vunpack.c.h.b16 %v293
    %v971 = vunpack.c.l.b16 %v294
    %v972 = vunpack.c.h.b16 %v294
    %v973 = vunpack.c.l.b16 %v295
    %v974 = vunpack.c.h.b16 %v295
    %v975 = vunpack.c.l.b16 %v296
    %v976 = vunpack.c.h.b16 %v296
    %v977 = vunpack.c.l.b16 %v297
    %v978 = vunpack.c.h.b16 %v297
    %v979 = vunpack.c.l.b16 %v298
    %v980 = vunpack.c.h.b16 %v298
    %v981 = vunpack.c.l.b16 %v299
    %v982 = vunpack.c.h.b16 %v299
    %v983 = vunpack.c.l.b16 %v300
    %v984 = vunpack.c.h.b16 %v300
    %v985 = vunpack.c.l.b16 %v301
    %v986 = vunpack.c.h.b16 %v301
    %v987 = vunpack.c.l.b16 %v302
    %v988 = vunpack.c.h.b16 %v302
    %v989 = vunpack.c.l.b16 %v303
    %v990 = vunpack.c.h.b16 %v303
    %v991 = vunpack.c.l.b16 %v304
    %v992 = vunpack.c.h.b16 %v304
    %v993 = vunpack.c.l.b16 %v305
    %v994 = vunpack.c.h.b16 %v305
    %v995 = vunpack.c.l.b16 %v306
    %v996 = vunpack.c.h.b16 %v306
    %v997 = vunpack.c.l.b16 %v307
    %v998 = vunpack.c.h.b16 %v307
    %v999 = vunpack.c.l.b16 %v308
    %v1000 = vunpack.c.h.b16 %v308
    %v1001 = vunpack.c.l.b16 %v309
    %v1002 = vunpack.c.h.b16 %v309
    %v1003 = vunpack.c.l.b16 %v310
    %v1004 = vunpack.c.h.b16 %v310
    %v1005 = vunpack.c.l.b16 %v311
    %v1006 = vunpack.c.h.b16 %v311
    %v1007 = vunpack.c.l.b16 %v312
    %v1008 = vunpack.c.h.b16 %v312
    %v1009 = vunpack.c.l.b16 %v313
    %v1010 = vunpack.c.h.b16 %v313
    %v1011 = vunpack.c.l.b16 %v314
    %v1012 = vunpack.c.h.b16 %v314
    %v1013 = vunpack.c.l.b16 %v315
    %v1014 = vunpack.c.h.b16 %v315
    %v1015 = vunpack.c.l.b16 %v316
    %v1016 = vunpack.c.h.b16 %v316
    %v1017 = vunpack.c.l.b16 %v317
    %v1018 = vunpack.c.h.b16 %v317
    %v1019 = vunpack.c.l.b16 %v318
    %v1020 = vunpack.c.h.b16 %v318
    %v1021 = vunpack.c.l.b16 %v319
    %v1022 = vunpack.c.h.b16 %v319
    %v1023 = vunpack.c.l.b16 %v320
    %v1024 = vunpack.c.h.b16 %v320
    %v1025 = vunpack.c.l.b16 %v321
    %v1026 = vunpack.c.h.b16 %v321
    %v1027 = vunpack.c.l.b16 %v322
    %v1028 = vunpack.c.h.b16 %v322
    %v1029 = vunpack.c.l.b16 %v323
    %v1030 = vunpack.c.h.b16 %v323
    %v1031 = vunpack.c.l.b16 %v324
    %v1032 = vunpack.c.h.b16 %v324
    %v1033 = vunpack.c.l.b16 %v325
    %v1034 = vunpack.c.h.b16 %v325
    %v1035 = vunpack.c.l.b16 %v326
    %v1036 = vunpack.c.h.b16 %v326
    %v1037 = vunpack.c.l.b16 %v327
    %v1038 = vunpack.c.h.b16 %v327
    %v1039 = vunpack.c.l.b16 %v328
    %v1040 = vunpack.c.h.b16 %v328
    %v1041 = vunpack.c.l.b16 %v329
    %v1042 = vunpack.c.h.b16 %v329
    %v1043 = vunpack.c.l.b16 %v330
    %v1044 = vunpack.c.h.b16 %v330
    %v1045 = vunpack.c.l.b16 %v331
    %v1046 = vunpack.c.h.b16 %v331
    %v1047 = vunpack.c.l.b16 %v332
    %v1048 = vunpack.c.h.b16 %v332
    %v1049 = vunpack.c.l.b16 %v333
    %v1050 = vunpack.c.h.b16 %v333
    %v1051 = vunpack.c.l.b16 %v334
    %v1052 = vunpack.c.h.b16 %v334
    %v1053 = vunpack.c.l.b16 %v335
    %v1054 = vunpack.c.h.b16 %v335
    %v1055 = vunpack.c.l.b16 %v336
    %v1056 = vunpack.c.h.b16 %v336
    %v1057 = vunpack.c.l.b16 %v337
    %v1058 = vunpack.c.h.b16 %v337
    %v1059 = vunpack.c.l.b16 %v338
    %v1060 = vunpack.c.h.b16 %v338
    %v1061 = vunpack.c.l.b16 %v339
    %v1062 = vunpack.c.h.b16 %v339
    %v1063 = vunpack.c.l.b16 %v340
    %v1064 = vunpack.c.h.b16 %v340
    %v1065 = vunpack.c.l.b16 %v341
    %v1066 = vunpack.c.h.b16 %v341
    %v1067 = vunpack.c.l.b16 %v342
    %v1068 = vunpack.c.h.b16 %v342
    %v1069 = vunpack.c.l.b16 %v343
    %v1070 = vunpack.c.h.b16 %v343
    %v1071 = vunpack.c.l.b16 %v344
    %v1072 = vunpack.c.h.b16 %v344
    %v1073 = vunpack.c.l.b16 %v345
    %v1074 = vunpack.c.h.b16 %v345
    %v1075 = vunpack.c.l.b16 %v346
    %v1076 = vunpack.c.h.b16 %v346
    %v1077 = vunpack.c.l.b16 %v347
    %v1078 = vunpack.c.h.b16 %v347
    %v1079 = vunpack.c.l.b16 %v348
    %v1080 = vunpack.c.h.b16 %v348
    %v1081 = vunpack.c.l.b16 %v349
    %v1082 = vunpack.c.h.b16 %v349
    %v1083 = vunpack.c.l.b16 %v350
    %v1084 = vunpack.c.h.b16 %v350
    %v1085 = vunpack.c.l.b16 %v351
    %v1086 = vunpack.c.h.b16 %v351
    %v1087 = vunpack.c.l.b16 %v352
    %v1088 = vunpack.c.h.b16 %v352
    %v1089 = vunpack.c.l.b16 %v353
    %v1090 = vunpack.c.h.b16 %v353
    %v1091 = vunpack.c.l.b16 %v354
    %v1092 = vunpack.c.h.b16 %v354
    %v1093 = vunpack.c.l.b16 %v355
    %v1094 = vunpack.c.h.b16 %v355
    %v1095 = vunpack.c.l.b16 %v356
    %v1096 = vunpack.c.h.b16 %v356
    %v1097 = vunpack.c.l.b16 %v357
    %v1098 = vunpack.c.h.b16 %v357
    %v1099 = vunpack.c.l.b16 %v358
    %v1100 = vunpack.c.h.b16 %v358
    %v1101 = vunpack.c.l.b16 %v359
    %v1102 = vunpack.c.h.b16 %v359
    %v1103 = vunpack.c.l.b16 %v360
    %v1104 = vunpack.c.h.b16 %v360
    %v1105 = vunpack.c.l.b16 %v361
    %v1106 = vunpack.c.h.b16 %v361
    %v1107 = vunpack.c.l.b16 %v362
    %v1108 = vunpack.c.h.b16 %v362
    %v1109 = vunpack.c.l.b16 %v363
    %v1110 = vunpack.c.h.b16 %v363
    %v1111 = vunpack.c.l.b16 %v364
    %v1112 = vunpack.c.h.b16 %v364
    %v1113 = vunpack.c.l.b16 %v365
    %v1114 = vunpack.c.h.b16 %v365
    %v1115 = vunpack.c.l.b16 %v366
    %v1116 = vunpack.c.h.b16 %v366
    %v1117 = vunpack.c.l.b16 %v367
    %v1118 = vunpack.c.h.b16 %v367
    %v1119 = vunpack.c.l.b16 %v368
    %v1120 = vunpack.c.h.b16 %v368
    %v1121 = vunpack.c.l.b16 %v369
    %v1122 = vunpack.c.h.b16 %v369
    %v1123 = vunpack.c.l.b16 %v370
    %v1124 = vunpack.c.h.b16 %v370
    %v1125 = vunpack.c.l.b16 %v371
    %v1126 = vunpack.c.h.b16 %v371
    %v1127 = vunpack.c.l.b16 %v372
    %v1128 = vunpack.c.h.b16 %v372
    %v1129 = vunpack.c.l.b16 %v373
    %v1130 = vunpack.c.h.b16 %v373
    %v1131 = vunpack.c.l.b16 %v374
    %v1132 = vunpack.c.h.b16 %v374
    %v1133 = vunpack.c.l.b16 %v375
    %v1134 = vunpack.c.h.b16 %v375
    %v1135 = vunpack.c.l.b16 %v376
    %v1136 = vunpack.c.h.b16 %v376
    %v1137 = vunpack.c.l.b16 %v377
    %v1138 = vunpack.c.h.b16 %v377
    %v1139 = vunpack.c.l.b16 %v378
    %v1140 = vunpack.c.h.b16 %v378
    %v1141 = vunpack.c.l.b16 %v379
    %v1142 = vunpack.c.h.b16 %v379
    %v1143 = vunpack.c.l.b16 %v380
    %v1144 = vunpack.c.h.b16 %v380
    %v1145 = vunpack.c.l.b16 %v381
    %v1146 = vunpack.c.h.b16 %v381
    %v1147 = vunpack.c.l.b16 %v382
    %v1148 = vunpack.c.h.b16 %v382
    %v1149 = vunpack.c.l.b16 %v383
    %v1150 = vunpack.c.h.b16 %v383
    %v1151 = vunpack.c.l.b16 %v384
    %v1152 = vunpack.c.h.b16 %v384
    %v1153 = vpack.c.b16 %v645, %v641
    %v1154 = vpack.c.b16 %v646, %v642
    %v1155 = vpack.c.b16 %v647, %v643
    %v1156 = vpack.c.b16 %v648, %v644
    %v1157 = vpack.c.b16 %v653, %v649
    %v1158 = vpack.c.b16 %v654, %v650
    %v1159 = vpack.c.b16 %v655, %v651
    %v1160 = vpack.c.b16 %v656, %v652
    %v1161 = vpack.c.b16 %v661, %v657
    %v1162 = vpack.c.b16 %v662, %v658
    %v1163 = vpack.c.b16 %v663, %v659
    %v1164 = vpack.c.b16 %v664, %v660
    %v1165 = vpack.c.b16 %v669, %v665
    %v1166 = vpack.c.b16 %v670, %v666
    %v1167 = vpack.c.b16 %v671, %v667
    %v1168 = vpack.c.b16 %v672, %v668
    %v1169 = vpack.c.b16 %v677, %v673
    %v1170 = vpack.c.b16 %v678, %v674
    %v1171 = vpack.c.b16 %v679, %v675
    %v1172 = vpack.c.b16 %v680, %v676
    %v1173 = vpack.c.b16 %v685, %v681
    %v1174 = vpack.c.b16 %v686, %v682
    %v1175 = vpack.c.b16 %v687, %v683
    %v1176 = vpack.c.b16 %v688, %v684
    %v1177 = vpack.c.b16 %v693, %v689
    %v1178 = vpack.c.b16 %v694, %v690
    %v1179 = vpack.c.b16 %v695, %v691
    %v1180 = vpack.c.b16 %v696, %v692
    %v1181 = vpack.c.b16 %v701, %v697
    %v1182 = vpack.c.b16 %v702, %v698
    %v1183 = vpack.c.b16 %v703, %v699
    %v1184 = vpack.c.b16 %v704, %v700
    %v1185 = vpack.c.b16 %v709, %v705
    %v1186 = vpack.c.b16 %v710, %v706
    %v1187 = vpack.c.b16 %v711, %v707
    %v1188 = vpack.c.b16 %v712, %v708
    %v1189 = vpack.c.b16 %v717, %v713
    %v1190 = vpack.c.b16 %v718, %v714
    %v1191 = vpack.c.b16 %v719, %v715
    %v1192 = vpack.c.b16 %v720, %v716
    %v1193 = vpack.c.b16 %v725, %v721
    %v1194 = vpack.c.b16 %v726, %v722
    %v1195 = vpack.c.b16 %v727, %v723
    %v1196 = vpack.c.b16 %v728, %v724
    %v1197 = vpack.c.b16 %v733, %v729
    %v1198 = vpack.c.b16 %v734, %v730
    %v1199 = vpack.c.b16 %v735, %v731
    %v1200 = vpack.c.b16 %v736, %v732
    %v1201 = vpack.c.b16 %v741, %v737
    %v1202 = vpack.c.b16 %v742, %v738
    %v1203 = vpack.c.b16 %v743, %v739
    %v1204 = vpack.c.b16 %v744, %v740
    %v1205 = vpack.c.b16 %v749, %v745
    %v1206 = vpack.c.b16 %v750, %v746
    %v1207 = vpack.c.b16 %v751, %v747
    %v1208 = vpack.c.b16 %v752, %v748
    %v1209 = vpack.c.b16 %v757, %v753
    %v1210 = vpack.c.b16 %v758, %v754
    %v1211 = vpack.c.b16 %v759, %v755
    %v1212 = vpack.c.b16 %v760, %v756
    %v1213 = vpack.c.b16 %v765, %v761
    %v1214 = vpack.c.b16 %v766, %v762
    %v1215 = vpack.c.b16 %v767, %v763
    %v1216 = vpack.c.b16 %v768, %v764
    %v1217 = vpack.c.b16 %v773, %v769
    %v1218 = vpack.c.b16 %v774, %v770
    %v1219 = vpack.c.b16 %v775, %v771
    %v1220 = vpack.c.b16 %v776, %v772
    %v1221 = vpack.c.b16 %v781, %v777
    %v1222 = vpack.c.b16 %v782, %v778
    %v1223 = vpack.c.b16 %v783, %v779
    %v1224 = vpack.c.b16 %v784, %v780
    %v1225 = vpack.c.b16 %v789, %v785
    %v1226 = vpack.c.b16 %v790, %v786
    %v1227 = vpack.c.b16 %v791, %v787
    %v1228 = vpack.c.b16 %v792, %v788
    %v1229 = vpack.c.b16 %v797, %v793
    %v1230 = vpack.c.b16 %v798, %v794
    %v1231 = vpack.c.b16 %v799, %v795
    %v1232 = vpack.c.b16 %v800, %v796
    %v1233 = vpack.c.b16 %v805, %v801
    %v1234 = vpack.c.b16 %v806, %v802
    %v1235 = vpack.c.b16 %v807, %v803
    %v1236 = vpack.c.b16 %v808, %v804
    %v1237 = vpack.c.b16 %v813, %v809
    %v1238 = vpack.c.b16 %v814, %v810
    %v1239 = vpack.c.b16 %v815, %v811
    %v1240 = vpack.c.b16 %v816, %v812
    %v1241 = vpack.c.b16 %v821, %v817
    %v1242 = vpack.c.b16 %v822, %v818
    %v1243 = vpack.c.b16 %v823, %v819
    %v1244 = vpack.c.b16 %v824, %v820
    %v1245 = vpack.c.b16 %v829, %v825
    %v1246 = vpack.c.b16 %v830, %v826
    %v1247 = vpack.c.b16 %v831, %v827
    %v1248 = vpack.c.b16 %v832, %v828
    %v1249 = vpack.c.b16 %v837, %v833
    %v1250 = vpack.c.b16 %v838, %v834
    %v1251 = vpack.c.b16 %v839, %v835
    %v1252 = vpack.c.b16 %v840, %v836
    %v1253 = vpack.c.b16 %v845, %v841
    %v1254 = vpack.c.b16 %v846, %v842
    %v1255 = vpack.c.b16 %v847, %v843
    %v1256 = vpack.c.b16 %v848, %v844
    %v1257 = vpack.c.b16 %v853, %v849
    %v1258 = vpack.c.b16 %v854, %v850
    %v1259 = vpack.c.b16 %v855, %v851
    %v1260 = vpack.c.b16 %v856, %v852
    %v1261 = vpack.c.b16 %v861, %v857
    %v1262 = vpack.c.b16 %v862, %v858
    %v1263 = vpack.c.b16 %v863, %v859
    %v1264 = vpack.c.b16 %v864, %v860
    %v1265 = vpack.c.b16 %v869, %v865
    %v1266 = vpack.c.b16 %v870, %v866
    %v1267 = vpack.c.b16 %v871, %v867
    %v1268 = vpack.c.b16 %v872, %v868
    %v1269 = vpack.c.b16 %v877, %v873
    %v1270 = vpack.c.b16 %v878, %v874
    %v1271 = vpack.c.b16 %v879, %v875
    %v1272 = vpack.c.b16 %v880, %v876
    %v1273 = vpack.c.b16 %v885, %v881
    %v1274 = vpack.c.b16 %v886, %v882
    %v1275 = vpack.c.b16 %v887, %v883
    %v1276 = vpack.c.b16 %v888, %v884
    %v1277 = vpack.c.b16 %v893, %v889
    %v1278 = vpack.c.b16 %v894, %v890
    %v1279 = vpack.c.b16 %v895, %v891
    %v1280 = vpack.c.b16 %v896, %v892
    %v1281 = vpack.c.b16 %v901, %v897
    %v1282 = vpack.c.b16 %v902, %v898
    %v1283 = vpack.c.b16 %v903, %v899
    %v1284 = vpack.c.b16 %v904, %v900
    %v1285 = vpack.c.b16 %v909, %v905
    %v1286 = vpack.c.b16 %v910, %v906
    %v1287 = vpack.c.b16 %v911, %v907
    %v1288 = vpack.c.b16 %v912, %v908
    %v1289 = vpack.c.b16 %v917, %v913
    %v1290 = vpack.c.b16 %v918, %v914
    %v1291 = vpack.c.b16 %v919, %v915
    %v1292 = vpack.c.b16 %v920, %v916
    %v1293 = vpack.c.b16 %v925, %v921
    %v1294 = vpack.c.b16 %v926, %v922
    %v1295 = vpack.c.b16 %v927, %v923
    %v1296 = vpack.c.b16 %v928, %v924
    %v1297 = vpack.c.b16 %v933, %v929
    %v1298 = vpack.c.b16 %v934, %v930
    %v1299 = vpack.c.b16 %v935, %v931
    %v1300 = vpack.c.b16 %v936, %v932
    %v1301 = vpack.c.b16 %v941, %v937
    %v1302 = vpack.c.b16 %v942, %v938
    %v1303 = vpack.c.b16 %v943, %v939
    %v1304 = vpack.c.b16 %v944, %v940
    %v1305 = vpack.c.b16 %v949, %v945
    %v1306 = vpack.c.b16 %v950, %v946
    %v1307 = vpack.c.b16 %v951, %v947
    %v1308 = vpack.c.b16 %v952, %v948
    %v1309 = vpack.c.b16 %v957, %v953
    %v1310 = vpack.c.b16 %v958, %v954
    %v1311 = vpack.c.b16 %v959, %v955
    %v1312 = vpack.c.b16 %v960, %v956
    %v1313 = vpack.c.b16 %v965, %v961
    %v1314 = vpack.c.b16 %v966, %v962
    %v1315 = vpack.c.b16 %v967, %v963
    %v1316 = vpack.c.b16 %v968, %v964
    %v1317 = vpack.c.b16 %v973, %v969
    %v1318 = vpack.c.b16 %v974, %v970
    %v1319 = vpack.c.b16 %v975, %v971
    %v1320 = vpack.c.b16 %v976, %v972
    %v1321 = vpack.c.b16 %v981, %v977
    %v1322 = vpack.c.b16 %v982, %v978
    %v1323 = vpack.c.b16 %v983, %v979
    %v1324 = vpack.c.b16 %v984, %v980
    %v1325 = vpack.c.b16 %v989, %v985
    %v1326 = vpack.c.b16 %v990, %v986
    %v1327 = vpack.c.b16 %v991, %v987
    %v1328 = vpack.c.b16 %v992, %v988
    %v1329 = vpack.c.b16 %v997, %v993
    %v1330 = vpack.c.b16 %v998, %v994
    %v1331 = vpack.c.b16 %v999, %v995
    %v1332 = vpack.c.b16 %v1000, %v996
    %v1333 = vpack.c.b16 %v1005, %v1001
    %v1334 = vpack.c.b16 %v1006, %v1002
    %v1335 = vpack.c.b16 %v1007, %v1003
    %v1336 = vpack.c.b16 %v1008, %v1004
    %v1337 = vpack.c.b16 %v1013, %v1009
    %v1338 = vpack.c.b16 %v1014, %v1010
    %v1339 = vpack.c.b16 %v1015, %v1011
    %v1340 = vpack.c.b16 %v1016, %v1012
    %v1341 = vpack.c.b16 %v1021, %v1017
    %v1342 = vpack.c.b16 %v1022, %v1018
    %v1343 = vpack.c.b16 %v1023, %v1019
    %v1344 = vpack.c.b16 %v1024, %v1020
    %v1345 = vpack.c.b16 %v1029, %v1025
    %v1346 = vpack.c.b16 %v1030, %v1026
    %v1347 = vpack.c.b16 %v1031, %v1027
    %v1348 = vpack.c.b16 %v1032, %v1028
    %v1349 = vpack.c.b16 %v1037, %v1033
    %v1350 = vpack.c.b16 %v1038, %v1034
    %v1351 = vpack.c.b16 %v1039, %v1035
    %v1352 = vpack.c.b16 %v1040, %v1036
    %v1353 = vpack.c.b16 %v1045, %v1041
    %v1354 = vpack.c.b16 %v1046, %v1042
    %v1355 = vpack.c.b16 %v1047, %v1043
    %v1356 = vpack.c.b16 %v1048, %v1044
    %v1357 = vpack.c.b16 %v1053, %v1049
    %v1358 = vpack.c.b16 %v1054, %v1050
    %v1359 = vpack.c.b16 %v1055, %v1051
    %v1360 = vpack.c.b16 %v1056, %v1052
    %v1361 = vpack.c.b16 %v1061, %v1057
    %v1362 = vpack.c.b16 %v1062, %v1058
    %v1363 = vpack.c.b16 %v1063, %v1059
    %v1364 = vpack.c.b16 %v1064, %v1060
    %v1365 = vpack.c.b16 %v1069, %v1065
    %v1366 = vpack.c.b16 %v1070, %v1066
    %v1367 = vpack.c.b16 %v1071, %v1067
    %v1368 = vpack.c.b16 %v1072, %v1068
    %v1369 = vpack.c.b16 %v1077, %v1073
    %v1370 = vpack.c.b16 %v1078, %v1074
    %v1371 = vpack.c.b16 %v1079, %v1075
    %v1372 = vpack.c.b16 %v1080, %v1076
    %v1373 = vpack.c.b16 %v1085, %v1081
    %v1374 = vpack.c.b16 %v1086, %v1082
    %v1375 = vpack.c.b16 %v1087, %v1083
    %v1376 = vpack.c.b16 %v1088, %v1084
    %v1377 = vpack.c.b16 %v1093, %v1089
    %v1378 = vpack.c.b16 %v1094, %v1090
    %v1379 = vpack.c.b16 %v1095, %v1091
    %v1380 = vpack.c.b16 %v1096, %v1092
    %v1381 = vpack.c.b16 %v1101, %v1097
    %v1382 = vpack.c.b16 %v1102, %v1098
    %v1383 = vpack.c.b16 %v1103, %v1099
    %v1384 = vpack.c.b16 %v1104, %v1100
    %v1385 = vpack.c.b16 %v1109, %v1105
    %v1386 = vpack.c.b16 %v1110, %v1106
    %v1387 = vpack.c.b16 %v1111, %v1107
    %v1388 = vpack.c.b16 %v1112, %v1108
    %v1389 = vpack.c.b16 %v1117, %v1113
    %v1390 = vpack.c.b16 %v1118, %v1114
    %v1391 = vpack.c.b16 %v1119, %v1115
    %v1392 = vpack.c.b16 %v1120, %v1116
    %v1393 = vpack.c.b16 %v1125, %v1121
    %v1394 = vpack.c.b16 %v1126, %v1122
    %v1395 = vpack.c.b16 %v1127, %v1123
    %v1396 = vpack.c.b16 %v1128, %v1124
    %v1397 = vpack.c.b16 %v1133, %v1129
    %v1398 = vpack.c.b16 %v1134, %v1130
    %v1399 = vpack.c.b16 %v1135, %v1131
    %v1400 = vpack.c.b16 %v1136, %v1132
    %v1401 = vpack.c.b16 %v1141, %v1137
    %v1402 = vpack.c.b16 %v1142, %v1138
    %v1403 = vpack.c.b16 %v1143, %v1139
    %v1404 = vpack.c.b16 %v1144, %v1140
    %v1405 = vpack.c.b16 %v1149, %v1145
    %v1406 = vpack.c.b16 %v1150, %v1146
    %v1407 = vpack.c.b16 %v1151, %v1147
    %v1408 = vpack.c.b16 %v1152, %v1148
    %1665 = vmatprep.subr.bf16.mxu0 %v1182
    %1666 = vmatpush1.bf16.msra.mxu0 %v1181
    %1667 = vmatprep.subr.bf16.mxu0 %v1178
    %1668 = vmatpush1.bf16.msra.mxu0 %v1177
    %1669 = vmatprep.subr.bf16.mxu0 %v1174
    %1670 = vmatpush1.bf16.msra.mxu0 %v1173
    %1671 = vmatprep.subr.bf16.mxu0 %v1170
    %1672 = vmatpush1.bf16.msra.mxu0 %v1169
    %1673 = vmatprep.subr.bf16.mxu0 %v1166
    %1674 = vmatpush1.bf16.msra.mxu0 %v1165
    %1675 = vmatprep.subr.bf16.mxu0 %v1162
    %1676 = vmatpush1.bf16.msra.mxu0 %v1161
    %1677 = vmatprep.subr.bf16.mxu0 %v1158
    %1678 = vmatpush1.bf16.msra.mxu0 %v1157
    %1679 = vmatprep.subr.bf16.mxu0 %v1154
    %1680 = vmatpush1.bf16.msra.mxu0 %v1153
    %1681 = vmatprep.subr.bf16.mxu0 %v1214
    %1682 = vmatpush2.bf16.msra.mxu0 %v1213
    %1683 = vmatprep.subr.bf16.mxu0 %v1210
    %1684 = vmatpush2.bf16.msra.mxu0 %v1209
    %1685 = vmatprep.subr.bf16.mxu0 %v1206
    %1686 = vmatpush2.bf16.msra.mxu0 %v1205
    %1687 = vmatprep.subr.bf16.mxu0 %v1202
    %1688 = vmatpush2.bf16.msra.mxu0 %v1201
    %1689 = vmatprep.subr.bf16.mxu0 %v1198
    %1690 = vmatpush2.bf16.msra.mxu0 %v1197
    %1691 = vmatprep.subr.bf16.mxu0 %v1194
    %1692 = vmatpush2.bf16.msra.mxu0 %v1193
    %1693 = vmatprep.subr.bf16.mxu0 %v1190
    %1694 = vmatpush2.bf16.msra.mxu0 %v1189
    %1695 = vmatprep.subr.bf16.mxu0 %v1186
    %1696 = vmatpush2.bf16.msra.mxu0 %v1185
    %1697 = vmatprep.mubr.bf16.mxu0 %v122
    %1698 = vmatmul.mubr.bf16.gmra.mxu0 %v121
    %v1699 = vpop.f32.mrf.mxu0
    %v1700 = vadd.f32 0.0, %v1699
    %v1701 = vpop.f32.mrf.mxu0
    %v1702 = vadd.f32 0.0, %v1701
    %v1703 = vpop.f32.mrf.mxu0
    %v1704 = vpop.f32.mrf.mxu0
    %1705 = vdwg.mxu0
    %1706 = vmatprep.subr.bf16.mxu0 %v1246
    %1707 = vmatpush1.bf16.msra.mxu0 %v1245
    %1708 = vmatprep.subr.bf16.mxu0 %v1242
    %1709 = vmatpush1.bf16.msra.mxu0 %v1241
    %1710 = vmatprep.subr.bf16.mxu0 %v1238
    %1711 = vmatpush1.bf16.msra.mxu0 %v1237
    %1712 = vmatprep.subr.bf16.mxu0 %v1234
    %1713 = vmatpush1.bf16.msra.mxu0 %v1233
    %1714 = vmatprep.subr.bf16.mxu0 %v1230
    %1715 = vmatpush1.bf16.msra.mxu0 %v1229
    %1716 = vmatprep.subr.bf16.mxu0 %v1226
    %1717 = vmatpush1.bf16.msra.mxu0 %v1225
    %1718 = vmatprep.subr.bf16.mxu0 %v1222
    %1719 = vmatpush1.bf16.msra.mxu0 %v1221
    %1720 = vmatprep.subr.bf16.mxu0 %v1218
    %1721 = vmatpush1.bf16.msra.mxu0 %v1217
    %1722 = vmatprep.subr.bf16.mxu0 %v1278
    %1723 = vmatpush2.bf16.msra.mxu0 %v1277
    %1724 = vmatprep.subr.bf16.mxu0 %v1274
    %1725 = vmatpush2.bf16.msra.mxu0 %v1273
    %1726 = vmatprep.subr.bf16.mxu0 %v1270
    %1727 = vmatpush2.bf16.msra.mxu0 %v1269
    %1728 = vmatprep.subr.bf16.mxu0 %v1266
    %1729 = vmatpush2.bf16.msra.mxu0 %v1265
    %1730 = vmatprep.subr.bf16.mxu0 %v1262
    %1731 = vmatpush2.bf16.msra.mxu0 %v1261
    %1732 = vmatprep.subr.bf16.mxu0 %v1258
    %1733 = vmatpush2.bf16.msra.mxu0 %v1257
    %1734 = vmatprep.subr.bf16.mxu0 %v1254
    %1735 = vmatpush2.bf16.msra.mxu0 %v1253
    %1736 = vmatprep.subr.bf16.mxu0 %v1250
    %1737 = vmatpush2.bf16.msra.mxu0 %v1249
    %1738 = vmatprep.mubr.bf16.mxu0 %v124
    %1739 = vmatmul.mubr.bf16.gmra.mxu0 %v123
    %v1740 = vpop.f32.mrf.mxu0
    %v1741 = vadd.f32 %v1700, %v1740
    %v1742 = vpop.f32.mrf.mxu0
    %v1743 = vadd.f32 %v1702, %v1742
    %v1744 = vpop.f32.mrf.mxu0
    %v1745 = vpop.f32.mrf.mxu0
    %1746 = vdwg.mxu0
    %1747 = vmatprep.subr.bf16.mxu0 %v1310
    %1748 = vmatpush1.bf16.msra.mxu0 %v1309
    %1749 = vmatprep.subr.bf16.mxu0 %v1306
    %1750 = vmatpush1.bf16.msra.mxu0 %v1305
    %1751 = vmatprep.subr.bf16.mxu0 %v1302
    %1752 = vmatpush1.bf16.msra.mxu0 %v1301
    %1753 = vmatprep.subr.bf16.mxu0 %v1298
    %1754 = vmatpush1.bf16.msra.mxu0 %v1297
    %1755 = vmatprep.subr.bf16.mxu0 %v1294
    %1756 = vmatpush1.bf16.msra.mxu0 %v1293
    %1757 = vmatprep.subr.bf16.mxu0 %v1290
    %1758 = vmatpush1.bf16.msra.mxu0 %v1289
    %1759 = vmatprep.subr.bf16.mxu0 %v1286
    %1760 = vmatpush1.bf16.msra.mxu0 %v1285
    %1761 = vmatprep.subr.bf16.mxu0 %v1282
    %1762 = vmatpush1.bf16.msra.mxu0 %v1281
    %1763 = vmatprep.subr.bf16.mxu0 %v1342
    %1764 = vmatpush2.bf16.msra.mxu0 %v1341
    %1765 = vmatprep.subr.bf16.mxu0 %v1338
    %1766 = vmatpush2.bf16.msra.mxu0 %v1337
    %1767 = vmatprep.subr.bf16.mxu0 %v1334
    %1768 = vmatpush2.bf16.msra.mxu0 %v1333
    %1769 = vmatprep.subr.bf16.mxu0 %v1330
    %1770 = vmatpush2.bf16.msra.mxu0 %v1329
    %1771 = vmatprep.subr.bf16.mxu0 %v1326
    %1772 = vmatpush2.bf16.msra.mxu0 %v1325
    %1773 = vmatprep.subr.bf16.mxu0 %v1322
    %1774 = vmatpush2.bf16.msra.mxu0 %v1321
    %1775 = vmatprep.subr.bf16.mxu0 %v1318
    %1776 = vmatpush2.bf16.msra.mxu0 %v1317
    %1777 = vmatprep.subr.bf16.mxu0 %v1314
    %1778 = vmatpush2.bf16.msra.mxu0 %v1313
    %1779 = vmatprep.mubr.bf16.mxu0 %v126
    %1780 = vmatmul.mubr.bf16.gmra.mxu0 %v125
    %v1781 = vpop.f32.mrf.mxu0
    %v1782 = vadd.f32 %v1741, %v1781
    %v1783 = vpop.f32.mrf.mxu0
    %v1784 = vadd.f32 %v1743, %v1783
    %v1785 = vpop.f32.mrf.mxu0
    %v1786 = vpop.f32.mrf.mxu0
    %1787 = vdwg.mxu0
    %1788 = vmatprep.subr.bf16.mxu0 %v1374
    %1789 = vmatpush1.bf16.msra.mxu0 %v1373
    %1790 = vmatprep.subr.bf16.mxu0 %v1370
    %1791 = vmatpush1.bf16.msra.mxu0 %v1369
    %1792 = vmatprep.subr.bf16.mxu0 %v1366
    %1793 = vmatpush1.bf16.msra.mxu0 %v1365
    %1794 = vmatprep.subr.bf16.mxu0 %v1362
    %1795 = vmatpush1.bf16.msra.mxu0 %v1361
    %1796 = vmatprep.subr.bf16.mxu0 %v1358
    %1797 = vmatpush1.bf16.msra.mxu0 %v1357
    %1798 = vmatprep.subr.bf16.mxu0 %v1354
    %1799 = vmatpush1.bf16.msra.mxu0 %v1353
    %1800 = vmatprep.subr.bf16.mxu0 %v1350
    %1801 = vmatpush1.bf16.msra.mxu0 %v1349
    %1802 = vmatprep.subr.bf16.mxu0 %v1346
    %1803 = vmatpush1.bf16.msra.mxu0 %v1345
    %1804 = vmatprep.subr.bf16.mxu0 %v1406
    %1805 = vmatpush2.bf16.msra.mxu0 %v1405
    %1806 = vmatprep.subr.bf16.mxu0 %v1402
    %1807 = vmatpush2.bf16.msra.mxu0 %v1401
    %1808 = vmatprep.subr.bf16.mxu0 %v1398
    %1809 = vmatpush2.bf16.msra.mxu0 %v1397
    %1810 = vmatprep.subr.bf16.mxu0 %v1394
    %1811 = vmatpush2.bf16.msra.mxu0 %v1393
    %1812 = vmatprep.subr.bf16.mxu0 %v1390
    %1813 = vmatpush2.bf16.msra.mxu0 %v1389
    %1814 = vmatprep.subr.bf16.mxu0 %v1386
    %1815 = vmatpush2.bf16.msra.mxu0 %v1385
    %1816 = vmatprep.subr.bf16.mxu0 %v1382
    %1817 = vmatpush2.bf16.msra.mxu0 %v1381
    %1818 = vmatprep.subr.bf16.mxu0 %v1378
    %1819 = vmatpush2.bf16.msra.mxu0 %v1377
    %1820 = vmatprep.mubr.bf16.mxu0 %v128
    %1821 = vmatmul.mubr.bf16.gmra.mxu0 %v127
    %v1822 = vpop.f32.mrf.mxu0
    %v1823 = vadd.f32 %v1782, %v1822
    %v1824 = vpop.f32.mrf.mxu0
    %v1825 = vadd.f32 %v1784, %v1824
    %v1826 = vpop.f32.mrf.mxu0
    %v1827 = vpop.f32.mrf.mxu0
    %1828 = vdwg.mxu0
    %1829 = vmatprep.subr.bf16.mxu0 %v1184
    %1830 = vmatpush1.bf16.msra.mxu0 %v1183
    %1831 = vmatprep.subr.bf16.mxu0 %v1180
    %1832 = vmatpush1.bf16.msra.mxu0 %v1179
    %1833 = vmatprep.subr.bf16.mxu0 %v1176
    %1834 = vmatpush1.bf16.msra.mxu0 %v1175
    %1835 = vmatprep.subr.bf16.mxu0 %v1172
    %1836 = vmatpush1.bf16.msra.mxu0 %v1171
    %1837 = vmatprep.subr.bf16.mxu0 %v1168
    %1838 = vmatpush1.bf16.msra.mxu0 %v1167
    %1839 = vmatprep.subr.bf16.mxu0 %v1164
    %1840 = vmatpush1.bf16.msra.mxu0 %v1163
    %1841 = vmatprep.subr.bf16.mxu0 %v1160
    %1842 = vmatpush1.bf16.msra.mxu0 %v1159
    %1843 = vmatprep.subr.bf16.mxu0 %v1156
    %1844 = vmatpush1.bf16.msra.mxu0 %v1155
    %1845 = vmatprep.subr.bf16.mxu0 %v1216
    %1846 = vmatpush2.bf16.msra.mxu0 %v1215
    %1847 = vmatprep.subr.bf16.mxu0 %v1212
    %1848 = vmatpush2.bf16.msra.mxu0 %v1211
    %1849 = vmatprep.subr.bf16.mxu0 %v1208
    %1850 = vmatpush2.bf16.msra.mxu0 %v1207
    %1851 = vmatprep.subr.bf16.mxu0 %v1204
    %1852 = vmatpush2.bf16.msra.mxu0 %v1203
    %1853 = vmatprep.subr.bf16.mxu0 %v1200
    %1854 = vmatpush2.bf16.msra.mxu0 %v1199
    %1855 = vmatprep.subr.bf16.mxu0 %v1196
    %1856 = vmatpush2.bf16.msra.mxu0 %v1195
    %1857 = vmatprep.subr.bf16.mxu0 %v1192
    %1858 = vmatpush2.bf16.msra.mxu0 %v1191
    %1859 = vmatprep.subr.bf16.mxu0 %v1188
    %1860 = vmatpush2.bf16.msra.mxu0 %v1187
    %1861 = vmatprep.mubr.bf16.mxu0 %v122
    %1862 = vmatmul.mubr.bf16.gmra.mxu0 %v121
    %v1863 = vpop.f32.mrf.mxu0
    %v1864 = vadd.f32 0.0, %v1863
    %v1865 = vpop.f32.mrf.mxu0
    %v1866 = vadd.f32 0.0, %v1865
    %v1867 = vpop.f32.mrf.mxu0
    %v1868 = vpop.f32.mrf.mxu0
    %1869 = vdwg.mxu0
    %1870 = vmatprep.subr.bf16.mxu0 %v1248
    %1871 = vmatpush1.bf16.msra.mxu0 %v1247
    %1872 = vmatprep.subr.bf16.mxu0 %v1244
    %1873 = vmatpush1.bf16.msra.mxu0 %v1243
    %1874 = vmatprep.subr.bf16.mxu0 %v1240
    %1875 = vmatpush1.bf16.msra.mxu0 %v1239
    %1876 = vmatprep.subr.bf16.mxu0 %v1236
    %1877 = vmatpush1.bf16.msra.mxu0 %v1235
    %1878 = vmatprep.subr.bf16.mxu0 %v1232
    %1879 = vmatpush1.bf16.msra.mxu0 %v1231
    %1880 = vmatprep.subr.bf16.mxu0 %v1228
    %1881 = vmatpush1.bf16.msra.mxu0 %v1227
    %1882 = vmatprep.subr.bf16.mxu0 %v1224
    %1883 = vmatpush1.bf16.msra.mxu0 %v1223
    %1884 = vmatprep.subr.bf16.mxu0 %v1220
    %1885 = vmatpush1.bf16.msra.mxu0 %v1219
    %1886 = vmatprep.subr.bf16.mxu0 %v1280
    %1887 = vmatpush2.bf16.msra.mxu0 %v1279
    %1888 = vmatprep.subr.bf16.mxu0 %v1276
    %1889 = vmatpush2.bf16.msra.mxu0 %v1275
    %1890 = vmatprep.subr.bf16.mxu0 %v1272
    %1891 = vmatpush2.bf16.msra.mxu0 %v1271
    %1892 = vmatprep.subr.bf16.mxu0 %v1268
    %1893 = vmatpush2.bf16.msra.mxu0 %v1267
    %1894 = vmatprep.subr.bf16.mxu0 %v1264
    %1895 = vmatpush2.bf16.msra.mxu0 %v1263
    %1896 = vmatprep.subr.bf16.mxu0 %v1260
    %1897 = vmatpush2.bf16.msra.mxu0 %v1259
    %1898 = vmatprep.subr.bf16.mxu0 %v1256
    %1899 = vmatpush2.bf16.msra.mxu0 %v1255
    %1900 = vmatprep.subr.bf16.mxu0 %v1252
    %1901 = vmatpush2.bf16.msra.mxu0 %v1251
    %1902 = vmatprep.mubr.bf16.mxu0 %v124
    %1903 = vmatmul.mubr.bf16.gmra.mxu0 %v123
    %v1904 = vpop.f32.mrf.mxu0
    %v1905 = vadd.f32 %v1864, %v1904
    %v1906 = vpop.f32.mrf.mxu0
    %v1907 = vadd.f32 %v1866, %v1906
    %v1908 = vpop.f32.mrf.mxu0
    %v1909 = vpop.f32.mrf.mxu0
    %1910 = vdwg.mxu0
    %1911 = vmatprep.subr.bf16.mxu0 %v1312
    %1912 = vmatpush1.bf16.msra.mxu0 %v1311
    %1913 = vmatprep.subr.bf16.mxu0 %v1308
    %1914 = vmatpush1.bf16.msra.mxu0 %v1307
    %1915 = vmatprep.subr.bf16.mxu0 %v1304
    %1916 = vmatpush1.bf16.msra.mxu0 %v1303
    %1917 = vmatprep.subr.bf16.mxu0 %v1300
    %1918 = vmatpush1.bf16.msra.mxu0 %v1299
    %1919 = vmatprep.subr.bf16.mxu0 %v1296
    %1920 = vmatpush1.bf16.msra.mxu0 %v1295
    %1921 = vmatprep.subr.bf16.mxu0 %v1292
    %1922 = vmatpush1.bf16.msra.mxu0 %v1291
    %1923 = vmatprep.subr.bf16.mxu0 %v1288
    %1924 = vmatpush1.bf16.msra.mxu0 %v1287
    %1925 = vmatprep.subr.bf16.mxu0 %v1284
    %1926 = vmatpush1.bf16.msra.mxu0 %v1283
    %1927 = vmatprep.subr.bf16.mxu0 %v1344
    %1928 = vmatpush2.bf16.msra.mxu0 %v1343
    %1929 = vmatprep.subr.bf16.mxu0 %v1340
    %1930 = vmatpush2.bf16.msra.mxu0 %v1339
    %1931 = vmatprep.subr.bf16.mxu0 %v1336
    %1932 = vmatpush2.bf16.msra.mxu0 %v1335
    %1933 = vmatprep.subr.bf16.mxu0 %v1332
    %1934 = vmatpush2.bf16.msra.mxu0 %v1331
    %1935 = vmatprep.subr.bf16.mxu0 %v1328
    %1936 = vmatpush2.bf16.msra.mxu0 %v1327
    %1937 = vmatprep.subr.bf16.mxu0 %v1324
    %1938 = vmatpush2.bf16.msra.mxu0 %v1323
    %1939 = vmatprep.subr.bf16.mxu0 %v1320
    %1940 = vmatpush2.bf16.msra.mxu0 %v1319
    %1941 = vmatprep.subr.bf16.mxu0 %v1316
    %1942 = vmatpush2.bf16.msra.mxu0 %v1315
    %1943 = vmatprep.mubr.bf16.mxu0 %v126
    %1944 = vmatmul.mubr.bf16.gmra.mxu0 %v125
    %v1945 = vpop.f32.mrf.mxu0
    %v1946 = vadd.f32 %v1905, %v1945
    %v1947 = vpop.f32.mrf.mxu0
    %v1948 = vadd.f32 %v1907, %v1947
    %v1949 = vpop.f32.mrf.mxu0
    %v1950 = vpop.f32.mrf.mxu0
    %1951 = vdwg.mxu0
    %1952 = vmatprep.subr.bf16.mxu0 %v1376
    %1953 = vmatpush1.bf16.msra.mxu0 %v1375
    %1954 = vmatprep.subr.bf16.mxu0 %v1372
    %1955 = vmatpush1.bf16.msra.mxu0 %v1371
    %1956 = vmatprep.subr.bf16.mxu0 %v1368
    %1957 = vmatpush1.bf16.msra.mxu0 %v1367
    %1958 = vmatprep.subr.bf16.mxu0 %v1364
    %1959 = vmatpush1.bf16.msra.mxu0 %v1363
    %1960 = vmatprep.subr.bf16.mxu0 %v1360
    %1961 = vmatpush1.bf16.msra.mxu0 %v1359
    %1962 = vmatprep.subr.bf16.mxu0 %v1356
    %1963 = vmatpush1.bf16.msra.mxu0 %v1355
    %1964 = vmatprep.subr.bf16.mxu0 %v1352
    %1965 = vmatpush1.bf16.msra.mxu0 %v1351
    %1966 = vmatprep.subr.bf16.mxu0 %v1348
    %1967 = vmatpush1.bf16.msra.mxu0 %v1347
    %1968 = vmatprep.subr.bf16.mxu0 %v1408
    %1969 = vmatpush2.bf16.msra.mxu0 %v1407
    %1970 = vmatprep.subr.bf16.mxu0 %v1404
    %1971 = vmatpush2.bf16.msra.mxu0 %v1403
    %1972 = vmatprep.subr.bf16.mxu0 %v1400
    %1973 = vmatpush2.bf16.msra.mxu0 %v1399
    %1974 = vmatprep.subr.bf16.mxu0 %v1396
    %1975 = vmatpush2.bf16.msra.mxu0 %v1395
    %1976 = vmatprep.subr.bf16.mxu0 %v1392
    %1977 = vmatpush2.bf16.msra.mxu0 %v1391
    %1978 = vmatprep.subr.bf16.mxu0 %v1388
    %1979 = vmatpush2.bf16.msra.mxu0 %v1387
    %1980 = vmatprep.subr.bf16.mxu0 %v1384
    %1981 = vmatpush2.bf16.msra.mxu0 %v1383
    %1982 = vmatprep.subr.bf16.mxu0 %v1380
    %1983 = vmatpush2.bf16.msra.mxu0 %v1379
    %1984 = vmatprep.mubr.bf16.mxu0 %v128
    %1985 = vmatmul.mubr.bf16.gmra.mxu0 %v127
    %v1986 = vpop.f32.mrf.mxu0
    %v1987 = vadd.f32 %v1946, %v1986
    %v1988 = vpop.f32.mrf.mxu0
    %v1989 = vadd.f32 %v1948, %v1988
    %v1990 = vpop.f32.mrf.mxu0
    %v1991 = vpop.f32.mrf.mxu0
    %1992 = vdwg.mxu0
    %v1997 = vcombine.low %v1823, %v1825
    %v1998 = vcombine.low %v1987, %v1989
    %v2000 = vunpack.c.l.s4 1983009808
    %v2001 = vunpack.c.0.s8 %v2000
    %v2002 = vlaneseq
    %v2003 = vshrl.u32 %v2002, 7
    %v2004 = vsub.s32 %v2001, %v2003
    %v2005 = vrot.slane %v1997, %v2004
    %v2007 = vunpack.c.l.s4 1983009808
    %v2008 = vunpack.c.0.s8 %v2007
    %v2009 = vlaneseq
    %v2010 = vshrl.u32 %v2009, 7
    %v2011 = vsub.s32 %v2008, %v2010
    %v2012 = vrot.slane %v1998, %v2011
    %v2013 = vcombine.low %v2005, %v2012
    %v2015 = vadd.f32 %v74, %v2013
    %2016 = vst [vmem:[#allocation2] sm:$0xff] %v2015
    // Predicated region
    $region46: #{_lambda_.1} parent=1 // pred_check
      %p2017 = pneg %p69
    $region47: #{_lambda_.1} parent=1 // pred_check_branch
      %2019 = sbr.rel (%p2017) target = $region49
    $region48: #{_lambda_.1} parent=1 // pred_region
      %v2020 = vld [vmem:[#allocation2] sm:$0xff]
      %v2021 = vld [vmem:[%s2] sm:$0xf]
      %v2023 = vlaneseq
      %v2024 = vshrl.u32 %v2023, 7
      %v2025 = vsub.s32 0, %v2024
      %v2026 = vrot.slane %v2021, %v2025
      %v2027 = vlaneseq
      %v2028 = vshrl.u32 %v2027, 7
      %v2029 = vsub.s32 1, %v2028
      %v2030 = vrot.slane %v2021, %v2029
      %v2031 = vlaneseq
      %v2032 = vshrl.u32 %v2031, 7
      %v2033 = vsub.s32 2, %v2032
      %v2034 = vrot.slane %v2021, %v2033
      %v2035 = vlaneseq
      %v2036 = vshrl.u32 %v2035, 7
      %v2037 = vsub.s32 3, %v2036
      %v2038 = vrot.slane %v2021, %v2037
      %v2039 = vcombine.low %v2026, %v2030
      %v2040 = vcombine.low %v2034, %v2038
      %v2042 = vunpack.c.l.s4 1983009808
      %v2043 = vunpack.c.0.s8 %v2042
      %v2044 = vlaneseq
      %v2045 = vshrl.u32 %v2044, 7
      %v2046 = vsub.s32 %v2043, %v2045
      %v2047 = vrot.slane %v2039, %v2046
      %v2049 = vunpack.c.l.s4 1983009808
      %v2050 = vunpack.c.0.s8 %v2049
      %v2051 = vlaneseq
      %v2052 = vshrl.u32 %v2051, 7
      %v2053 = vsub.s32 %v2050, %v2052
      %v2054 = vrot.slane %v2040, %v2053
      %v2055 = vcombine.low %v2047, %v2054
      %v2057 = vadd.f32 %v2020, %v2055
      %v2058 = vmul.f32 %v2057, 0.2
      %v2059 = vmax.f32 %v2057, %v2058
      %v2061 = vcombine.high %v2059, %v2059
      %v2063 = vunpack.c.l.s4 1983009808
      %v2064 = vunpack.c.0.s8 %v2063
      %v2065 = vlaneseq
      %v2066 = vshrl.u32 %v2065, 7
      %v2067 = vsub.s32 %v2064, %v2066
      %v2068 = vrot.slane %v2059, %v2067
      %v2070 = vunpack.c.l.s4 1983009808
      %v2071 = vunpack.c.0.s8 %v2070
      %v2072 = vlaneseq
      %v2073 = vshrl.u32 %v2072, 7
      %v2074 = vsub.s32 %v2071, %v2073
      %v2075 = vrot.slane %v2061, %v2074
      %v2076 = vcombine.high %v2068, %v2068
      %v2077 = vcombine.high %v2075, %v2075
      %v2082 = vpack.c.bf16 %v2068, %v2068
      %v2083 = vpack.c.bf16 %v2076, %v2076
      %v2084 = vpack.c.bf16 %v2075, %v2075
      %v2085 = vpack.c.bf16 %v2077, %v2077
      %v2086 = vld [vmem:[#allocation6] sm:$0xff]
      %v2087 = vld [vmem:[#allocation6 + $0x8] sm:$0xff]
      %v2088 = vld [vmem:[#allocation6 + $0x10] sm:$0xff]
      %v2089 = vld [vmem:[#allocation6 + $0x18] sm:$0xff]
      %v2090 = vld [vmem:[#allocation6 + $0x20] sm:$0xff]
      %v2091 = vld [vmem:[#allocation6 + $0x28] sm:$0xff]
      %v2092 = vld [vmem:[#allocation6 + $0x30] sm:$0xff]
      %v2093 = vld [vmem:[#allocation6 + $0x38] sm:$0xff]
      %v2094 = vld [vmem:[#allocation6 + $0x40] sm:$0xff]
      %v2095 = vld [vmem:[#allocation6 + $0x48] sm:$0xff]
      %v2096 = vld [vmem:[#allocation6 + $0x50] sm:$0xff]
      %v2097 = vld [vmem:[#allocation6 + $0x58] sm:$0xff]
      %v2098 = vld [vmem:[#allocation6 + $0x60] sm:$0xff]
      %v2099 = vld [vmem:[#allocation6 + $0x68] sm:$0xff]
      %v2100 = vld [vmem:[#allocation6 + $0x70] sm:$0xff]
      %v2101 = vld [vmem:[#allocation6 + $0x78] sm:$0xff]
      %v2102 = vld [vmem:[#allocation6 + $0x80] sm:$0xff]
      %v2103 = vld [vmem:[#allocation6 + $0x88] sm:$0xff]
      %v2104 = vld [vmem:[#allocation6 + $0x90] sm:$0xff]
      %v2105 = vld [vmem:[#allocation6 + $0x98] sm:$0xff]
      %v2106 = vld [vmem:[#allocation6 + $0xa0] sm:$0xff]
      %v2107 = vld [vmem:[#allocation6 + $0xa8] sm:$0xff]
      %v2108 = vld [vmem:[#allocation6 + $0xb0] sm:$0xff]
      %v2109 = vld [vmem:[#allocation6 + $0xb8] sm:$0xff]
      %v2110 = vld [vmem:[#allocation6 + $0xc0] sm:$0xff]
      %v2111 = vld [vmem:[#allocation6 + $0xc8] sm:$0xff]
      %v2112 = vld [vmem:[#allocation6 + $0xd0] sm:$0xff]
      %v2113 = vld [vmem:[#allocation6 + $0xd8] sm:$0xff]
      %v2114 = vld [vmem:[#allocation6 + $0xe0] sm:$0xff]
      %v2115 = vld [vmem:[#allocation6 + $0xe8] sm:$0xff]
      %v2116 = vld [vmem:[#allocation6 + $0xf0] sm:$0xff]
      %v2117 = vld [vmem:[#allocation6 + $0xf8] sm:$0xff]
      %v2118 = vld [vmem:[#allocation6 + $0x100] sm:$0xff]
      %v2119 = vld [vmem:[#allocation6 + $0x108] sm:$0xff]
      %v2120 = vld [vmem:[#allocation6 + $0x110] sm:$0xff]
      %v2121 = vld [vmem:[#allocation6 + $0x118] sm:$0xff]
      %v2122 = vld [vmem:[#allocation6 + $0x120] sm:$0xff]
      %v2123 = vld [vmem:[#allocation6 + $0x128] sm:$0xff]
      %v2124 = vld [vmem:[#allocation6 + $0x130] sm:$0xff]
      %v2125 = vld [vmem:[#allocation6 + $0x138] sm:$0xff]
      %v2126 = vld [vmem:[#allocation6 + $0x140] sm:$0xff]
      %v2127 = vld [vmem:[#allocation6 + $0x148] sm:$0xff]
      %v2128 = vld [vmem:[#allocation6 + $0x150] sm:$0xff]
      %v2129 = vld [vmem:[#allocation6 + $0x158] sm:$0xff]
      %v2130 = vld [vmem:[#allocation6 + $0x160] sm:$0xff]
      %v2131 = vld [vmem:[#allocation6 + $0x168] sm:$0xff]
      %v2132 = vld [vmem:[#allocation6 + $0x170] sm:$0xff]
      %v2133 = vld [vmem:[#allocation6 + $0x178] sm:$0xff]
      %v2134 = vld [vmem:[#allocation6 + $0x180] sm:$0xff]
      %v2135 = vld [vmem:[#allocation6 + $0x188] sm:$0xff]
      %v2136 = vld [vmem:[#allocation6 + $0x190] sm:$0xff]
      %v2137 = vld [vmem:[#allocation6 + $0x198] sm:$0xff]
      %v2138 = vld [vmem:[#allocation6 + $0x1a0] sm:$0xff]
      %v2139 = vld [vmem:[#allocation6 + $0x1a8] sm:$0xff]
      %v2140 = vld [vmem:[#allocation6 + $0x1b0] sm:$0xff]
      %v2141 = vld [vmem:[#allocation6 + $0x1b8] sm:$0xff]
      %v2142 = vld [vmem:[#allocation6 + $0x1c0] sm:$0xff]
      %v2143 = vld [vmem:[#allocation6 + $0x1c8] sm:$0xff]
      %v2144 = vld [vmem:[#allocation6 + $0x1d0] sm:$0xff]
      %v2145 = vld [vmem:[#allocation6 + $0x1d8] sm:$0xff]
      %v2146 = vld [vmem:[#allocation6 + $0x1e0] sm:$0xff]
      %v2147 = vld [vmem:[#allocation6 + $0x1e8] sm:$0xff]
      %v2148 = vld [vmem:[#allocation6 + $0x1f0] sm:$0xff]
      %v2149 = vld [vmem:[#allocation6 + $0x1f8] sm:$0xff]
      %v2150 = vld [vmem:[#allocation6 + $0x200] sm:$0xff]
      %v2151 = vld [vmem:[#allocation6 + $0x208] sm:$0xff]
      %v2152 = vld [vmem:[#allocation6 + $0x210] sm:$0xff]
      %v2153 = vld [vmem:[#allocation6 + $0x218] sm:$0xff]
      %v2154 = vld [vmem:[#allocation6 + $0x220] sm:$0xff]
      %v2155 = vld [vmem:[#allocation6 + $0x228] sm:$0xff]
      %v2156 = vld [vmem:[#allocation6 + $0x230] sm:$0xff]
      %v2157 = vld [vmem:[#allocation6 + $0x238] sm:$0xff]
      %v2158 = vld [vmem:[#allocation6 + $0x240] sm:$0xff]
      %v2159 = vld [vmem:[#allocation6 + $0x248] sm:$0xff]
      %v2160 = vld [vmem:[#allocation6 + $0x250] sm:$0xff]
      %v2161 = vld [vmem:[#allocation6 + $0x258] sm:$0xff]
      %v2162 = vld [vmem:[#allocation6 + $0x260] sm:$0xff]
      %v2163 = vld [vmem:[#allocation6 + $0x268] sm:$0xff]
      %v2164 = vld [vmem:[#allocation6 + $0x270] sm:$0xff]
      %v2165 = vld [vmem:[#allocation6 + $0x278] sm:$0xff]
      %v2166 = vld [vmem:[#allocation6 + $0x280] sm:$0xff]
      %v2167 = vld [vmem:[#allocation6 + $0x288] sm:$0xff]
      %v2168 = vld [vmem:[#allocation6 + $0x290] sm:$0xff]
      %v2169 = vld [vmem:[#allocation6 + $0x298] sm:$0xff]
      %v2170 = vld [vmem:[#allocation6 + $0x2a0] sm:$0xff]
      %v2171 = vld [vmem:[#allocation6 + $0x2a8] sm:$0xff]
      %v2172 = vld [vmem:[#allocation6 + $0x2b0] sm:$0xff]
      %v2173 = vld [vmem:[#allocation6 + $0x2b8] sm:$0xff]
      %v2174 = vld [vmem:[#allocation6 + $0x2c0] sm:$0xff]
      %v2175 = vld [vmem:[#allocation6 + $0x2c8] sm:$0xff]
      %v2176 = vld [vmem:[#allocation6 + $0x2d0] sm:$0xff]
      %v2177 = vld [vmem:[#allocation6 + $0x2d8] sm:$0xff]
      %v2178 = vld [vmem:[#allocation6 + $0x2e0] sm:$0xff]
      %v2179 = vld [vmem:[#allocation6 + $0x2e8] sm:$0xff]
      %v2180 = vld [vmem:[#allocation6 + $0x2f0] sm:$0xff]
      %v2181 = vld [vmem:[#allocation6 + $0x2f8] sm:$0xff]
      %v2182 = vld [vmem:[#allocation6 + $0x300] sm:$0xff]
      %v2183 = vld [vmem:[#allocation6 + $0x308] sm:$0xff]
      %v2184 = vld [vmem:[#allocation6 + $0x310] sm:$0xff]
      %v2185 = vld [vmem:[#allocation6 + $0x318] sm:$0xff]
      %v2186 = vld [vmem:[#allocation6 + $0x320] sm:$0xff]
      %v2187 = vld [vmem:[#allocation6 + $0x328] sm:$0xff]
      %v2188 = vld [vmem:[#allocation6 + $0x330] sm:$0xff]
      %v2189 = vld [vmem:[#allocation6 + $0x338] sm:$0xff]
      %v2190 = vld [vmem:[#allocation6 + $0x340] sm:$0xff]
      %v2191 = vld [vmem:[#allocation6 + $0x348] sm:$0xff]
      %v2192 = vld [vmem:[#allocation6 + $0x350] sm:$0xff]
      %v2193 = vld [vmem:[#allocation6 + $0x358] sm:$0xff]
      %v2194 = vld [vmem:[#allocation6 + $0x360] sm:$0xff]
      %v2195 = vld [vmem:[#allocation6 + $0x368] sm:$0xff]
      %v2196 = vld [vmem:[#allocation6 + $0x370] sm:$0xff]
      %v2197 = vld [vmem:[#allocation6 + $0x378] sm:$0xff]
      %v2198 = vld [vmem:[#allocation6 + $0x380] sm:$0xff]
      %v2199 = vld [vmem:[#allocation6 + $0x388] sm:$0xff]
      %v2200 = vld [vmem:[#allocation6 + $0x390] sm:$0xff]
      %v2201 = vld [vmem:[#allocation6 + $0x398] sm:$0xff]
      %v2202 = vld [vmem:[#allocation6 + $0x3a0] sm:$0xff]
      %v2203 = vld [vmem:[#allocation6 + $0x3a8] sm:$0xff]
      %v2204 = vld [vmem:[#allocation6 + $0x3b0] sm:$0xff]
      %v2205 = vld [vmem:[#allocation6 + $0x3b8] sm:$0xff]
      %v2206 = vld [vmem:[#allocation6 + $0x3c0] sm:$0xff]
      %v2207 = vld [vmem:[#allocation6 + $0x3c8] sm:$0xff]
      %v2208 = vld [vmem:[#allocation6 + $0x3d0] sm:$0xff]
      %v2209 = vld [vmem:[#allocation6 + $0x3d8] sm:$0xff]
      %v2210 = vld [vmem:[#allocation6 + $0x3e0] sm:$0xff]
      %v2211 = vld [vmem:[#allocation6 + $0x3e8] sm:$0xff]
      %v2212 = vld [vmem:[#allocation6 + $0x3f0] sm:$0xff]
      %v2213 = vld [vmem:[#allocation6 + $0x3f8] sm:$0xff]
      %v2214 = vld [vmem:[#allocation6 + $0x400] sm:$0xff]
      %v2215 = vld [vmem:[#allocation6 + $0x408] sm:$0xff]
      %v2216 = vld [vmem:[#allocation6 + $0x410] sm:$0xff]
      %v2217 = vld [vmem:[#allocation6 + $0x418] sm:$0xff]
      %v2218 = vld [vmem:[#allocation6 + $0x420] sm:$0xff]
      %v2219 = vld [vmem:[#allocation6 + $0x428] sm:$0xff]
      %v2220 = vld [vmem:[#allocation6 + $0x430] sm:$0xff]
      %v2221 = vld [vmem:[#allocation6 + $0x438] sm:$0xff]
      %v2222 = vld [vmem:[#allocation6 + $0x440] sm:$0xff]
      %v2223 = vld [vmem:[#allocation6 + $0x448] sm:$0xff]
      %v2224 = vld [vmem:[#allocation6 + $0x450] sm:$0xff]
      %v2225 = vld [vmem:[#allocation6 + $0x458] sm:$0xff]
      %v2226 = vld [vmem:[#allocation6 + $0x460] sm:$0xff]
      %v2227 = vld [vmem:[#allocation6 + $0x468] sm:$0xff]
      %v2228 = vld [vmem:[#allocation6 + $0x470] sm:$0xff]
      %v2229 = vld [vmem:[#allocation6 + $0x478] sm:$0xff]
      %v2230 = vld [vmem:[#allocation6 + $0x480] sm:$0xff]
      %v2231 = vld [vmem:[#allocation6 + $0x488] sm:$0xff]
      %v2232 = vld [vmem:[#allocation6 + $0x490] sm:$0xff]
      %v2233 = vld [vmem:[#allocation6 + $0x498] sm:$0xff]
      %v2234 = vld [vmem:[#allocation6 + $0x4a0] sm:$0xff]
      %v2235 = vld [vmem:[#allocation6 + $0x4a8] sm:$0xff]
      %v2236 = vld [vmem:[#allocation6 + $0x4b0] sm:$0xff]
      %v2237 = vld [vmem:[#allocation6 + $0x4b8] sm:$0xff]
      %v2238 = vld [vmem:[#allocation6 + $0x4c0] sm:$0xff]
      %v2239 = vld [vmem:[#allocation6 + $0x4c8] sm:$0xff]
      %v2240 = vld [vmem:[#allocation6 + $0x4d0] sm:$0xff]
      %v2241 = vld [vmem:[#allocation6 + $0x4d8] sm:$0xff]
      %v2242 = vld [vmem:[#allocation6 + $0x4e0] sm:$0xff]
      %v2243 = vld [vmem:[#allocation6 + $0x4e8] sm:$0xff]
      %v2244 = vld [vmem:[#allocation6 + $0x4f0] sm:$0xff]
      %v2245 = vld [vmem:[#allocation6 + $0x4f8] sm:$0xff]
      %v2246 = vld [vmem:[#allocation6 + $0x500] sm:$0xff]
      %v2247 = vld [vmem:[#allocation6 + $0x508] sm:$0xff]
      %v2248 = vld [vmem:[#allocation6 + $0x510] sm:$0xff]
      %v2249 = vld [vmem:[#allocation6 + $0x518] sm:$0xff]
      %v2250 = vld [vmem:[#allocation6 + $0x520] sm:$0xff]
      %v2251 = vld [vmem:[#allocation6 + $0x528] sm:$0xff]
      %v2252 = vld [vmem:[#allocation6 + $0x530] sm:$0xff]
      %v2253 = vld [vmem:[#allocation6 + $0x538] sm:$0xff]
      %v2254 = vld [vmem:[#allocation6 + $0x540] sm:$0xff]
      %v2255 = vld [vmem:[#allocation6 + $0x548] sm:$0xff]
      %v2256 = vld [vmem:[#allocation6 + $0x550] sm:$0xff]
      %v2257 = vld [vmem:[#allocation6 + $0x558] sm:$0xff]
      %v2258 = vld [vmem:[#allocation6 + $0x560] sm:$0xff]
      %v2259 = vld [vmem:[#allocation6 + $0x568] sm:$0xff]
      %v2260 = vld [vmem:[#allocation6 + $0x570] sm:$0xff]
      %v2261 = vld [vmem:[#allocation6 + $0x578] sm:$0xff]
      %v2262 = vld [vmem:[#allocation6 + $0x580] sm:$0xff]
      %v2263 = vld [vmem:[#allocation6 + $0x588] sm:$0xff]
      %v2264 = vld [vmem:[#allocation6 + $0x590] sm:$0xff]
      %v2265 = vld [vmem:[#allocation6 + $0x598] sm:$0xff]
      %v2266 = vld [vmem:[#allocation6 + $0x5a0] sm:$0xff]
      %v2267 = vld [vmem:[#allocation6 + $0x5a8] sm:$0xff]
      %v2268 = vld [vmem:[#allocation6 + $0x5b0] sm:$0xff]
      %v2269 = vld [vmem:[#allocation6 + $0x5b8] sm:$0xff]
      %v2270 = vld [vmem:[#allocation6 + $0x5c0] sm:$0xff]
      %v2271 = vld [vmem:[#allocation6 + $0x5c8] sm:$0xff]
      %v2272 = vld [vmem:[#allocation6 + $0x5d0] sm:$0xff]
      %v2273 = vld [vmem:[#allocation6 + $0x5d8] sm:$0xff]
      %v2274 = vld [vmem:[#allocation6 + $0x5e0] sm:$0xff]
      %v2275 = vld [vmem:[#allocation6 + $0x5e8] sm:$0xff]
      %v2276 = vld [vmem:[#allocation6 + $0x5f0] sm:$0xff]
      %v2277 = vld [vmem:[#allocation6 + $0x5f8] sm:$0xff]
      %v2278 = vld [vmem:[#allocation6 + $0x600] sm:$0xff]
      %v2279 = vld [vmem:[#allocation6 + $0x608] sm:$0xff]
      %v2280 = vld [vmem:[#allocation6 + $0x610] sm:$0xff]
      %v2281 = vld [vmem:[#allocation6 + $0x618] sm:$0xff]
      %v2282 = vld [vmem:[#allocation6 + $0x620] sm:$0xff]
      %v2283 = vld [vmem:[#allocation6 + $0x628] sm:$0xff]
      %v2284 = vld [vmem:[#allocation6 + $0x630] sm:$0xff]
      %v2285 = vld [vmem:[#allocation6 + $0x638] sm:$0xff]
      %v2286 = vld [vmem:[#allocation6 + $0x640] sm:$0xff]
      %v2287 = vld [vmem:[#allocation6 + $0x648] sm:$0xff]
      %v2288 = vld [vmem:[#allocation6 + $0x650] sm:$0xff]
      %v2289 = vld [vmem:[#allocation6 + $0x658] sm:$0xff]
      %v2290 = vld [vmem:[#allocation6 + $0x660] sm:$0xff]
      %v2291 = vld [vmem:[#allocation6 + $0x668] sm:$0xff]
      %v2292 = vld [vmem:[#allocation6 + $0x670] sm:$0xff]
      %v2293 = vld [vmem:[#allocation6 + $0x678] sm:$0xff]
      %v2294 = vld [vmem:[#allocation6 + $0x680] sm:$0xff]
      %v2295 = vld [vmem:[#allocation6 + $0x688] sm:$0xff]
      %v2296 = vld [vmem:[#allocation6 + $0x690] sm:$0xff]
      %v2297 = vld [vmem:[#allocation6 + $0x698] sm:$0xff]
      %v2298 = vld [vmem:[#allocation6 + $0x6a0] sm:$0xff]
      %v2299 = vld [vmem:[#allocation6 + $0x6a8] sm:$0xff]
      %v2300 = vld [vmem:[#allocation6 + $0x6b0] sm:$0xff]
      %v2301 = vld [vmem:[#allocation6 + $0x6b8] sm:$0xff]
      %v2302 = vld [vmem:[#allocation6 + $0x6c0] sm:$0xff]
      %v2303 = vld [vmem:[#allocation6 + $0x6c8] sm:$0xff]
      %v2304 = vld [vmem:[#allocation6 + $0x6d0] sm:$0xff]
      %v2305 = vld [vmem:[#allocation6 + $0x6d8] sm:$0xff]
      %v2306 = vld [vmem:[#allocation6 + $0x6e0] sm:$0xff]
      %v2307 = vld [vmem:[#allocation6 + $0x6e8] sm:$0xff]
      %v2308 = vld [vmem:[#allocation6 + $0x6f0] sm:$0xff]
      %v2309 = vld [vmem:[#allocation6 + $0x6f8] sm:$0xff]
      %v2310 = vld [vmem:[#allocation6 + $0x700] sm:$0xff]
      %v2311 = vld [vmem:[#allocation6 + $0x708] sm:$0xff]
      %v2312 = vld [vmem:[#allocation6 + $0x710] sm:$0xff]
      %v2313 = vld [vmem:[#allocation6 + $0x718] sm:$0xff]
      %v2314 = vld [vmem:[#allocation6 + $0x720] sm:$0xff]
      %v2315 = vld [vmem:[#allocation6 + $0x728] sm:$0xff]
      %v2316 = vld [vmem:[#allocation6 + $0x730] sm:$0xff]
      %v2317 = vld [vmem:[#allocation6 + $0x738] sm:$0xff]
      %v2318 = vld [vmem:[#allocation6 + $0x740] sm:$0xff]
      %v2319 = vld [vmem:[#allocation6 + $0x748] sm:$0xff]
      %v2320 = vld [vmem:[#allocation6 + $0x750] sm:$0xff]
      %v2321 = vld [vmem:[#allocation6 + $0x758] sm:$0xff]
      %v2322 = vld [vmem:[#allocation6 + $0x760] sm:$0xff]
      %v2323 = vld [vmem:[#allocation6 + $0x768] sm:$0xff]
      %v2324 = vld [vmem:[#allocation6 + $0x770] sm:$0xff]
      %v2325 = vld [vmem:[#allocation6 + $0x778] sm:$0xff]
      %v2326 = vld [vmem:[#allocation6 + $0x780] sm:$0xff]
      %v2327 = vld [vmem:[#allocation6 + $0x788] sm:$0xff]
      %v2328 = vld [vmem:[#allocation6 + $0x790] sm:$0xff]
      %v2329 = vld [vmem:[#allocation6 + $0x798] sm:$0xff]
      %v2330 = vld [vmem:[#allocation6 + $0x7a0] sm:$0xff]
      %v2331 = vld [vmem:[#allocation6 + $0x7a8] sm:$0xff]
      %v2332 = vld [vmem:[#allocation6 + $0x7b0] sm:$0xff]
      %v2333 = vld [vmem:[#allocation6 + $0x7b8] sm:$0xff]
      %v2334 = vld [vmem:[#allocation6 + $0x7c0] sm:$0xff]
      %v2335 = vld [vmem:[#allocation6 + $0x7c8] sm:$0xff]
      %v2336 = vld [vmem:[#allocation6 + $0x7d0] sm:$0xff]
      %v2337 = vld [vmem:[#allocation6 + $0x7d8] sm:$0xff]
      %v2338 = vld [vmem:[#allocation6 + $0x7e0] sm:$0xff]
      %v2339 = vld [vmem:[#allocation6 + $0x7e8] sm:$0xff]
      %v2340 = vld [vmem:[#allocation6 + $0x7f0] sm:$0xff]
      %v2341 = vld [vmem:[#allocation6 + $0x7f8] sm:$0xff]
      %v2342 = vld [vmem:[%s4] sm:$0xff]
      %v2344 = vlaneseq
      %v2345 = vshrl.u32 %v2344, 7
      %v2346 = vsub.s32 0, %v2345
      %v2347 = vrot.slane %v2342, %v2346
      %v2348 = vlaneseq
      %v2349 = vshrl.u32 %v2348, 7
      %v2350 = vsub.s32 1, %v2349
      %v2351 = vrot.slane %v2342, %v2350
      %v2352 = vlaneseq
      %v2353 = vshrl.u32 %v2352, 7
      %v2354 = vsub.s32 2, %v2353
      %v2355 = vrot.slane %v2342, %v2354
      %v2356 = vlaneseq
      %v2357 = vshrl.u32 %v2356, 7
      %v2358 = vsub.s32 3, %v2357
      %v2359 = vrot.slane %v2342, %v2358
      %v2360 = vlaneseq
      %v2361 = vshrl.u32 %v2360, 7
      %v2362 = vsub.s32 4, %v2361
      %v2363 = vrot.slane %v2342, %v2362
      %v2364 = vlaneseq
      %v2365 = vshrl.u32 %v2364, 7
      %v2366 = vsub.s32 5, %v2365
      %v2367 = vrot.slane %v2342, %v2366
      %v2368 = vlaneseq
      %v2369 = vshrl.u32 %v2368, 7
      %v2370 = vsub.s32 6, %v2369
      %v2371 = vrot.slane %v2342, %v2370
      %v2372 = vlaneseq
      %v2373 = vshrl.u32 %v2372, 7
      %v2374 = vsub.s32 7, %v2373
      %v2375 = vrot.slane %v2342, %v2374
      %v2640 = vunpack.c.l.b16 %v2086
      %v2641 = vunpack.c.h.b16 %v2086
      %v2642 = vunpack.c.l.b16 %v2087
      %v2643 = vunpack.c.h.b16 %v2087
      %v2644 = vunpack.c.l.b16 %v2088
      %v2645 = vunpack.c.h.b16 %v2088
      %v2646 = vunpack.c.l.b16 %v2089
      %v2647 = vunpack.c.h.b16 %v2089
      %v2648 = vunpack.c.l.b16 %v2090
      %v2649 = vunpack.c.h.b16 %v2090
      %v2650 = vunpack.c.l.b16 %v2091
      %v2651 = vunpack.c.h.b16 %v2091
      %v2652 = vunpack.c.l.b16 %v2092
      %v2653 = vunpack.c.h.b16 %v2092
      %v2654 = vunpack.c.l.b16 %v2093
      %v2655 = vunpack.c.h.b16 %v2093
      %v2656 = vunpack.c.l.b16 %v2094
      %v2657 = vunpack.c.h.b16 %v2094
      %v2658 = vunpack.c.l.b16 %v2095
      %v2659 = vunpack.c.h.b16 %v2095
      %v2660 = vunpack.c.l.b16 %v2096
      %v2661 = vunpack.c.h.b16 %v2096
      %v2662 = vunpack.c.l.b16 %v2097
      %v2663 = vunpack.c.h.b16 %v2097
      %v2664 = vunpack.c.l.b16 %v2098
      %v2665 = vunpack.c.h.b16 %v2098
      %v2666 = vunpack.c.l.b16 %v2099
      %v2667 = vunpack.c.h.b16 %v2099
      %v2668 = vunpack.c.l.b16 %v2100
      %v2669 = vunpack.c.h.b16 %v2100
      %v2670 = vunpack.c.l.b16 %v2101
      %v2671 = vunpack.c.h.b16 %v2101
      %v2672 = vunpack.c.l.b16 %v2102
      %v2673 = vunpack.c.h.b16 %v2102
      %v2674 = vunpack.c.l.b16 %v2103
      %v2675 = vunpack.c.h.b16 %v2103
      %v2676 = vunpack.c.l.b16 %v2104
      %v2677 = vunpack.c.h.b16 %v2104
      %v2678 = vunpack.c.l.b16 %v2105
      %v2679 = vunpack.c.h.b16 %v2105
      %v2680 = vunpack.c.l.b16 %v2106
      %v2681 = vunpack.c.h.b16 %v2106
      %v2682 = vunpack.c.l.b16 %v2107
      %v2683 = vunpack.c.h.b16 %v2107
      %v2684 = vunpack.c.l.b16 %v2108
      %v2685 = vunpack.c.h.b16 %v2108
      %v2686 = vunpack.c.l.b16 %v2109
      %v2687 = vunpack.c.h.b16 %v2109
      %v2688 = vunpack.c.l.b16 %v2110
      %v2689 = vunpack.c.h.b16 %v2110
      %v2690 = vunpack.c.l.b16 %v2111
      %v2691 = vunpack.c.h.b16 %v2111
      %v2692 = vunpack.c.l.b16 %v2112
      %v2693 = vunpack.c.h.b16 %v2112
      %v2694 = vunpack.c.l.b16 %v2113
      %v2695 = vunpack.c.h.b16 %v2113
      %v2696 = vunpack.c.l.b16 %v2114
      %v2697 = vunpack.c.h.b16 %v2114
      %v2698 = vunpack.c.l.b16 %v2115
      %v2699 = vunpack.c.h.b16 %v2115
      %v2700 = vunpack.c.l.b16 %v2116
      %v2701 = vunpack.c.h.b16 %v2116
      %v2702 = vunpack.c.l.b16 %v2117
      %v2703 = vunpack.c.h.b16 %v2117
      %v2704 = vunpack.c.l.b16 %v2118
      %v2705 = vunpack.c.h.b16 %v2118
      %v2706 = vunpack.c.l.b16 %v2119
      %v2707 = vunpack.c.h.b16 %v2119
      %v2708 = vunpack.c.l.b16 %v2120
      %v2709 = vunpack.c.h.b16 %v2120
      %v2710 = vunpack.c.l.b16 %v2121
      %v2711 = vunpack.c.h.b16 %v2121
      %v2712 = vunpack.c.l.b16 %v2122
      %v2713 = vunpack.c.h.b16 %v2122
      %v2714 = vunpack.c.l.b16 %v2123
      %v2715 = vunpack.c.h.b16 %v2123
      %v2716 = vunpack.c.l.b16 %v2124
      %v2717 = vunpack.c.h.b16 %v2124
      %v2718 = vunpack.c.l.b16 %v2125
      %v2719 = vunpack.c.h.b16 %v2125
      %v2720 = vunpack.c.l.b16 %v2126
      %v2721 = vunpack.c.h.b16 %v2126
      %v2722 = vunpack.c.l.b16 %v2127
      %v2723 = vunpack.c.h.b16 %v2127
      %v2724 = vunpack.c.l.b16 %v2128
      %v2725 = vunpack.c.h.b16 %v2128
      %v2726 = vunpack.c.l.b16 %v2129
      %v2727 = vunpack.c.h.b16 %v2129
      %v2728 = vunpack.c.l.b16 %v2130
      %v2729 = vunpack.c.h.b16 %v2130
      %v2730 = vunpack.c.l.b16 %v2131
      %v2731 = vunpack.c.h.b16 %v2131
      %v2732 = vunpack.c.l.b16 %v2132
      %v2733 = vunpack.c.h.b16 %v2132
      %v2734 = vunpack.c.l.b16 %v2133
      %v2735 = vunpack.c.h.b16 %v2133
      %v2736 = vunpack.c.l.b16 %v2134
      %v2737 = vunpack.c.h.b16 %v2134
      %v2738 = vunpack.c.l.b16 %v2135
      %v2739 = vunpack.c.h.b16 %v2135
      %v2740 = vunpack.c.l.b16 %v2136
      %v2741 = vunpack.c.h.b16 %v2136
      %v2742 = vunpack.c.l.b16 %v2137
      %v2743 = vunpack.c.h.b16 %v2137
      %v2744 = vunpack.c.l.b16 %v2138
      %v2745 = vunpack.c.h.b16 %v2138
      %v2746 = vunpack.c.l.b16 %v2139
      %v2747 = vunpack.c.h.b16 %v2139
      %v2748 = vunpack.c.l.b16 %v2140
      %v2749 = vunpack.c.h.b16 %v2140
      %v2750 = vunpack.c.l.b16 %v2141
      %v2751 = vunpack.c.h.b16 %v2141
      %v2752 = vunpack.c.l.b16 %v2142
      %v2753 = vunpack.c.h.b16 %v2142
      %v2754 = vunpack.c.l.b16 %v2143
      %v2755 = vunpack.c.h.b16 %v2143
      %v2756 = vunpack.c.l.b16 %v2144
      %v2757 = vunpack.c.h.b16 %v2144
      %v2758 = vunpack.c.l.b16 %v2145
      %v2759 = vunpack.c.h.b16 %v2145
      %v2760 = vunpack.c.l.b16 %v2146
      %v2761 = vunpack.c.h.b16 %v2146
      %v2762 = vunpack.c.l.b16 %v2147
      %v2763 = vunpack.c.h.b16 %v2147
      %v2764 = vunpack.c.l.b16 %v2148
      %v2765 = vunpack.c.h.b16 %v2148
      %v2766 = vunpack.c.l.b16 %v2149
      %v2767 = vunpack.c.h.b16 %v2149
      %v2768 = vunpack.c.l.b16 %v2150
      %v2769 = vunpack.c.h.b16 %v2150
      %v2770 = vunpack.c.l.b16 %v2151
      %v2771 = vunpack.c.h.b16 %v2151
      %v2772 = vunpack.c.l.b16 %v2152
      %v2773 = vunpack.c.h.b16 %v2152
      %v2774 = vunpack.c.l.b16 %v2153
      %v2775 = vunpack.c.h.b16 %v2153
      %v2776 = vunpack.c.l.b16 %v2154
      %v2777 = vunpack.c.h.b16 %v2154
      %v2778 = vunpack.c.l.b16 %v2155
      %v2779 = vunpack.c.h.b16 %v2155
      %v2780 = vunpack.c.l.b16 %v2156
      %v2781 = vunpack.c.h.b16 %v2156
      %v2782 = vunpack.c.l.b16 %v2157
      %v2783 = vunpack.c.h.b16 %v2157
      %v2784 = vunpack.c.l.b16 %v2158
      %v2785 = vunpack.c.h.b16 %v2158
      %v2786 = vunpack.c.l.b16 %v2159
      %v2787 = vunpack.c.h.b16 %v2159
      %v2788 = vunpack.c.l.b16 %v2160
      %v2789 = vunpack.c.h.b16 %v2160
      %v2790 = vunpack.c.l.b16 %v2161
      %v2791 = vunpack.c.h.b16 %v2161
      %v2792 = vunpack.c.l.b16 %v2162
      %v2793 = vunpack.c.h.b16 %v2162
      %v2794 = vunpack.c.l.b16 %v2163
      %v2795 = vunpack.c.h.b16 %v2163
      %v2796 = vunpack.c.l.b16 %v2164
      %v2797 = vunpack.c.h.b16 %v2164
      %v2798 = vunpack.c.l.b16 %v2165
      %v2799 = vunpack.c.h.b16 %v2165
      %v2800 = vunpack.c.l.b16 %v2166
      %v2801 = vunpack.c.h.b16 %v2166
      %v2802 = vunpack.c.l.b16 %v2167
      %v2803 = vunpack.c.h.b16 %v2167
      %v2804 = vunpack.c.l.b16 %v2168
      %v2805 = vunpack.c.h.b16 %v2168
      %v2806 = vunpack.c.l.b16 %v2169
      %v2807 = vunpack.c.h.b16 %v2169
      %v2808 = vunpack.c.l.b16 %v2170
      %v2809 = vunpack.c.h.b16 %v2170
      %v2810 = vunpack.c.l.b16 %v2171
      %v2811 = vunpack.c.h.b16 %v2171
      %v2812 = vunpack.c.l.b16 %v2172
      %v2813 = vunpack.c.h.b16 %v2172
      %v2814 = vunpack.c.l.b16 %v2173
      %v2815 = vunpack.c.h.b16 %v2173
      %v2816 = vunpack.c.l.b16 %v2174
      %v2817 = vunpack.c.h.b16 %v2174
      %v2818 = vunpack.c.l.b16 %v2175
      %v2819 = vunpack.c.h.b16 %v2175
      %v2820 = vunpack.c.l.b16 %v2176
      %v2821 = vunpack.c.h.b16 %v2176
      %v2822 = vunpack.c.l.b16 %v2177
      %v2823 = vunpack.c.h.b16 %v2177
      %v2824 = vunpack.c.l.b16 %v2178
      %v2825 = vunpack.c.h.b16 %v2178
      %v2826 = vunpack.c.l.b16 %v2179
      %v2827 = vunpack.c.h.b16 %v2179
      %v2828 = vunpack.c.l.b16 %v2180
      %v2829 = vunpack.c.h.b16 %v2180
      %v2830 = vunpack.c.l.b16 %v2181
      %v2831 = vunpack.c.h.b16 %v2181
      %v2832 = vunpack.c.l.b16 %v2182
      %v2833 = vunpack.c.h.b16 %v2182
      %v2834 = vunpack.c.l.b16 %v2183
      %v2835 = vunpack.c.h.b16 %v2183
      %v2836 = vunpack.c.l.b16 %v2184
      %v2837 = vunpack.c.h.b16 %v2184
      %v2838 = vunpack.c.l.b16 %v2185
      %v2839 = vunpack.c.h.b16 %v2185
      %v2840 = vunpack.c.l.b16 %v2186
      %v2841 = vunpack.c.h.b16 %v2186
      %v2842 = vunpack.c.l.b16 %v2187
      %v2843 = vunpack.c.h.b16 %v2187
      %v2844 = vunpack.c.l.b16 %v2188
      %v2845 = vunpack.c.h.b16 %v2188
      %v2846 = vunpack.c.l.b16 %v2189
      %v2847 = vunpack.c.h.b16 %v2189
      %v2848 = vunpack.c.l.b16 %v2190
      %v2849 = vunpack.c.h.b16 %v2190
      %v2850 = vunpack.c.l.b16 %v2191
      %v2851 = vunpack.c.h.b16 %v2191
      %v2852 = vunpack.c.l.b16 %v2192
      %v2853 = vunpack.c.h.b16 %v2192
      %v2854 = vunpack.c.l.b16 %v2193
      %v2855 = vunpack.c.h.b16 %v2193
      %v2856 = vunpack.c.l.b16 %v2194
      %v2857 = vunpack.c.h.b16 %v2194
      %v2858 = vunpack.c.l.b16 %v2195
      %v2859 = vunpack.c.h.b16 %v2195
      %v2860 = vunpack.c.l.b16 %v2196
      %v2861 = vunpack.c.h.b16 %v2196
      %v2862 = vunpack.c.l.b16 %v2197
      %v2863 = vunpack.c.h.b16 %v2197
      %v2864 = vunpack.c.l.b16 %v2198
      %v2865 = vunpack.c.h.b16 %v2198
      %v2866 = vunpack.c.l.b16 %v2199
      %v2867 = vunpack.c.h.b16 %v2199
      %v2868 = vunpack.c.l.b16 %v2200
      %v2869 = vunpack.c.h.b16 %v2200
      %v2870 = vunpack.c.l.b16 %v2201
      %v2871 = vunpack.c.h.b16 %v2201
      %v2872 = vunpack.c.l.b16 %v2202
      %v2873 = vunpack.c.h.b16 %v2202
      %v2874 = vunpack.c.l.b16 %v2203
      %v2875 = vunpack.c.h.b16 %v2203
      %v2876 = vunpack.c.l.b16 %v2204
      %v2877 = vunpack.c.h.b16 %v2204
      %v2878 = vunpack.c.l.b16 %v2205
      %v2879 = vunpack.c.h.b16 %v2205
      %v2880 = vunpack.c.l.b16 %v2206
      %v2881 = vunpack.c.h.b16 %v2206
      %v2882 = vunpack.c.l.b16 %v2207
      %v2883 = vunpack.c.h.b16 %v2207
      %v2884 = vunpack.c.l.b16 %v2208
      %v2885 = vunpack.c.h.b16 %v2208
      %v2886 = vunpack.c.l.b16 %v2209
      %v2887 = vunpack.c.h.b16 %v2209
      %v2888 = vunpack.c.l.b16 %v2210
      %v2889 = vunpack.c.h.b16 %v2210
      %v2890 = vunpack.c.l.b16 %v2211
      %v2891 = vunpack.c.h.b16 %v2211
      %v2892 = vunpack.c.l.b16 %v2212
      %v2893 = vunpack.c.h.b16 %v2212
      %v2894 = vunpack.c.l.b16 %v2213
      %v2895 = vunpack.c.h.b16 %v2213
      %v2896 = vunpack.c.l.b16 %v2214
      %v2897 = vunpack.c.h.b16 %v2214
      %v2898 = vunpack.c.l.b16 %v2215
      %v2899 = vunpack.c.h.b16 %v2215
      %v2900 = vunpack.c.l.b16 %v2216
      %v2901 = vunpack.c.h.b16 %v2216
      %v2902 = vunpack.c.l.b16 %v2217
      %v2903 = vunpack.c.h.b16 %v2217
      %v2904 = vunpack.c.l.b16 %v2218
      %v2905 = vunpack.c.h.b16 %v2218
      %v2906 = vunpack.c.l.b16 %v2219
      %v2907 = vunpack.c.h.b16 %v2219
      %v2908 = vunpack.c.l.b16 %v2220
      %v2909 = vunpack.c.h.b16 %v2220
      %v2910 = vunpack.c.l.b16 %v2221
      %v2911 = vunpack.c.h.b16 %v2221
      %v2912 = vunpack.c.l.b16 %v2222
      %v2913 = vunpack.c.h.b16 %v2222
      %v2914 = vunpack.c.l.b16 %v2223
      %v2915 = vunpack.c.h.b16 %v2223
      %v2916 = vunpack.c.l.b16 %v2224
      %v2917 = vunpack.c.h.b16 %v2224
      %v2918 = vunpack.c.l.b16 %v2225
      %v2919 = vunpack.c.h.b16 %v2225
      %v2920 = vunpack.c.l.b16 %v2226
      %v2921 = vunpack.c.h.b16 %v2226
      %v2922 = vunpack.c.l.b16 %v2227
      %v2923 = vunpack.c.h.b16 %v2227
      %v2924 = vunpack.c.l.b16 %v2228
      %v2925 = vunpack.c.h.b16 %v2228
      %v2926 = vunpack.c.l.b16 %v2229
      %v2927 = vunpack.c.h.b16 %v2229
      %v2928 = vunpack.c.l.b16 %v2230
      %v2929 = vunpack.c.h.b16 %v2230
      %v2930 = vunpack.c.l.b16 %v2231
      %v2931 = vunpack.c.h.b16 %v2231
      %v2932 = vunpack.c.l.b16 %v2232
      %v2933 = vunpack.c.h.b16 %v2232
      %v2934 = vunpack.c.l.b16 %v2233
      %v2935 = vunpack.c.h.b16 %v2233
      %v2936 = vunpack.c.l.b16 %v2234
      %v2937 = vunpack.c.h.b16 %v2234
      %v2938 = vunpack.c.l.b16 %v2235
      %v2939 = vunpack.c.h.b16 %v2235
      %v2940 = vunpack.c.l.b16 %v2236
      %v2941 = vunpack.c.h.b16 %v2236
      %v2942 = vunpack.c.l.b16 %v2237
      %v2943 = vunpack.c.h.b16 %v2237
      %v2944 = vunpack.c.l.b16 %v2238
      %v2945 = vunpack.c.h.b16 %v2238
      %v2946 = vunpack.c.l.b16 %v2239
      %v2947 = vunpack.c.h.b16 %v2239
      %v2948 = vunpack.c.l.b16 %v2240
      %v2949 = vunpack.c.h.b16 %v2240
      %v2950 = vunpack.c.l.b16 %v2241
      %v2951 = vunpack.c.h.b16 %v2241
      %v2952 = vunpack.c.l.b16 %v2242
      %v2953 = vunpack.c.h.b16 %v2242
      %v2954 = vunpack.c.l.b16 %v2243
      %v2955 = vunpack.c.h.b16 %v2243
      %v2956 = vunpack.c.l.b16 %v2244
      %v2957 = vunpack.c.h.b16 %v2244
      %v2958 = vunpack.c.l.b16 %v2245
      %v2959 = vunpack.c.h.b16 %v2245
      %v2960 = vunpack.c.l.b16 %v2246
      %v2961 = vunpack.c.h.b16 %v2246
      %v2962 = vunpack.c.l.b16 %v2247
      %v2963 = vunpack.c.h.b16 %v2247
      %v2964 = vunpack.c.l.b16 %v2248
      %v2965 = vunpack.c.h.b16 %v2248
      %v2966 = vunpack.c.l.b16 %v2249
      %v2967 = vunpack.c.h.b16 %v2249
      %v2968 = vunpack.c.l.b16 %v2250
      %v2969 = vunpack.c.h.b16 %v2250
      %v2970 = vunpack.c.l.b16 %v2251
      %v2971 = vunpack.c.h.b16 %v2251
      %v2972 = vunpack.c.l.b16 %v2252
      %v2973 = vunpack.c.h.b16 %v2252
      %v2974 = vunpack.c.l.b16 %v2253
      %v2975 = vunpack.c.h.b16 %v2253
      %v2976 = vunpack.c.l.b16 %v2254
      %v2977 = vunpack.c.h.b16 %v2254
      %v2978 = vunpack.c.l.b16 %v2255
      %v2979 = vunpack.c.h.b16 %v2255
      %v2980 = vunpack.c.l.b16 %v2256
      %v2981 = vunpack.c.h.b16 %v2256
      %v2982 = vunpack.c.l.b16 %v2257
      %v2983 = vunpack.c.h.b16 %v2257
      %v2984 = vunpack.c.l.b16 %v2258
      %v2985 = vunpack.c.h.b16 %v2258
      %v2986 = vunpack.c.l.b16 %v2259
      %v2987 = vunpack.c.h.b16 %v2259
      %v2988 = vunpack.c.l.b16 %v2260
      %v2989 = vunpack.c.h.b16 %v2260
      %v2990 = vunpack.c.l.b16 %v2261
      %v2991 = vunpack.c.h.b16 %v2261
      %v2992 = vunpack.c.l.b16 %v2262
      %v2993 = vunpack.c.h.b16 %v2262
      %v2994 = vunpack.c.l.b16 %v2263
      %v2995 = vunpack.c.h.b16 %v2263
      %v2996 = vunpack.c.l.b16 %v2264
      %v2997 = vunpack.c.h.b16 %v2264
      %v2998 = vunpack.c.l.b16 %v2265
      %v2999 = vunpack.c.h.b16 %v2265
      %v3000 = vunpack.c.l.b16 %v2266
      %v3001 = vunpack.c.h.b16 %v2266
      %v3002 = vunpack.c.l.b16 %v2267
      %v3003 = vunpack.c.h.b16 %v2267
      %v3004 = vunpack.c.l.b16 %v2268
      %v3005 = vunpack.c.h.b16 %v2268
      %v3006 = vunpack.c.l.b16 %v2269
      %v3007 = vunpack.c.h.b16 %v2269
      %v3008 = vunpack.c.l.b16 %v2270
      %v3009 = vunpack.c.h.b16 %v2270
      %v3010 = vunpack.c.l.b16 %v2271
      %v3011 = vunpack.c.h.b16 %v2271
      %v3012 = vunpack.c.l.b16 %v2272
      %v3013 = vunpack.c.h.b16 %v2272
      %v3014 = vunpack.c.l.b16 %v2273
      %v3015 = vunpack.c.h.b16 %v2273
      %v3016 = vunpack.c.l.b16 %v2274
      %v3017 = vunpack.c.h.b16 %v2274
      %v3018 = vunpack.c.l.b16 %v2275
      %v3019 = vunpack.c.h.b16 %v2275
      %v3020 = vunpack.c.l.b16 %v2276
      %v3021 = vunpack.c.h.b16 %v2276
      %v3022 = vunpack.c.l.b16 %v2277
      %v3023 = vunpack.c.h.b16 %v2277
      %v3024 = vunpack.c.l.b16 %v2278
      %v3025 = vunpack.c.h.b16 %v2278
      %v3026 = vunpack.c.l.b16 %v2279
      %v3027 = vunpack.c.h.b16 %v2279
      %v3028 = vunpack.c.l.b16 %v2280
      %v3029 = vunpack.c.h.b16 %v2280
      %v3030 = vunpack.c.l.b16 %v2281
      %v3031 = vunpack.c.h.b16 %v2281
      %v3032 = vunpack.c.l.b16 %v2282
      %v3033 = vunpack.c.h.b16 %v2282
      %v3034 = vunpack.c.l.b16 %v2283
      %v3035 = vunpack.c.h.b16 %v2283
      %v3036 = vunpack.c.l.b16 %v2284
      %v3037 = vunpack.c.h.b16 %v2284
      %v3038 = vunpack.c.l.b16 %v2285
      %v3039 = vunpack.c.h.b16 %v2285
      %v3040 = vunpack.c.l.b16 %v2286
      %v3041 = vunpack.c.h.b16 %v2286
      %v3042 = vunpack.c.l.b16 %v2287
      %v3043 = vunpack.c.h.b16 %v2287
      %v3044 = vunpack.c.l.b16 %v2288
      %v3045 = vunpack.c.h.b16 %v2288
      %v3046 = vunpack.c.l.b16 %v2289
      %v3047 = vunpack.c.h.b16 %v2289
      %v3048 = vunpack.c.l.b16 %v2290
      %v3049 = vunpack.c.h.b16 %v2290
      %v3050 = vunpack.c.l.b16 %v2291
      %v3051 = vunpack.c.h.b16 %v2291
      %v3052 = vunpack.c.l.b16 %v2292
      %v3053 = vunpack.c.h.b16 %v2292
      %v3054 = vunpack.c.l.b16 %v2293
      %v3055 = vunpack.c.h.b16 %v2293
      %v3056 = vunpack.c.l.b16 %v2294
      %v3057 = vunpack.c.h.b16 %v2294
      %v3058 = vunpack.c.l.b16 %v2295
      %v3059 = vunpack.c.h.b16 %v2295
      %v3060 = vunpack.c.l.b16 %v2296
      %v3061 = vunpack.c.h.b16 %v2296
      %v3062 = vunpack.c.l.b16 %v2297
      %v3063 = vunpack.c.h.b16 %v2297
      %v3064 = vunpack.c.l.b16 %v2298
      %v3065 = vunpack.c.h.b16 %v2298
      %v3066 = vunpack.c.l.b16 %v2299
      %v3067 = vunpack.c.h.b16 %v2299
      %v3068 = vunpack.c.l.b16 %v2300
      %v3069 = vunpack.c.h.b16 %v2300
      %v3070 = vunpack.c.l.b16 %v2301
      %v3071 = vunpack.c.h.b16 %v2301
      %v3072 = vunpack.c.l.b16 %v2302
      %v3073 = vunpack.c.h.b16 %v2302
      %v3074 = vunpack.c.l.b16 %v2303
      %v3075 = vunpack.c.h.b16 %v2303
      %v3076 = vunpack.c.l.b16 %v2304
      %v3077 = vunpack.c.h.b16 %v2304
      %v3078 = vunpack.c.l.b16 %v2305
      %v3079 = vunpack.c.h.b16 %v2305
      %v3080 = vunpack.c.l.b16 %v2306
      %v3081 = vunpack.c.h.b16 %v2306
      %v3082 = vunpack.c.l.b16 %v2307
      %v3083 = vunpack.c.h.b16 %v2307
      %v3084 = vunpack.c.l.b16 %v2308
      %v3085 = vunpack.c.h.b16 %v2308
      %v3086 = vunpack.c.l.b16 %v2309
      %v3087 = vunpack.c.h.b16 %v2309
      %v3088 = vunpack.c.l.b16 %v2310
      %v3089 = vunpack.c.h.b16 %v2310
      %v3090 = vunpack.c.l.b16 %v2311
      %v3091 = vunpack.c.h.b16 %v2311
      %v3092 = vunpack.c.l.b16 %v2312
      %v3093 = vunpack.c.h.b16 %v2312
      %v3094 = vunpack.c.l.b16 %v2313
      %v3095 = vunpack.c.h.b16 %v2313
      %v3096 = vunpack.c.l.b16 %v2314
      %v3097 = vunpack.c.h.b16 %v2314
      %v3098 = vunpack.c.l.b16 %v2315
      %v3099 = vunpack.c.h.b16 %v2315
      %v3100 = vunpack.c.l.b16 %v2316
      %v3101 = vunpack.c.h.b16 %v2316
      %v3102 = vunpack.c.l.b16 %v2317
      %v3103 = vunpack.c.h.b16 %v2317
      %v3104 = vunpack.c.l.b16 %v2318
      %v3105 = vunpack.c.h.b16 %v2318
      %v3106 = vunpack.c.l.b16 %v2319
      %v3107 = vunpack.c.h.b16 %v2319
      %v3108 = vunpack.c.l.b16 %v2320
      %v3109 = vunpack.c.h.b16 %v2320
      %v3110 = vunpack.c.l.b16 %v2321
      %v3111 = vunpack.c.h.b16 %v2321
      %v3112 = vunpack.c.l.b16 %v2322
      %v3113 = vunpack.c.h.b16 %v2322
      %v3114 = vunpack.c.l.b16 %v2323
      %v3115 = vunpack.c.h.b16 %v2323
      %v3116 = vunpack.c.l.b16 %v2324
      %v3117 = vunpack.c.h.b16 %v2324
      %v3118 = vunpack.c.l.b16 %v2325
      %v3119 = vunpack.c.h.b16 %v2325
      %v3120 = vunpack.c.l.b16 %v2326
      %v3121 = vunpack.c.h.b16 %v2326
      %v3122 = vunpack.c.l.b16 %v2327
      %v3123 = vunpack.c.h.b16 %v2327
      %v3124 = vunpack.c.l.b16 %v2328
      %v3125 = vunpack.c.h.b16 %v2328
      %v3126 = vunpack.c.l.b16 %v2329
      %v3127 = vunpack.c.h.b16 %v2329
      %v3128 = vunpack.c.l.b16 %v2330
      %v3129 = vunpack.c.h.b16 %v2330
      %v3130 = vunpack.c.l.b16 %v2331
      %v3131 = vunpack.c.h.b16 %v2331
      %v3132 = vunpack.c.l.b16 %v2332
      %v3133 = vunpack.c.h.b16 %v2332
      %v3134 = vunpack.c.l.b16 %v2333
      %v3135 = vunpack.c.h.b16 %v2333
      %v3136 = vunpack.c.l.b16 %v2334
      %v3137 = vunpack.c.h.b16 %v2334
      %v3138 = vunpack.c.l.b16 %v2335
      %v3139 = vunpack.c.h.b16 %v2335
      %v3140 = vunpack.c.l.b16 %v2336
      %v3141 = vunpack.c.h.b16 %v2336
      %v3142 = vunpack.c.l.b16 %v2337
      %v3143 = vunpack.c.h.b16 %v2337
      %v3144 = vunpack.c.l.b16 %v2338
      %v3145 = vunpack.c.h.b16 %v2338
      %v3146 = vunpack.c.l.b16 %v2339
      %v3147 = vunpack.c.h.b16 %v2339
      %v3148 = vunpack.c.l.b16 %v2340
      %v3149 = vunpack.c.h.b16 %v2340
      %v3150 = vunpack.c.l.b16 %v2341
      %v3151 = vunpack.c.h.b16 %v2341
      %v3152 = vpack.c.b16 %v2648, %v2640
      %v3153 = vpack.c.b16 %v2649, %v2641
      %v3154 = vpack.c.b16 %v2650, %v2642
      %v3155 = vpack.c.b16 %v2651, %v2643
      %v3156 = vpack.c.b16 %v2652, %v2644
      %v3157 = vpack.c.b16 %v2653, %v2645
      %v3158 = vpack.c.b16 %v2654, %v2646
      %v3159 = vpack.c.b16 %v2655, %v2647
      %v3160 = vpack.c.b16 %v2664, %v2656
      %v3161 = vpack.c.b16 %v2665, %v2657
      %v3162 = vpack.c.b16 %v2666, %v2658
      %v3163 = vpack.c.b16 %v2667, %v2659
      %v3164 = vpack.c.b16 %v2668, %v2660
      %v3165 = vpack.c.b16 %v2669, %v2661
      %v3166 = vpack.c.b16 %v2670, %v2662
      %v3167 = vpack.c.b16 %v2671, %v2663
      %v3168 = vpack.c.b16 %v2680, %v2672
      %v3169 = vpack.c.b16 %v2681, %v2673
      %v3170 = vpack.c.b16 %v2682, %v2674
      %v3171 = vpack.c.b16 %v2683, %v2675
      %v3172 = vpack.c.b16 %v2684, %v2676
      %v3173 = vpack.c.b16 %v2685, %v2677
      %v3174 = vpack.c.b16 %v2686, %v2678
      %v3175 = vpack.c.b16 %v2687, %v2679
      %v3176 = vpack.c.b16 %v2696, %v2688
      %v3177 = vpack.c.b16 %v2697, %v2689
      %v3178 = vpack.c.b16 %v2698, %v2690
      %v3179 = vpack.c.b16 %v2699, %v2691
      %v3180 = vpack.c.b16 %v2700, %v2692
      %v3181 = vpack.c.b16 %v2701, %v2693
      %v3182 = vpack.c.b16 %v2702, %v2694
      %v3183 = vpack.c.b16 %v2703, %v2695
      %v3184 = vpack.c.b16 %v2712, %v2704
      %v3185 = vpack.c.b16 %v2713, %v2705
      %v3186 = vpack.c.b16 %v2714, %v2706
      %v3187 = vpack.c.b16 %v2715, %v2707
      %v3188 = vpack.c.b16 %v2716, %v2708
      %v3189 = vpack.c.b16 %v2717, %v2709
      %v3190 = vpack.c.b16 %v2718, %v2710
      %v3191 = vpack.c.b16 %v2719, %v2711
      %v3192 = vpack.c.b16 %v2728, %v2720
      %v3193 = vpack.c.b16 %v2729, %v2721
      %v3194 = vpack.c.b16 %v2730, %v2722
      %v3195 = vpack.c.b16 %v2731, %v2723
      %v3196 = vpack.c.b16 %v2732, %v2724
      %v3197 = vpack.c.b16 %v2733, %v2725
      %v3198 = vpack.c.b16 %v2734, %v2726
      %v3199 = vpack.c.b16 %v2735, %v2727
      %v3200 = vpack.c.b16 %v2744, %v2736
      %v3201 = vpack.c.b16 %v2745, %v2737
      %v3202 = vpack.c.b16 %v2746, %v2738
      %v3203 = vpack.c.b16 %v2747, %v2739
      %v3204 = vpack.c.b16 %v2748, %v2740
      %v3205 = vpack.c.b16 %v2749, %v2741
      %v3206 = vpack.c.b16 %v2750, %v2742
      %v3207 = vpack.c.b16 %v2751, %v2743
      %v3208 = vpack.c.b16 %v2760, %v2752
      %v3209 = vpack.c.b16 %v2761, %v2753
      %v3210 = vpack.c.b16 %v2762, %v2754
      %v3211 = vpack.c.b16 %v2763, %v2755
      %v3212 = vpack.c.b16 %v2764, %v2756
      %v3213 = vpack.c.b16 %v2765, %v2757
      %v3214 = vpack.c.b16 %v2766, %v2758
      %v3215 = vpack.c.b16 %v2767, %v2759
      %v3216 = vpack.c.b16 %v2776, %v2768
      %v3217 = vpack.c.b16 %v2777, %v2769
      %v3218 = vpack.c.b16 %v2778, %v2770
      %v3219 = vpack.c.b16 %v2779, %v2771
      %v3220 = vpack.c.b16 %v2780, %v2772
      %v3221 = vpack.c.b16 %v2781, %v2773
      %v3222 = vpack.c.b16 %v2782, %v2774
      %v3223 = vpack.c.b16 %v2783, %v2775
      %v3224 = vpack.c.b16 %v2792, %v2784
      %v3225 = vpack.c.b16 %v2793, %v2785
      %v3226 = vpack.c.b16 %v2794, %v2786
      %v3227 = vpack.c.b16 %v2795, %v2787
      %v3228 = vpack.c.b16 %v2796, %v2788
      %v3229 = vpack.c.b16 %v2797, %v2789
      %v3230 = vpack.c.b16 %v2798, %v2790
      %v3231 = vpack.c.b16 %v2799, %v2791
      %v3232 = vpack.c.b16 %v2808, %v2800
      %v3233 = vpack.c.b16 %v2809, %v2801
      %v3234 = vpack.c.b16 %v2810, %v2802
      %v3235 = vpack.c.b16 %v2811, %v2803
      %v3236 = vpack.c.b16 %v2812, %v2804
      %v3237 = vpack.c.b16 %v2813, %v2805
      %v3238 = vpack.c.b16 %v2814, %v2806
      %v3239 = vpack.c.b16 %v2815, %v2807
      %v3240 = vpack.c.b16 %v2824, %v2816
      %v3241 = vpack.c.b16 %v2825, %v2817
      %v3242 = vpack.c.b16 %v2826, %v2818
      %v3243 = vpack.c.b16 %v2827, %v2819
      %v3244 = vpack.c.b16 %v2828, %v2820
      %v3245 = vpack.c.b16 %v2829, %v2821
      %v3246 = vpack.c.b16 %v2830, %v2822
      %v3247 = vpack.c.b16 %v2831, %v2823
      %v3248 = vpack.c.b16 %v2840, %v2832
      %v3249 = vpack.c.b16 %v2841, %v2833
      %v3250 = vpack.c.b16 %v2842, %v2834
      %v3251 = vpack.c.b16 %v2843, %v2835
      %v3252 = vpack.c.b16 %v2844, %v2836
      %v3253 = vpack.c.b16 %v2845, %v2837
      %v3254 = vpack.c.b16 %v2846, %v2838
      %v3255 = vpack.c.b16 %v2847, %v2839
      %v3256 = vpack.c.b16 %v2856, %v2848
      %v3257 = vpack.c.b16 %v2857, %v2849
      %v3258 = vpack.c.b16 %v2858, %v2850
      %v3259 = vpack.c.b16 %v2859, %v2851
      %v3260 = vpack.c.b16 %v2860, %v2852
      %v3261 = vpack.c.b16 %v2861, %v2853
      %v3262 = vpack.c.b16 %v2862, %v2854
      %v3263 = vpack.c.b16 %v2863, %v2855
      %v3264 = vpack.c.b16 %v2872, %v2864
      %v3265 = vpack.c.b16 %v2873, %v2865
      %v3266 = vpack.c.b16 %v2874, %v2866
      %v3267 = vpack.c.b16 %v2875, %v2867
      %v3268 = vpack.c.b16 %v2876, %v2868
      %v3269 = vpack.c.b16 %v2877, %v2869
      %v3270 = vpack.c.b16 %v2878, %v2870
      %v3271 = vpack.c.b16 %v2879, %v2871
      %v3272 = vpack.c.b16 %v2888, %v2880
      %v3273 = vpack.c.b16 %v2889, %v2881
      %v3274 = vpack.c.b16 %v2890, %v2882
      %v3275 = vpack.c.b16 %v2891, %v2883
      %v3276 = vpack.c.b16 %v2892, %v2884
      %v3277 = vpack.c.b16 %v2893, %v2885
      %v3278 = vpack.c.b16 %v2894, %v2886
      %v3279 = vpack.c.b16 %v2895, %v2887
      %v3280 = vpack.c.b16 %v2904, %v2896
      %v3281 = vpack.c.b16 %v2905, %v2897
      %v3282 = vpack.c.b16 %v2906, %v2898
      %v3283 = vpack.c.b16 %v2907, %v2899
      %v3284 = vpack.c.b16 %v2908, %v2900
      %v3285 = vpack.c.b16 %v2909, %v2901
      %v3286 = vpack.c.b16 %v2910, %v2902
      %v3287 = vpack.c.b16 %v2911, %v2903
      %v3288 = vpack.c.b16 %v2920, %v2912
      %v3289 = vpack.c.b16 %v2921, %v2913
      %v3290 = vpack.c.b16 %v2922, %v2914
      %v3291 = vpack.c.b16 %v2923, %v2915
      %v3292 = vpack.c.b16 %v2924, %v2916
      %v3293 = vpack.c.b16 %v2925, %v2917
      %v3294 = vpack.c.b16 %v2926, %v2918
      %v3295 = vpack.c.b16 %v2927, %v2919
      %v3296 = vpack.c.b16 %v2936, %v2928
      %v3297 = vpack.c.b16 %v2937, %v2929
      %v3298 = vpack.c.b16 %v2938, %v2930
      %v3299 = vpack.c.b16 %v2939, %v2931
      %v3300 = vpack.c.b16 %v2940, %v2932
      %v3301 = vpack.c.b16 %v2941, %v2933
      %v3302 = vpack.c.b16 %v2942, %v2934
      %v3303 = vpack.c.b16 %v2943, %v2935
      %v3304 = vpack.c.b16 %v2952, %v2944
      %v3305 = vpack.c.b16 %v2953, %v2945
      %v3306 = vpack.c.b16 %v2954, %v2946
      %v3307 = vpack.c.b16 %v2955, %v2947
      %v3308 = vpack.c.b16 %v2956, %v2948
      %v3309 = vpack.c.b16 %v2957, %v2949
      %v3310 = vpack.c.b16 %v2958, %v2950
      %v3311 = vpack.c.b16 %v2959, %v2951
      %v3312 = vpack.c.b16 %v2968, %v2960
      %v3313 = vpack.c.b16 %v2969, %v2961
      %v3314 = vpack.c.b16 %v2970, %v2962
      %v3315 = vpack.c.b16 %v2971, %v2963
      %v3316 = vpack.c.b16 %v2972, %v2964
      %v3317 = vpack.c.b16 %v2973, %v2965
      %v3318 = vpack.c.b16 %v2974, %v2966
      %v3319 = vpack.c.b16 %v2975, %v2967
      %v3320 = vpack.c.b16 %v2984, %v2976
      %v3321 = vpack.c.b16 %v2985, %v2977
      %v3322 = vpack.c.b16 %v2986, %v2978
      %v3323 = vpack.c.b16 %v2987, %v2979
      %v3324 = vpack.c.b16 %v2988, %v2980
      %v3325 = vpack.c.b16 %v2989, %v2981
      %v3326 = vpack.c.b16 %v2990, %v2982
      %v3327 = vpack.c.b16 %v2991, %v2983
      %v3328 = vpack.c.b16 %v3000, %v2992
      %v3329 = vpack.c.b16 %v3001, %v2993
      %v3330 = vpack.c.b16 %v3002, %v2994
      %v3331 = vpack.c.b16 %v3003, %v2995
      %v3332 = vpack.c.b16 %v3004, %v2996
      %v3333 = vpack.c.b16 %v3005, %v2997
      %v3334 = vpack.c.b16 %v3006, %v2998
      %v3335 = vpack.c.b16 %v3007, %v2999
      %v3336 = vpack.c.b16 %v3016, %v3008
      %v3337 = vpack.c.b16 %v3017, %v3009
      %v3338 = vpack.c.b16 %v3018, %v3010
      %v3339 = vpack.c.b16 %v3019, %v3011
      %v3340 = vpack.c.b16 %v3020, %v3012
      %v3341 = vpack.c.b16 %v3021, %v3013
      %v3342 = vpack.c.b16 %v3022, %v3014
      %v3343 = vpack.c.b16 %v3023, %v3015
      %v3344 = vpack.c.b16 %v3032, %v3024
      %v3345 = vpack.c.b16 %v3033, %v3025
      %v3346 = vpack.c.b16 %v3034, %v3026
      %v3347 = vpack.c.b16 %v3035, %v3027
      %v3348 = vpack.c.b16 %v3036, %v3028
      %v3349 = vpack.c.b16 %v3037, %v3029
      %v3350 = vpack.c.b16 %v3038, %v3030
      %v3351 = vpack.c.b16 %v3039, %v3031
      %v3352 = vpack.c.b16 %v3048, %v3040
      %v3353 = vpack.c.b16 %v3049, %v3041
      %v3354 = vpack.c.b16 %v3050, %v3042
      %v3355 = vpack.c.b16 %v3051, %v3043
      %v3356 = vpack.c.b16 %v3052, %v3044
      %v3357 = vpack.c.b16 %v3053, %v3045
      %v3358 = vpack.c.b16 %v3054, %v3046
      %v3359 = vpack.c.b16 %v3055, %v3047
      %v3360 = vpack.c.b16 %v3064, %v3056
      %v3361 = vpack.c.b16 %v3065, %v3057
      %v3362 = vpack.c.b16 %v3066, %v3058
      %v3363 = vpack.c.b16 %v3067, %v3059
      %v3364 = vpack.c.b16 %v3068, %v3060
      %v3365 = vpack.c.b16 %v3069, %v3061
      %v3366 = vpack.c.b16 %v3070, %v3062
      %v3367 = vpack.c.b16 %v3071, %v3063
      %v3368 = vpack.c.b16 %v3080, %v3072
      %v3369 = vpack.c.b16 %v3081, %v3073
      %v3370 = vpack.c.b16 %v3082, %v3074
      %v3371 = vpack.c.b16 %v3083, %v3075
      %v3372 = vpack.c.b16 %v3084, %v3076
      %v3373 = vpack.c.b16 %v3085, %v3077
      %v3374 = vpack.c.b16 %v3086, %v3078
      %v3375 = vpack.c.b16 %v3087, %v3079
      %v3376 = vpack.c.b16 %v3096, %v3088
      %v3377 = vpack.c.b16 %v3097, %v3089
      %v3378 = vpack.c.b16 %v3098, %v3090
      %v3379 = vpack.c.b16 %v3099, %v3091
      %v3380 = vpack.c.b16 %v3100, %v3092
      %v3381 = vpack.c.b16 %v3101, %v3093
      %v3382 = vpack.c.b16 %v3102, %v3094
      %v3383 = vpack.c.b16 %v3103, %v3095
      %v3384 = vpack.c.b16 %v3112, %v3104
      %v3385 = vpack.c.b16 %v3113, %v3105
      %v3386 = vpack.c.b16 %v3114, %v3106
      %v3387 = vpack.c.b16 %v3115, %v3107
      %v3388 = vpack.c.b16 %v3116, %v3108
      %v3389 = vpack.c.b16 %v3117, %v3109
      %v3390 = vpack.c.b16 %v3118, %v3110
      %v3391 = vpack.c.b16 %v3119, %v3111
      %v3392 = vpack.c.b16 %v3128, %v3120
      %v3393 = vpack.c.b16 %v3129, %v3121
      %v3394 = vpack.c.b16 %v3130, %v3122
      %v3395 = vpack.c.b16 %v3131, %v3123
      %v3396 = vpack.c.b16 %v3132, %v3124
      %v3397 = vpack.c.b16 %v3133, %v3125
      %v3398 = vpack.c.b16 %v3134, %v3126
      %v3399 = vpack.c.b16 %v3135, %v3127
      %v3400 = vpack.c.b16 %v3144, %v3136
      %v3401 = vpack.c.b16 %v3145, %v3137
      %v3402 = vpack.c.b16 %v3146, %v3138
      %v3403 = vpack.c.b16 %v3147, %v3139
      %v3404 = vpack.c.b16 %v3148, %v3140
      %v3405 = vpack.c.b16 %v3149, %v3141
      %v3406 = vpack.c.b16 %v3150, %v3142
      %v3407 = vpack.c.b16 %v3151, %v3143
      %3664 = vmatprep.subr.bf16.mxu0 %v3209
      %3665 = vmatpush1.bf16.msra.mxu0 %v3208
      %3666 = vmatprep.subr.bf16.mxu0 %v3201
      %3667 = vmatpush1.bf16.msra.mxu0 %v3200
      %3668 = vmatprep.subr.bf16.mxu0 %v3193
      %3669 = vmatpush1.bf16.msra.mxu0 %v3192
      %3670 = vmatprep.subr.bf16.mxu0 %v3185
      %3671 = vmatpush1.bf16.msra.mxu0 %v3184
      %3672 = vmatprep.subr.bf16.mxu0 %v3177
      %3673 = vmatpush1.bf16.msra.mxu0 %v3176
      %3674 = vmatprep.subr.bf16.mxu0 %v3169
      %3675 = vmatpush1.bf16.msra.mxu0 %v3168
      %3676 = vmatprep.subr.bf16.mxu0 %v3161
      %3677 = vmatpush1.bf16.msra.mxu0 %v3160
      %3678 = vmatprep.subr.bf16.mxu0 %v3153
      %3679 = vmatpush1.bf16.msra.mxu0 %v3152
      %3680 = vmatprep.subr.bf16.mxu0 %v3273
      %3681 = vmatpush2.bf16.msra.mxu0 %v3272
      %3682 = vmatprep.subr.bf16.mxu0 %v3265
      %3683 = vmatpush2.bf16.msra.mxu0 %v3264
      %3684 = vmatprep.subr.bf16.mxu0 %v3257
      %3685 = vmatpush2.bf16.msra.mxu0 %v3256
      %3686 = vmatprep.subr.bf16.mxu0 %v3249
      %3687 = vmatpush2.bf16.msra.mxu0 %v3248
      %3688 = vmatprep.subr.bf16.mxu0 %v3241
      %3689 = vmatpush2.bf16.msra.mxu0 %v3240
      %3690 = vmatprep.subr.bf16.mxu0 %v3233
      %3691 = vmatpush2.bf16.msra.mxu0 %v3232
      %3692 = vmatprep.subr.bf16.mxu0 %v3225
      %3693 = vmatpush2.bf16.msra.mxu0 %v3224
      %3694 = vmatprep.subr.bf16.mxu0 %v3217
      %3695 = vmatpush2.bf16.msra.mxu0 %v3216
      %3696 = vmatprep.mubr.bf16.mxu0 %v2083
      %3697 = vmatmul.mubr.bf16.gmra.mxu0 %v2082
      %v3698 = vpop.f32.mrf.mxu0
      %v3699 = vadd.f32 %v2347, %v3698
      %v3700 = vpop.f32.mrf.mxu0
      %v3701 = vadd.f32 %v2351, %v3700
      %v3702 = vpop.f32.mrf.mxu0
      %v3703 = vpop.f32.mrf.mxu0
      %3704 = vdwg.mxu0
      %3705 = vmatprep.subr.bf16.mxu0 %v3337
      %3706 = vmatpush1.bf16.msra.mxu0 %v3336
      %3707 = vmatprep.subr.bf16.mxu0 %v3329
      %3708 = vmatpush1.bf16.msra.mxu0 %v3328
      %3709 = vmatprep.subr.bf16.mxu0 %v3321
      %3710 = vmatpush1.bf16.msra.mxu0 %v3320
      %3711 = vmatprep.subr.bf16.mxu0 %v3313
      %3712 = vmatpush1.bf16.msra.mxu0 %v3312
      %3713 = vmatprep.subr.bf16.mxu0 %v3305
      %3714 = vmatpush1.bf16.msra.mxu0 %v3304
      %3715 = vmatprep.subr.bf16.mxu0 %v3297
      %3716 = vmatpush1.bf16.msra.mxu0 %v3296
      %3717 = vmatprep.subr.bf16.mxu0 %v3289
      %3718 = vmatpush1.bf16.msra.mxu0 %v3288
      %3719 = vmatprep.subr.bf16.mxu0 %v3281
      %3720 = vmatpush1.bf16.msra.mxu0 %v3280
      %3721 = vmatprep.subr.bf16.mxu0 %v3401
      %3722 = vmatpush2.bf16.msra.mxu0 %v3400
      %3723 = vmatprep.subr.bf16.mxu0 %v3393
      %3724 = vmatpush2.bf16.msra.mxu0 %v3392
      %3725 = vmatprep.subr.bf16.mxu0 %v3385
      %3726 = vmatpush2.bf16.msra.mxu0 %v3384
      %3727 = vmatprep.subr.bf16.mxu0 %v3377
      %3728 = vmatpush2.bf16.msra.mxu0 %v3376
      %3729 = vmatprep.subr.bf16.mxu0 %v3369
      %3730 = vmatpush2.bf16.msra.mxu0 %v3368
      %3731 = vmatprep.subr.bf16.mxu0 %v3361
      %3732 = vmatpush2.bf16.msra.mxu0 %v3360
      %3733 = vmatprep.subr.bf16.mxu0 %v3353
      %3734 = vmatpush2.bf16.msra.mxu0 %v3352
      %3735 = vmatprep.subr.bf16.mxu0 %v3345
      %3736 = vmatpush2.bf16.msra.mxu0 %v3344
      %3737 = vmatprep.mubr.bf16.mxu0 %v2085
      %3738 = vmatmul.mubr.bf16.gmra.mxu0 %v2084
      %v3739 = vpop.f32.mrf.mxu0
      %v3740 = vadd.f32 %v3699, %v3739
      %v3741 = vpop.f32.mrf.mxu0
      %v3742 = vadd.f32 %v3701, %v3741
      %v3743 = vpop.f32.mrf.mxu0
      %v3744 = vpop.f32.mrf.mxu0
      %3745 = vdwg.mxu0
      %3746 = vmatprep.subr.bf16.mxu0 %v3211
      %3747 = vmatpush1.bf16.msra.mxu0 %v3210
      %3748 = vmatprep.subr.bf16.mxu0 %v3203
      %3749 = vmatpush1.bf16.msra.mxu0 %v3202
      %3750 = vmatprep.subr.bf16.mxu0 %v3195
      %3751 = vmatpush1.bf16.msra.mxu0 %v3194
      %3752 = vmatprep.subr.bf16.mxu0 %v3187
      %3753 = vmatpush1.bf16.msra.mxu0 %v3186
      %3754 = vmatprep.subr.bf16.mxu0 %v3179
      %3755 = vmatpush1.bf16.msra.mxu0 %v3178
      %3756 = vmatprep.subr.bf16.mxu0 %v3171
      %3757 = vmatpush1.bf16.msra.mxu0 %v3170
      %3758 = vmatprep.subr.bf16.mxu0 %v3163
      %3759 = vmatpush1.bf16.msra.mxu0 %v3162
      %3760 = vmatprep.subr.bf16.mxu0 %v3155
      %3761 = vmatpush1.bf16.msra.mxu0 %v3154
      %3762 = vmatprep.subr.bf16.mxu0 %v3275
      %3763 = vmatpush2.bf16.msra.mxu0 %v3274
      %3764 = vmatprep.subr.bf16.mxu0 %v3267
      %3765 = vmatpush2.bf16.msra.mxu0 %v3266
      %3766 = vmatprep.subr.bf16.mxu0 %v3259
      %3767 = vmatpush2.bf16.msra.mxu0 %v3258
      %3768 = vmatprep.subr.bf16.mxu0 %v3251
      %3769 = vmatpush2.bf16.msra.mxu0 %v3250
      %3770 = vmatprep.subr.bf16.mxu0 %v3243
      %3771 = vmatpush2.bf16.msra.mxu0 %v3242
      %3772 = vmatprep.subr.bf16.mxu0 %v3235
      %3773 = vmatpush2.bf16.msra.mxu0 %v3234
      %3774 = vmatprep.subr.bf16.mxu0 %v3227
      %3775 = vmatpush2.bf16.msra.mxu0 %v3226
      %3776 = vmatprep.subr.bf16.mxu0 %v3219
      %3777 = vmatpush2.bf16.msra.mxu0 %v3218
      %3778 = vmatprep.mubr.bf16.mxu0 %v2083
      %3779 = vmatmul.mubr.bf16.gmra.mxu0 %v2082
      %v3780 = vpop.f32.mrf.mxu0
      %v3781 = vadd.f32 %v2355, %v3780
      %v3782 = vpop.f32.mrf.mxu0
      %v3783 = vadd.f32 %v2359, %v3782
      %v3784 = vpop.f32.mrf.mxu0
      %v3785 = vpop.f32.mrf.mxu0
      %3786 = vdwg.mxu0
      %3787 = vmatprep.subr.bf16.mxu0 %v3339
      %3788 = vmatpush1.bf16.msra.mxu0 %v3338
      %3789 = vmatprep.subr.bf16.mxu0 %v3331
      %3790 = vmatpush1.bf16.msra.mxu0 %v3330
      %3791 = vmatprep.subr.bf16.mxu0 %v3323
      %3792 = vmatpush1.bf16.msra.mxu0 %v3322
      %3793 = vmatprep.subr.bf16.mxu0 %v3315
      %3794 = vmatpush1.bf16.msra.mxu0 %v3314
      %3795 = vmatprep.subr.bf16.mxu0 %v3307
      %3796 = vmatpush1.bf16.msra.mxu0 %v3306
      %3797 = vmatprep.subr.bf16.mxu0 %v3299
      %3798 = vmatpush1.bf16.msra.mxu0 %v3298
      %3799 = vmatprep.subr.bf16.mxu0 %v3291
      %3800 = vmatpush1.bf16.msra.mxu0 %v3290
      %3801 = vmatprep.subr.bf16.mxu0 %v3283
      %3802 = vmatpush1.bf16.msra.mxu0 %v3282
      %3803 = vmatprep.subr.bf16.mxu0 %v3403
      %3804 = vmatpush2.bf16.msra.mxu0 %v3402
      %3805 = vmatprep.subr.bf16.mxu0 %v3395
      %3806 = vmatpush2.bf16.msra.mxu0 %v3394
      %3807 = vmatprep.subr.bf16.mxu0 %v3387
      %3808 = vmatpush2.bf16.msra.mxu0 %v3386
      %3809 = vmatprep.subr.bf16.mxu0 %v3379
      %3810 = vmatpush2.bf16.msra.mxu0 %v3378
      %3811 = vmatprep.subr.bf16.mxu0 %v3371
      %3812 = vmatpush2.bf16.msra.mxu0 %v3370
      %3813 = vmatprep.subr.bf16.mxu0 %v3363
      %3814 = vmatpush2.bf16.msra.mxu0 %v3362
      %3815 = vmatprep.subr.bf16.mxu0 %v3355
      %3816 = vmatpush2.bf16.msra.mxu0 %v3354
      %3817 = vmatprep.subr.bf16.mxu0 %v3347
      %3818 = vmatpush2.bf16.msra.mxu0 %v3346
      %3819 = vmatprep.mubr.bf16.mxu0 %v2085
      %3820 = vmatmul.mubr.bf16.gmra.mxu0 %v2084
      %v3821 = vpop.f32.mrf.mxu0
      %v3822 = vadd.f32 %v3781, %v3821
      %v3823 = vpop.f32.mrf.mxu0
      %v3824 = vadd.f32 %v3783, %v3823
      %v3825 = vpop.f32.mrf.mxu0
      %v3826 = vpop.f32.mrf.mxu0
      %3827 = vdwg.mxu0
      %3828 = vmatprep.subr.bf16.mxu0 %v3213
      %3829 = vmatpush1.bf16.msra.mxu0 %v3212
      %3830 = vmatprep.subr.bf16.mxu0 %v3205
      %3831 = vmatpush1.bf16.msra.mxu0 %v3204
      %3832 = vmatprep.subr.bf16.mxu0 %v3197
      %3833 = vmatpush1.bf16.msra.mxu0 %v3196
      %3834 = vmatprep.subr.bf16.mxu0 %v3189
      %3835 = vmatpush1.bf16.msra.mxu0 %v3188
      %3836 = vmatprep.subr.bf16.mxu0 %v3181
      %3837 = vmatpush1.bf16.msra.mxu0 %v3180
      %3838 = vmatprep.subr.bf16.mxu0 %v3173
      %3839 = vmatpush1.bf16.msra.mxu0 %v3172
      %3840 = vmatprep.subr.bf16.mxu0 %v3165
      %3841 = vmatpush1.bf16.msra.mxu0 %v3164
      %3842 = vmatprep.subr.bf16.mxu0 %v3157
      %3843 = vmatpush1.bf16.msra.mxu0 %v3156
      %3844 = vmatprep.subr.bf16.mxu0 %v3277
      %3845 = vmatpush2.bf16.msra.mxu0 %v3276
      %3846 = vmatprep.subr.bf16.mxu0 %v3269
      %3847 = vmatpush2.bf16.msra.mxu0 %v3268
      %3848 = vmatprep.subr.bf16.mxu0 %v3261
      %3849 = vmatpush2.bf16.msra.mxu0 %v3260
      %3850 = vmatprep.subr.bf16.mxu0 %v3253
      %3851 = vmatpush2.bf16.msra.mxu0 %v3252
      %3852 = vmatprep.subr.bf16.mxu0 %v3245
      %3853 = vmatpush2.bf16.msra.mxu0 %v3244
      %3854 = vmatprep.subr.bf16.mxu0 %v3237
      %3855 = vmatpush2.bf16.msra.mxu0 %v3236
      %3856 = vmatprep.subr.bf16.mxu0 %v3229
      %3857 = vmatpush2.bf16.msra.mxu0 %v3228
      %3858 = vmatprep.subr.bf16.mxu0 %v3221
      %3859 = vmatpush2.bf16.msra.mxu0 %v3220
      %3860 = vmatprep.mubr.bf16.mxu0 %v2083
      %3861 = vmatmul.mubr.bf16.gmra.mxu0 %v2082
      %v3862 = vpop.f32.mrf.mxu0
      %v3863 = vadd.f32 %v2363, %v3862
      %v3864 = vpop.f32.mrf.mxu0
      %v3865 = vadd.f32 %v2367, %v3864
      %v3866 = vpop.f32.mrf.mxu0
      %v3867 = vpop.f32.mrf.mxu0
      %3868 = vdwg.mxu0
      %3869 = vmatprep.subr.bf16.mxu0 %v3341
      %3870 = vmatpush1.bf16.msra.mxu0 %v3340
      %3871 = vmatprep.subr.bf16.mxu0 %v3333
      %3872 = vmatpush1.bf16.msra.mxu0 %v3332
      %3873 = vmatprep.subr.bf16.mxu0 %v3325
      %3874 = vmatpush1.bf16.msra.mxu0 %v3324
      %3875 = vmatprep.subr.bf16.mxu0 %v3317
      %3876 = vmatpush1.bf16.msra.mxu0 %v3316
      %3877 = vmatprep.subr.bf16.mxu0 %v3309
      %3878 = vmatpush1.bf16.msra.mxu0 %v3308
      %3879 = vmatprep.subr.bf16.mxu0 %v3301
      %3880 = vmatpush1.bf16.msra.mxu0 %v3300
      %3881 = vmatprep.subr.bf16.mxu0 %v3293
      %3882 = vmatpush1.bf16.msra.mxu0 %v3292
      %3883 = vmatprep.subr.bf16.mxu0 %v3285
      %3884 = vmatpush1.bf16.msra.mxu0 %v3284
      %3885 = vmatprep.subr.bf16.mxu0 %v3405
      %3886 = vmatpush2.bf16.msra.mxu0 %v3404
      %3887 = vmatprep.subr.bf16.mxu0 %v3397
      %3888 = vmatpush2.bf16.msra.mxu0 %v3396
      %3889 = vmatprep.subr.bf16.mxu0 %v3389
      %3890 = vmatpush2.bf16.msra.mxu0 %v3388
      %3891 = vmatprep.subr.bf16.mxu0 %v3381
      %3892 = vmatpush2.bf16.msra.mxu0 %v3380
      %3893 = vmatprep.subr.bf16.mxu0 %v3373
      %3894 = vmatpush2.bf16.msra.mxu0 %v3372
      %3895 = vmatprep.subr.bf16.mxu0 %v3365
      %3896 = vmatpush2.bf16.msra.mxu0 %v3364
      %3897 = vmatprep.subr.bf16.mxu0 %v3357
      %3898 = vmatpush2.bf16.msra.mxu0 %v3356
      %3899 = vmatprep.subr.bf16.mxu0 %v3349
      %3900 = vmatpush2.bf16.msra.mxu0 %v3348
      %3901 = vmatprep.mubr.bf16.mxu0 %v2085
      %3902 = vmatmul.mubr.bf16.gmra.mxu0 %v2084
      %v3903 = vpop.f32.mrf.mxu0
      %v3904 = vadd.f32 %v3863, %v3903
      %v3905 = vpop.f32.mrf.mxu0
      %v3906 = vadd.f32 %v3865, %v3905
      %v3907 = vpop.f32.mrf.mxu0
      %v3908 = vpop.f32.mrf.mxu0
      %3909 = vdwg.mxu0
      %3910 = vmatprep.subr.bf16.mxu0 %v3215
      %3911 = vmatpush1.bf16.msra.mxu0 %v3214
      %3912 = vmatprep.subr.bf16.mxu0 %v3207
      %3913 = vmatpush1.bf16.msra.mxu0 %v3206
      %3914 = vmatprep.subr.bf16.mxu0 %v3199
      %3915 = vmatpush1.bf16.msra.mxu0 %v3198
      %3916 = vmatprep.subr.bf16.mxu0 %v3191
      %3917 = vmatpush1.bf16.msra.mxu0 %v3190
      %3918 = vmatprep.subr.bf16.mxu0 %v3183
      %3919 = vmatpush1.bf16.msra.mxu0 %v3182
      %3920 = vmatprep.subr.bf16.mxu0 %v3175
      %3921 = vmatpush1.bf16.msra.mxu0 %v3174
      %3922 = vmatprep.subr.bf16.mxu0 %v3167
      %3923 = vmatpush1.bf16.msra.mxu0 %v3166
      %3924 = vmatprep.subr.bf16.mxu0 %v3159
      %3925 = vmatpush1.bf16.msra.mxu0 %v3158
      %3926 = vmatprep.subr.bf16.mxu0 %v3279
      %3927 = vmatpush2.bf16.msra.mxu0 %v3278
      %3928 = vmatprep.subr.bf16.mxu0 %v3271
      %3929 = vmatpush2.bf16.msra.mxu0 %v3270
      %3930 = vmatprep.subr.bf16.mxu0 %v3263
      %3931 = vmatpush2.bf16.msra.mxu0 %v3262
      %3932 = vmatprep.subr.bf16.mxu0 %v3255
      %3933 = vmatpush2.bf16.msra.mxu0 %v3254
      %3934 = vmatprep.subr.bf16.mxu0 %v3247
      %3935 = vmatpush2.bf16.msra.mxu0 %v3246
      %3936 = vmatprep.subr.bf16.mxu0 %v3239
      %3937 = vmatpush2.bf16.msra.mxu0 %v3238
      %3938 = vmatprep.subr.bf16.mxu0 %v3231
      %3939 = vmatpush2.bf16.msra.mxu0 %v3230
      %3940 = vmatprep.subr.bf16.mxu0 %v3223
      %3941 = vmatpush2.bf16.msra.mxu0 %v3222
      %3942 = vmatprep.mubr.bf16.mxu0 %v2083
      %3943 = vmatmul.mubr.bf16.gmra.mxu0 %v2082
      %v3944 = vpop.f32.mrf.mxu0
      %v3945 = vadd.f32 %v2371, %v3944
      %v3946 = vpop.f32.mrf.mxu0
      %v3947 = vadd.f32 %v2375, %v3946
      %v3948 = vpop.f32.mrf.mxu0
      %v3949 = vpop.f32.mrf.mxu0
      %3950 = vdwg.mxu0
      %3951 = vmatprep.subr.bf16.mxu0 %v3343
      %3952 = vmatpush1.bf16.msra.mxu0 %v3342
      %3953 = vmatprep.subr.bf16.mxu0 %v3335
      %3954 = vmatpush1.bf16.msra.mxu0 %v3334
      %3955 = vmatprep.subr.bf16.mxu0 %v3327
      %3956 = vmatpush1.bf16.msra.mxu0 %v3326
      %3957 = vmatprep.subr.bf16.mxu0 %v3319
      %3958 = vmatpush1.bf16.msra.mxu0 %v3318
      %3959 = vmatprep.subr.bf16.mxu0 %v3311
      %3960 = vmatpush1.bf16.msra.mxu0 %v3310
      %3961 = vmatprep.subr.bf16.mxu0 %v3303
      %3962 = vmatpush1.bf16.msra.mxu0 %v3302
      %3963 = vmatprep.subr.bf16.mxu0 %v3295
      %3964 = vmatpush1.bf16.msra.mxu0 %v3294
      %3965 = vmatprep.subr.bf16.mxu0 %v3287
      %3966 = vmatpush1.bf16.msra.mxu0 %v3286
      %3967 = vmatprep.subr.bf16.mxu0 %v3407
      %3968 = vmatpush2.bf16.msra.mxu0 %v3406
      %3969 = vmatprep.subr.bf16.mxu0 %v3399
      %3970 = vmatpush2.bf16.msra.mxu0 %v3398
      %3971 = vmatprep.subr.bf16.mxu0 %v3391
      %3972 = vmatpush2.bf16.msra.mxu0 %v3390
      %3973 = vmatprep.subr.bf16.mxu0 %v3383
      %3974 = vmatpush2.bf16.msra.mxu0 %v3382
      %3975 = vmatprep.subr.bf16.mxu0 %v3375
      %3976 = vmatpush2.bf16.msra.mxu0 %v3374
      %3977 = vmatprep.subr.bf16.mxu0 %v3367
      %3978 = vmatpush2.bf16.msra.mxu0 %v3366
      %3979 = vmatprep.subr.bf16.mxu0 %v3359
      %3980 = vmatpush2.bf16.msra.mxu0 %v3358
      %3981 = vmatprep.subr.bf16.mxu0 %v3351
      %3982 = vmatpush2.bf16.msra.mxu0 %v3350
      %3983 = vmatprep.mubr.bf16.mxu0 %v2085
      %3984 = vmatmul.mubr.bf16.gmra.mxu0 %v2084
      %v3985 = vpop.f32.mrf.mxu0
      %v3986 = vadd.f32 %v3945, %v3985
      %v3987 = vpop.f32.mrf.mxu0
      %v3988 = vadd.f32 %v3947, %v3987
      %v3989 = vpop.f32.mrf.mxu0
      %v3990 = vpop.f32.mrf.mxu0
      %3991 = vdwg.mxu0
      %v3992 = vmul.f32 %v3740, 0.2
      %v3993 = vmul.f32 %v3742, 0.2
      %v3994 = vmul.f32 %v3822, 0.2
      %v3995 = vmul.f32 %v3824, 0.2
      %v3996 = vmul.f32 %v3904, 0.2
      %v3997 = vmul.f32 %v3906, 0.2
      %v3998 = vmul.f32 %v3986, 0.2
      %v3999 = vmul.f32 %v3988, 0.2
      %v4000 = vmax.f32 %v3740, %v3992
      %v4001 = vmax.f32 %v3742, %v3993
      %v4002 = vmax.f32 %v3822, %v3994
      %v4003 = vmax.f32 %v3824, %v3995
      %v4004 = vmax.f32 %v3904, %v3996
      %v4005 = vmax.f32 %v3906, %v3997
      %v4006 = vmax.f32 %v3986, %v3998
      %v4007 = vmax.f32 %v3988, %v3999
      %v4008 = vpack.c.bf16 %v4000, %v4000
      %v4009 = vpack.c.bf16 %v4001, %v4001
      %v4010 = vpack.c.bf16 %v4002, %v4002
      %v4011 = vpack.c.bf16 %v4003, %v4003
      %v4012 = vpack.c.bf16 %v4004, %v4004
      %v4013 = vpack.c.bf16 %v4005, %v4005
      %v4014 = vpack.c.bf16 %v4006, %v4006
      %v4015 = vpack.c.bf16 %v4007, %v4007
      %v4016 = vld [vmem:[#allocation8] sm:$0xf]
      %v4017 = vld [vmem:[#allocation8 + $0x4] sm:$0xf]
      %v4018 = vld [vmem:[#allocation8 + $0x8] sm:$0xf]
      %v4019 = vld [vmem:[#allocation8 + $0xc] sm:$0xf]
      %v4020 = vld [vmem:[#allocation8 + $0x10] sm:$0xf]
      %v4021 = vld [vmem:[#allocation8 + $0x14] sm:$0xf]
      %v4022 = vld [vmem:[#allocation8 + $0x18] sm:$0xf]
      %v4023 = vld [vmem:[#allocation8 + $0x1c] sm:$0xf]
      %v4024 = vld [vmem:[#allocation8 + $0x20] sm:$0xf]
      %v4025 = vld [vmem:[#allocation8 + $0x24] sm:$0xf]
      %v4026 = vld [vmem:[#allocation8 + $0x28] sm:$0xf]
      %v4027 = vld [vmem:[#allocation8 + $0x2c] sm:$0xf]
      %v4028 = vld [vmem:[#allocation8 + $0x30] sm:$0xf]
      %v4029 = vld [vmem:[#allocation8 + $0x34] sm:$0xf]
      %v4030 = vld [vmem:[#allocation8 + $0x38] sm:$0xf]
      %v4031 = vld [vmem:[#allocation8 + $0x3c] sm:$0xf]
      %v4032 = vld [vmem:[#allocation8 + $0x40] sm:$0xf]
      %v4033 = vld [vmem:[#allocation8 + $0x44] sm:$0xf]
      %v4034 = vld [vmem:[#allocation8 + $0x48] sm:$0xf]
      %v4035 = vld [vmem:[#allocation8 + $0x4c] sm:$0xf]
      %v4036 = vld [vmem:[#allocation8 + $0x50] sm:$0xf]
      %v4037 = vld [vmem:[#allocation8 + $0x54] sm:$0xf]
      %v4038 = vld [vmem:[#allocation8 + $0x58] sm:$0xf]
      %v4039 = vld [vmem:[#allocation8 + $0x5c] sm:$0xf]
      %v4040 = vld [vmem:[#allocation8 + $0x60] sm:$0xf]
      %v4041 = vld [vmem:[#allocation8 + $0x64] sm:$0xf]
      %v4042 = vld [vmem:[#allocation8 + $0x68] sm:$0xf]
      %v4043 = vld [vmem:[#allocation8 + $0x6c] sm:$0xf]
      %v4044 = vld [vmem:[#allocation8 + $0x70] sm:$0xf]
      %v4045 = vld [vmem:[#allocation8 + $0x74] sm:$0xf]
      %v4046 = vld [vmem:[#allocation8 + $0x78] sm:$0xf]
      %v4047 = vld [vmem:[#allocation8 + $0x7c] sm:$0xf]
      %v4048 = vld [vmem:[#allocation8 + $0x80] sm:$0xf]
      %v4049 = vld [vmem:[#allocation8 + $0x84] sm:$0xf]
      %v4050 = vld [vmem:[#allocation8 + $0x88] sm:$0xf]
      %v4051 = vld [vmem:[#allocation8 + $0x8c] sm:$0xf]
      %v4052 = vld [vmem:[#allocation8 + $0x90] sm:$0xf]
      %v4053 = vld [vmem:[#allocation8 + $0x94] sm:$0xf]
      %v4054 = vld [vmem:[#allocation8 + $0x98] sm:$0xf]
      %v4055 = vld [vmem:[#allocation8 + $0x9c] sm:$0xf]
      %v4056 = vld [vmem:[#allocation8 + $0xa0] sm:$0xf]
      %v4057 = vld [vmem:[#allocation8 + $0xa4] sm:$0xf]
      %v4058 = vld [vmem:[#allocation8 + $0xa8] sm:$0xf]
      %v4059 = vld [vmem:[#allocation8 + $0xac] sm:$0xf]
      %v4060 = vld [vmem:[#allocation8 + $0xb0] sm:$0xf]
      %v4061 = vld [vmem:[#allocation8 + $0xb4] sm:$0xf]
      %v4062 = vld [vmem:[#allocation8 + $0xb8] sm:$0xf]
      %v4063 = vld [vmem:[#allocation8 + $0xbc] sm:$0xf]
      %v4064 = vld [vmem:[#allocation8 + $0xc0] sm:$0xf]
      %v4065 = vld [vmem:[#allocation8 + $0xc4] sm:$0xf]
      %v4066 = vld [vmem:[#allocation8 + $0xc8] sm:$0xf]
      %v4067 = vld [vmem:[#allocation8 + $0xcc] sm:$0xf]
      %v4068 = vld [vmem:[#allocation8 + $0xd0] sm:$0xf]
      %v4069 = vld [vmem:[#allocation8 + $0xd4] sm:$0xf]
      %v4070 = vld [vmem:[#allocation8 + $0xd8] sm:$0xf]
      %v4071 = vld [vmem:[#allocation8 + $0xdc] sm:$0xf]
      %v4072 = vld [vmem:[#allocation8 + $0xe0] sm:$0xf]
      %v4073 = vld [vmem:[#allocation8 + $0xe4] sm:$0xf]
      %v4074 = vld [vmem:[#allocation8 + $0xe8] sm:$0xf]
      %v4075 = vld [vmem:[#allocation8 + $0xec] sm:$0xf]
      %v4076 = vld [vmem:[#allocation8 + $0xf0] sm:$0xf]
      %v4077 = vld [vmem:[#allocation8 + $0xf4] sm:$0xf]
      %v4078 = vld [vmem:[#allocation8 + $0xf8] sm:$0xf]
      %v4079 = vld [vmem:[#allocation8 + $0xfc] sm:$0xf]
      %v4080 = vld [vmem:[#allocation8 + $0x100] sm:$0xf]
      %v4081 = vld [vmem:[#allocation8 + $0x104] sm:$0xf]
      %v4082 = vld [vmem:[#allocation8 + $0x108] sm:$0xf]
      %v4083 = vld [vmem:[#allocation8 + $0x10c] sm:$0xf]
      %v4084 = vld [vmem:[#allocation8 + $0x110] sm:$0xf]
      %v4085 = vld [vmem:[#allocation8 + $0x114] sm:$0xf]
      %v4086 = vld [vmem:[#allocation8 + $0x118] sm:$0xf]
      %v4087 = vld [vmem:[#allocation8 + $0x11c] sm:$0xf]
      %v4088 = vld [vmem:[#allocation8 + $0x120] sm:$0xf]
      %v4089 = vld [vmem:[#allocation8 + $0x124] sm:$0xf]
      %v4090 = vld [vmem:[#allocation8 + $0x128] sm:$0xf]
      %v4091 = vld [vmem:[#allocation8 + $0x12c] sm:$0xf]
      %v4092 = vld [vmem:[#allocation8 + $0x130] sm:$0xf]
      %v4093 = vld [vmem:[#allocation8 + $0x134] sm:$0xf]
      %v4094 = vld [vmem:[#allocation8 + $0x138] sm:$0xf]
      %v4095 = vld [vmem:[#allocation8 + $0x13c] sm:$0xf]
      %v4096 = vld [vmem:[#allocation8 + $0x140] sm:$0xf]
      %v4097 = vld [vmem:[#allocation8 + $0x144] sm:$0xf]
      %v4098 = vld [vmem:[#allocation8 + $0x148] sm:$0xf]
      %v4099 = vld [vmem:[#allocation8 + $0x14c] sm:$0xf]
      %v4100 = vld [vmem:[#allocation8 + $0x150] sm:$0xf]
      %v4101 = vld [vmem:[#allocation8 + $0x154] sm:$0xf]
      %v4102 = vld [vmem:[#allocation8 + $0x158] sm:$0xf]
      %v4103 = vld [vmem:[#allocation8 + $0x15c] sm:$0xf]
      %v4104 = vld [vmem:[#allocation8 + $0x160] sm:$0xf]
      %v4105 = vld [vmem:[#allocation8 + $0x164] sm:$0xf]
      %v4106 = vld [vmem:[#allocation8 + $0x168] sm:$0xf]
      %v4107 = vld [vmem:[#allocation8 + $0x16c] sm:$0xf]
      %v4108 = vld [vmem:[#allocation8 + $0x170] sm:$0xf]
      %v4109 = vld [vmem:[#allocation8 + $0x174] sm:$0xf]
      %v4110 = vld [vmem:[#allocation8 + $0x178] sm:$0xf]
      %v4111 = vld [vmem:[#allocation8 + $0x17c] sm:$0xf]
      %v4112 = vld [vmem:[#allocation8 + $0x180] sm:$0xf]
      %v4113 = vld [vmem:[#allocation8 + $0x184] sm:$0xf]
      %v4114 = vld [vmem:[#allocation8 + $0x188] sm:$0xf]
      %v4115 = vld [vmem:[#allocation8 + $0x18c] sm:$0xf]
      %v4116 = vld [vmem:[#allocation8 + $0x190] sm:$0xf]
      %v4117 = vld [vmem:[#allocation8 + $0x194] sm:$0xf]
      %v4118 = vld [vmem:[#allocation8 + $0x198] sm:$0xf]
      %v4119 = vld [vmem:[#allocation8 + $0x19c] sm:$0xf]
      %v4120 = vld [vmem:[#allocation8 + $0x1a0] sm:$0xf]
      %v4121 = vld [vmem:[#allocation8 + $0x1a4] sm:$0xf]
      %v4122 = vld [vmem:[#allocation8 + $0x1a8] sm:$0xf]
      %v4123 = vld [vmem:[#allocation8 + $0x1ac] sm:$0xf]
      %v4124 = vld [vmem:[#allocation8 + $0x1b0] sm:$0xf]
      %v4125 = vld [vmem:[#allocation8 + $0x1b4] sm:$0xf]
      %v4126 = vld [vmem:[#allocation8 + $0x1b8] sm:$0xf]
      %v4127 = vld [vmem:[#allocation8 + $0x1bc] sm:$0xf]
      %v4128 = vld [vmem:[#allocation8 + $0x1c0] sm:$0xf]
      %v4129 = vld [vmem:[#allocation8 + $0x1c4] sm:$0xf]
      %v4130 = vld [vmem:[#allocation8 + $0x1c8] sm:$0xf]
      %v4131 = vld [vmem:[#allocation8 + $0x1cc] sm:$0xf]
      %v4132 = vld [vmem:[#allocation8 + $0x1d0] sm:$0xf]
      %v4133 = vld [vmem:[#allocation8 + $0x1d4] sm:$0xf]
      %v4134 = vld [vmem:[#allocation8 + $0x1d8] sm:$0xf]
      %v4135 = vld [vmem:[#allocation8 + $0x1dc] sm:$0xf]
      %v4136 = vld [vmem:[#allocation8 + $0x1e0] sm:$0xf]
      %v4137 = vld [vmem:[#allocation8 + $0x1e4] sm:$0xf]
      %v4138 = vld [vmem:[#allocation8 + $0x1e8] sm:$0xf]
      %v4139 = vld [vmem:[#allocation8 + $0x1ec] sm:$0xf]
      %v4140 = vld [vmem:[#allocation8 + $0x1f0] sm:$0xf]
      %v4141 = vld [vmem:[#allocation8 + $0x1f4] sm:$0xf]
      %v4142 = vld [vmem:[#allocation8 + $0x1f8] sm:$0xf]
      %v4143 = vld [vmem:[#allocation8 + $0x1fc] sm:$0xf]
      %v4144 = vld [vmem:[%s6] sm:$0x1]
      %v4146 = vlaneseq
      %v4147 = vshrl.u32 %v4146, 7
      %v4148 = vsub.s32 0, %v4147
      %v4149 = vrot.slane %v4144, %v4148
      %v4279 = vunpack.c.l.b16 %v4016
      %v4280 = vunpack.c.l.b16 %v4017
      %v4281 = vunpack.c.l.b16 %v4018
      %v4282 = vunpack.c.l.b16 %v4019
      %v4283 = vunpack.c.l.b16 %v4020
      %v4284 = vunpack.c.l.b16 %v4021
      %v4285 = vunpack.c.l.b16 %v4022
      %v4286 = vunpack.c.l.b16 %v4023
      %v4287 = vunpack.c.l.b16 %v4024
      %v4288 = vunpack.c.l.b16 %v4025
      %v4289 = vunpack.c.l.b16 %v4026
      %v4290 = vunpack.c.l.b16 %v4027
      %v4291 = vunpack.c.l.b16 %v4028
      %v4292 = vunpack.c.l.b16 %v4029
      %v4293 = vunpack.c.l.b16 %v4030
      %v4294 = vunpack.c.l.b16 %v4031
      %v4295 = vunpack.c.l.b16 %v4032
      %v4296 = vunpack.c.l.b16 %v4033
      %v4297 = vunpack.c.l.b16 %v4034
      %v4298 = vunpack.c.l.b16 %v4035
      %v4299 = vunpack.c.l.b16 %v4036
      %v4300 = vunpack.c.l.b16 %v4037
      %v4301 = vunpack.c.l.b16 %v4038
      %v4302 = vunpack.c.l.b16 %v4039
      %v4303 = vunpack.c.l.b16 %v4040
      %v4304 = vunpack.c.l.b16 %v4041
      %v4305 = vunpack.c.l.b16 %v4042
      %v4306 = vunpack.c.l.b16 %v4043
      %v4307 = vunpack.c.l.b16 %v4044
      %v4308 = vunpack.c.l.b16 %v4045
      %v4309 = vunpack.c.l.b16 %v4046
      %v4310 = vunpack.c.l.b16 %v4047
      %v4311 = vunpack.c.l.b16 %v4048
      %v4312 = vunpack.c.l.b16 %v4049
      %v4313 = vunpack.c.l.b16 %v4050
      %v4314 = vunpack.c.l.b16 %v4051
      %v4315 = vunpack.c.l.b16 %v4052
      %v4316 = vunpack.c.l.b16 %v4053
      %v4317 = vunpack.c.l.b16 %v4054
      %v4318 = vunpack.c.l.b16 %v4055
      %v4319 = vunpack.c.l.b16 %v4056
      %v4320 = vunpack.c.l.b16 %v4057
      %v4321 = vunpack.c.l.b16 %v4058
      %v4322 = vunpack.c.l.b16 %v4059
      %v4323 = vunpack.c.l.b16 %v4060
      %v4324 = vunpack.c.l.b16 %v4061
      %v4325 = vunpack.c.l.b16 %v4062
      %v4326 = vunpack.c.l.b16 %v4063
      %v4327 = vunpack.c.l.b16 %v4064
      %v4328 = vunpack.c.l.b16 %v4065
      %v4329 = vunpack.c.l.b16 %v4066
      %v4330 = vunpack.c.l.b16 %v4067
      %v4331 = vunpack.c.l.b16 %v4068
      %v4332 = vunpack.c.l.b16 %v4069
      %v4333 = vunpack.c.l.b16 %v4070
      %v4334 = vunpack.c.l.b16 %v4071
      %v4335 = vunpack.c.l.b16 %v4072
      %v4336 = vunpack.c.l.b16 %v4073
      %v4337 = vunpack.c.l.b16 %v4074
      %v4338 = vunpack.c.l.b16 %v4075
      %v4339 = vunpack.c.l.b16 %v4076
      %v4340 = vunpack.c.l.b16 %v4077
      %v4341 = vunpack.c.l.b16 %v4078
      %v4342 = vunpack.c.l.b16 %v4079
      %v4343 = vunpack.c.l.b16 %v4080
      %v4344 = vunpack.c.l.b16 %v4081
      %v4345 = vunpack.c.l.b16 %v4082
      %v4346 = vunpack.c.l.b16 %v4083
      %v4347 = vunpack.c.l.b16 %v4084
      %v4348 = vunpack.c.l.b16 %v4085
      %v4349 = vunpack.c.l.b16 %v4086
      %v4350 = vunpack.c.l.b16 %v4087
      %v4351 = vunpack.c.l.b16 %v4088
      %v4352 = vunpack.c.l.b16 %v4089
      %v4353 = vunpack.c.l.b16 %v4090
      %v4354 = vunpack.c.l.b16 %v4091
      %v4355 = vunpack.c.l.b16 %v4092
      %v4356 = vunpack.c.l.b16 %v4093
      %v4357 = vunpack.c.l.b16 %v4094
      %v4358 = vunpack.c.l.b16 %v4095
      %v4359 = vunpack.c.l.b16 %v4096
      %v4360 = vunpack.c.l.b16 %v4097
      %v4361 = vunpack.c.l.b16 %v4098
      %v4362 = vunpack.c.l.b16 %v4099
      %v4363 = vunpack.c.l.b16 %v4100
      %v4364 = vunpack.c.l.b16 %v4101
      %v4365 = vunpack.c.l.b16 %v4102
      %v4366 = vunpack.c.l.b16 %v4103
      %v4367 = vunpack.c.l.b16 %v4104
      %v4368 = vunpack.c.l.b16 %v4105
      %v4369 = vunpack.c.l.b16 %v4106
      %v4370 = vunpack.c.l.b16 %v4107
      %v4371 = vunpack.c.l.b16 %v4108
      %v4372 = vunpack.c.l.b16 %v4109
      %v4373 = vunpack.c.l.b16 %v4110
      %v4374 = vunpack.c.l.b16 %v4111
      %v4375 = vunpack.c.l.b16 %v4112
      %v4376 = vunpack.c.l.b16 %v4113
      %v4377 = vunpack.c.l.b16 %v4114
      %v4378 = vunpack.c.l.b16 %v4115
      %v4379 = vunpack.c.l.b16 %v4116
      %v4380 = vunpack.c.l.b16 %v4117
      %v4381 = vunpack.c.l.b16 %v4118
      %v4382 = vunpack.c.l.b16 %v4119
      %v4383 = vunpack.c.l.b16 %v4120
      %v4384 = vunpack.c.l.b16 %v4121
      %v4385 = vunpack.c.l.b16 %v4122
      %v4386 = vunpack.c.l.b16 %v4123
      %v4387 = vunpack.c.l.b16 %v4124
      %v4388 = vunpack.c.l.b16 %v4125
      %v4389 = vunpack.c.l.b16 %v4126
      %v4390 = vunpack.c.l.b16 %v4127
      %v4391 = vunpack.c.l.b16 %v4128
      %v4392 = vunpack.c.l.b16 %v4129
      %v4393 = vunpack.c.l.b16 %v4130
      %v4394 = vunpack.c.l.b16 %v4131
      %v4395 = vunpack.c.l.b16 %v4132
      %v4396 = vunpack.c.l.b16 %v4133
      %v4397 = vunpack.c.l.b16 %v4134
      %v4398 = vunpack.c.l.b16 %v4135
      %v4399 = vunpack.c.l.b16 %v4136
      %v4400 = vunpack.c.l.b16 %v4137
      %v4401 = vunpack.c.l.b16 %v4138
      %v4402 = vunpack.c.l.b16 %v4139
      %v4403 = vunpack.c.l.b16 %v4140
      %v4404 = vunpack.c.l.b16 %v4141
      %v4405 = vunpack.c.l.b16 %v4142
      %v4406 = vunpack.c.l.b16 %v4143
      %v4407 = vpack.c.b16 %v4280, %v4279
      %v4408 = vpack.c.b16 %v4282, %v4281
      %v4409 = vpack.c.b16 %v4284, %v4283
      %v4410 = vpack.c.b16 %v4286, %v4285
      %v4411 = vpack.c.b16 %v4288, %v4287
      %v4412 = vpack.c.b16 %v4290, %v4289
      %v4413 = vpack.c.b16 %v4292, %v4291
      %v4414 = vpack.c.b16 %v4294, %v4293
      %v4415 = vpack.c.b16 %v4296, %v4295
      %v4416 = vpack.c.b16 %v4298, %v4297
      %v4417 = vpack.c.b16 %v4300, %v4299
      %v4418 = vpack.c.b16 %v4302, %v4301
      %v4419 = vpack.c.b16 %v4304, %v4303
      %v4420 = vpack.c.b16 %v4306, %v4305
      %v4421 = vpack.c.b16 %v4308, %v4307
      %v4422 = vpack.c.b16 %v4310, %v4309
      %v4423 = vpack.c.b16 %v4312, %v4311
      %v4424 = vpack.c.b16 %v4314, %v4313
      %v4425 = vpack.c.b16 %v4316, %v4315
      %v4426 = vpack.c.b16 %v4318, %v4317
      %v4427 = vpack.c.b16 %v4320, %v4319
      %v4428 = vpack.c.b16 %v4322, %v4321
      %v4429 = vpack.c.b16 %v4324, %v4323
      %v4430 = vpack.c.b16 %v4326, %v4325
      %v4431 = vpack.c.b16 %v4328, %v4327
      %v4432 = vpack.c.b16 %v4330, %v4329
      %v4433 = vpack.c.b16 %v4332, %v4331
      %v4434 = vpack.c.b16 %v4334, %v4333
      %v4435 = vpack.c.b16 %v4336, %v4335
      %v4436 = vpack.c.b16 %v4338, %v4337
      %v4437 = vpack.c.b16 %v4340, %v4339
      %v4438 = vpack.c.b16 %v4342, %v4341
      %v4439 = vpack.c.b16 %v4344, %v4343
      %v4440 = vpack.c.b16 %v4346, %v4345
      %v4441 = vpack.c.b16 %v4348, %v4347
      %v4442 = vpack.c.b16 %v4350, %v4349
      %v4443 = vpack.c.b16 %v4352, %v4351
      %v4444 = vpack.c.b16 %v4354, %v4353
      %v4445 = vpack.c.b16 %v4356, %v4355
      %v4446 = vpack.c.b16 %v4358, %v4357
      %v4447 = vpack.c.b16 %v4360, %v4359
      %v4448 = vpack.c.b16 %v4362, %v4361
      %v4449 = vpack.c.b16 %v4364, %v4363
      %v4450 = vpack.c.b16 %v4366, %v4365
      %v4451 = vpack.c.b16 %v4368, %v4367
      %v4452 = vpack.c.b16 %v4370, %v4369
      %v4453 = vpack.c.b16 %v4372, %v4371
      %v4454 = vpack.c.b16 %v4374, %v4373
      %v4455 = vpack.c.b16 %v4376, %v4375
      %v4456 = vpack.c.b16 %v4378, %v4377
      %v4457 = vpack.c.b16 %v4380, %v4379
      %v4458 = vpack.c.b16 %v4382, %v4381
      %v4459 = vpack.c.b16 %v4384, %v4383
      %v4460 = vpack.c.b16 %v4386, %v4385
      %v4461 = vpack.c.b16 %v4388, %v4387
      %v4462 = vpack.c.b16 %v4390, %v4389
      %v4463 = vpack.c.b16 %v4392, %v4391
      %v4464 = vpack.c.b16 %v4394, %v4393
      %v4465 = vpack.c.b16 %v4396, %v4395
      %v4466 = vpack.c.b16 %v4398, %v4397
      %v4467 = vpack.c.b16 %v4400, %v4399
      %v4468 = vpack.c.b16 %v4402, %v4401
      %v4469 = vpack.c.b16 %v4404, %v4403
      %v4470 = vpack.c.b16 %v4406, %v4405
      %4535 = vmatprep.subr.bf16.mxu0 0
      %4536 = vmatpush1.bf16.msra.mxu0 %v4414
      %4537 = vmatprep.subr.bf16.mxu0 0
      %4538 = vmatpush1.bf16.msra.mxu0 %v4413
      %4539 = vmatprep.subr.bf16.mxu0 0
      %4540 = vmatpush1.bf16.msra.mxu0 %v4412
      %4541 = vmatprep.subr.bf16.mxu0 0
      %4542 = vmatpush1.bf16.msra.mxu0 %v4411
      %4543 = vmatprep.subr.bf16.mxu0 0
      %4544 = vmatpush1.bf16.msra.mxu0 %v4410
      %4545 = vmatprep.subr.bf16.mxu0 0
      %4546 = vmatpush1.bf16.msra.mxu0 %v4409
      %4547 = vmatprep.subr.bf16.mxu0 0
      %4548 = vmatpush1.bf16.msra.mxu0 %v4408
      %4549 = vmatprep.subr.bf16.mxu0 0
      %4550 = vmatpush1.bf16.msra.mxu0 %v4407
      %4551 = vmatprep.subr.bf16.mxu0 0
      %4552 = vmatpush2.bf16.msra.mxu0 %v4422
      %4553 = vmatprep.subr.bf16.mxu0 0
      %4554 = vmatpush2.bf16.msra.mxu0 %v4421
      %4555 = vmatprep.subr.bf16.mxu0 0
      %4556 = vmatpush2.bf16.msra.mxu0 %v4420
      %4557 = vmatprep.subr.bf16.mxu0 0
      %4558 = vmatpush2.bf16.msra.mxu0 %v4419
      %4559 = vmatprep.subr.bf16.mxu0 0
      %4560 = vmatpush2.bf16.msra.mxu0 %v4418
      %4561 = vmatprep.subr.bf16.mxu0 0
      %4562 = vmatpush2.bf16.msra.mxu0 %v4417
      %4563 = vmatprep.subr.bf16.mxu0 0
      %4564 = vmatpush2.bf16.msra.mxu0 %v4416
      %4565 = vmatprep.subr.bf16.mxu0 0
      %4566 = vmatpush2.bf16.msra.mxu0 %v4415
      %4567 = vmatprep.mubr.bf16.mxu0 %v4009
      %4568 = vmatmul.mubr.bf16.gmra.mxu0 %v4008
      %v4569 = vpop.f32.mrf.mxu0
      %v4570 = vadd.f32 %v4149, %v4569
      %v4571 = vpop.f32.mrf.mxu0
      %v4572 = vpop.f32.mrf.mxu0
      %v4573 = vpop.f32.mrf.mxu0
      %4574 = vdwg.mxu0
      %4575 = vmatprep.subr.bf16.mxu0 0
      %4576 = vmatpush1.bf16.msra.mxu0 %v4430
      %4577 = vmatprep.subr.bf16.mxu0 0
      %4578 = vmatpush1.bf16.msra.mxu0 %v4429
      %4579 = vmatprep.subr.bf16.mxu0 0
      %4580 = vmatpush1.bf16.msra.mxu0 %v4428
      %4581 = vmatprep.subr.bf16.mxu0 0
      %4582 = vmatpush1.bf16.msra.mxu0 %v4427
      %4583 = vmatprep.subr.bf16.mxu0 0
      %4584 = vmatpush1.bf16.msra.mxu0 %v4426
      %4585 = vmatprep.subr.bf16.mxu0 0
      %4586 = vmatpush1.bf16.msra.mxu0 %v4425
      %4587 = vmatprep.subr.bf16.mxu0 0
      %4588 = vmatpush1.bf16.msra.mxu0 %v4424
      %4589 = vmatprep.subr.bf16.mxu0 0
      %4590 = vmatpush1.bf16.msra.mxu0 %v4423
      %4591 = vmatprep.subr.bf16.mxu0 0
      %4592 = vmatpush2.bf16.msra.mxu0 %v4438
      %4593 = vmatprep.subr.bf16.mxu0 0
      %4594 = vmatpush2.bf16.msra.mxu0 %v4437
      %4595 = vmatprep.subr.bf16.mxu0 0
      %4596 = vmatpush2.bf16.msra.mxu0 %v4436
      %4597 = vmatprep.subr.bf16.mxu0 0
      %4598 = vmatpush2.bf16.msra.mxu0 %v4435
      %4599 = vmatprep.subr.bf16.mxu0 0
      %4600 = vmatpush2.bf16.msra.mxu0 %v4434
      %4601 = vmatprep.subr.bf16.mxu0 0
      %4602 = vmatpush2.bf16.msra.mxu0 %v4433
      %4603 = vmatprep.subr.bf16.mxu0 0
      %4604 = vmatpush2.bf16.msra.mxu0 %v4432
      %4605 = vmatprep.subr.bf16.mxu0 0
      %4606 = vmatpush2.bf16.msra.mxu0 %v4431
      %4607 = vmatprep.mubr.bf16.mxu0 %v4011
      %4608 = vmatmul.mubr.bf16.gmra.mxu0 %v4010
      %v4609 = vpop.f32.mrf.mxu0
      %v4610 = vadd.f32 %v4570, %v4609
      %v4611 = vpop.f32.mrf.mxu0
      %v4612 = vpop.f32.mrf.mxu0
      %v4613 = vpop.f32.mrf.mxu0
      %4614 = vdwg.mxu0
      %4615 = vmatprep.subr.bf16.mxu0 0
      %4616 = vmatpush1.bf16.msra.mxu0 %v4446
      %4617 = vmatprep.subr.bf16.mxu0 0
      %4618 = vmatpush1.bf16.msra.mxu0 %v4445
      %4619 = vmatprep.subr.bf16.mxu0 0
      %4620 = vmatpush1.bf16.msra.mxu0 %v4444
      %4621 = vmatprep.subr.bf16.mxu0 0
      %4622 = vmatpush1.bf16.msra.mxu0 %v4443
      %4623 = vmatprep.subr.bf16.mxu0 0
      %4624 = vmatpush1.bf16.msra.mxu0 %v4442
      %4625 = vmatprep.subr.bf16.mxu0 0
      %4626 = vmatpush1.bf16.msra.mxu0 %v4441
      %4627 = vmatprep.subr.bf16.mxu0 0
      %4628 = vmatpush1.bf16.msra.mxu0 %v4440
      %4629 = vmatprep.subr.bf16.mxu0 0
      %4630 = vmatpush1.bf16.msra.mxu0 %v4439
      %4631 = vmatprep.subr.bf16.mxu0 0
      %4632 = vmatpush2.bf16.msra.mxu0 %v4454
      %4633 = vmatprep.subr.bf16.mxu0 0
      %4634 = vmatpush2.bf16.msra.mxu0 %v4453
      %4635 = vmatprep.subr.bf16.mxu0 0
      %4636 = vmatpush2.bf16.msra.mxu0 %v4452
      %4637 = vmatprep.subr.bf16.mxu0 0
      %4638 = vmatpush2.bf16.msra.mxu0 %v4451
      %4639 = vmatprep.subr.bf16.mxu0 0
      %4640 = vmatpush2.bf16.msra.mxu0 %v4450
      %4641 = vmatprep.subr.bf16.mxu0 0
      %4642 = vmatpush2.bf16.msra.mxu0 %v4449
      %4643 = vmatprep.subr.bf16.mxu0 0
      %4644 = vmatpush2.bf16.msra.mxu0 %v4448
      %4645 = vmatprep.subr.bf16.mxu0 0
      %4646 = vmatpush2.bf16.msra.mxu0 %v4447
      %4647 = vmatprep.mubr.bf16.mxu0 %v4013
      %4648 = vmatmul.mubr.bf16.gmra.mxu0 %v4012
      %v4649 = vpop.f32.mrf.mxu0
      %v4650 = vadd.f32 %v4610, %v4649
      %v4651 = vpop.f32.mrf.mxu0
      %v4652 = vpop.f32.mrf.mxu0
      %v4653 = vpop.f32.mrf.mxu0
      %4654 = vdwg.mxu0
      %4655 = vmatprep.subr.bf16.mxu0 0
      %4656 = vmatpush1.bf16.msra.mxu0 %v4462
      %4657 = vmatprep.subr.bf16.mxu0 0
      %4658 = vmatpush1.bf16.msra.mxu0 %v4461
      %4659 = vmatprep.subr.bf16.mxu0 0
      %4660 = vmatpush1.bf16.msra.mxu0 %v4460
      %4661 = vmatprep.subr.bf16.mxu0 0
      %4662 = vmatpush1.bf16.msra.mxu0 %v4459
      %4663 = vmatprep.subr.bf16.mxu0 0
      %4664 = vmatpush1.bf16.msra.mxu0 %v4458
      %4665 = vmatprep.subr.bf16.mxu0 0
      %4666 = vmatpush1.bf16.msra.mxu0 %v4457
      %4667 = vmatprep.subr.bf16.mxu0 0
      %4668 = vmatpush1.bf16.msra.mxu0 %v4456
      %4669 = vmatprep.subr.bf16.mxu0 0
      %4670 = vmatpush1.bf16.msra.mxu0 %v4455
      %4671 = vmatprep.subr.bf16.mxu0 0
      %4672 = vmatpush2.bf16.msra.mxu0 %v4470
      %4673 = vmatprep.subr.bf16.mxu0 0
      %4674 = vmatpush2.bf16.msra.mxu0 %v4469
      %4675 = vmatprep.subr.bf16.mxu0 0
      %4676 = vmatpush2.bf16.msra.mxu0 %v4468
      %4677 = vmatprep.subr.bf16.mxu0 0
      %4678 = vmatpush2.bf16.msra.mxu0 %v4467
      %4679 = vmatprep.subr.bf16.mxu0 0
      %4680 = vmatpush2.bf16.msra.mxu0 %v4466
      %4681 = vmatprep.subr.bf16.mxu0 0
      %4682 = vmatpush2.bf16.msra.mxu0 %v4465
      %4683 = vmatprep.subr.bf16.mxu0 0
      %4684 = vmatpush2.bf16.msra.mxu0 %v4464
      %4685 = vmatprep.subr.bf16.mxu0 0
      %4686 = vmatpush2.bf16.msra.mxu0 %v4463
      %4687 = vmatprep.mubr.bf16.mxu0 %v4015
      %4688 = vmatmul.mubr.bf16.gmra.mxu0 %v4014
      %v4689 = vpop.f32.mrf.mxu0
      %v4690 = vadd.f32 %v4650, %v4689
      %v4691 = vpop.f32.mrf.mxu0
      %v4692 = vpop.f32.mrf.mxu0
      %v4693 = vpop.f32.mrf.mxu0
      %4694 = vdwg.mxu0
      %4695 = vst [vmem:[#allocation9] sm:$0x3] %v4690
    $region49: #{_lambda_.1} parent=1 // pred_fallthru
      _
    // Predicated region
    $region50: #{_lambda_.1} parent=1 // pred_check
      _
    $region51: #{_lambda_.1} parent=1 // pred_check_branch
      %4697 = sbr.rel (0) target = $region53
    $region52: #{_lambda_.1} parent=1 // pred_region
      %s4699 = ssub.s32 32, 32
      %4700 = vsyncadd [#allocation5], %s4699
      %s4702 = sshll.u32 [#allocation9], 4
      %s4703 = int_to_ptr.vmem [resolvable:$true] %s4702
      %4705 = dma.vmem_to_hbm [thread:$0]  %s4703, 32, %s7, [#allocation5]
    $region53: #{_lambda_.1} parent=1 // pred_fallthru
      _
    // Predicated region
    $region54: #{_lambda_.1} parent=1 // pred_check
      _
    $region55: #{_lambda_.1} parent=1 // pred_check_branch
      %4707 = sbr.rel (0) target = $region57
    $region56: #{_lambda_.1} parent=1 // pred_region
      %4708 = dma.done [#allocation5], 32
    $region57: #{_lambda_.1} parent=1 // pred_fallthru
      _
    %4709 = vsyncpa [#allocation4], 1
    %4710 = vsyncpa [#allocation7], 1
    %4711 = vsyncpa [#allocation5], 1

</llo_original>
